<compile_context>
chip_gen: v6e
topology: v6e:2x2x1
jax: 0.10.0
libtpu: 0.0.40
codegen_flags: <defaults>
</compile_context>

<pallas_src>
import jax
import jax.numpy as jnp
from jax.experimental import pallas as pl
from jax.experimental.pallas import tpu as pltpu

HIDDEN_DIM = 32   # stands in for settings.HIDDEN_DIM
X_DIM = 8
BATCH = 2
SEQ = 8


# ----------------------------------------------------------------------------
# Fused Pallas kernel: 3-layer LSTM + linear_m/linear_a heads
# ----------------------------------------------------------------------------
def _net_kernel(x_ref,
                wih0_ref, whh0_ref, b0_ref,
                wih1_ref, whh1_ref, b1_ref,
                wih2_ref, whh2_ref, b2_ref,
                wma_ref, bma_ref,
                ma_ref,
                y_sc):
    """Single-invocation kernel (grid=()); everything resident in VMEM.

    x_ref   : (B, T, X_DIM)  batch-first input sequence
    wih*    : (D_in, 4H)     input-hidden weights (PyTorch W_ih, transposed)
    whh*    : (H, 4H)        hidden-hidden weights (PyTorch W_hh, transposed)
    b*      : (1, 4H)        b_ih + b_hh
    wma     : (H, 2)         fused [linear_m.weight ; linear_a.weight]^T
    bma     : (1, 2)         fused [linear_m.bias, linear_a.bias]
    ma_ref  : (B*T, 2)       output (m, a) per (batch, time), batch-major rows
    y_sc    : (B, T, H)      VMEM scratch holding a layer's hidden outputs
    """
    B, T, _ = x_ref.shape
    H = whh0_ref.shape[0]

    def run_layer(inp_ref, wih_ref, whh_ref, b_ref):
        d_in = inp_ref.shape[-1]
        # Hoisted input projection: all timesteps in one matmul (off the
        # serial recurrence path).
        inp2d = inp_ref[...].reshape(B * T, d_in)                 # (B*T, Din)
        xg = jnp.dot(inp2d, wih_ref[...],
                     preferred_element_type=jnp.float32) + b_ref[...]
        xg = xg.reshape(B, T, 4 * H)                              # (B, T, 4H)

        whh = whh_ref[...]
        h = jnp.zeros((B, H), jnp.float32)
        c = jnp.zeros((B, H), jnp.float32)

        for t in range(T):   # fully unrolled; T is static and small
            gates = (xg[:, t:t + 1, :].reshape(B, 4 * H)
                     + jnp.dot(h, whh, preferred_element_type=jnp.float32))
            # PyTorch gate order: i, f, g, o
            i_g = jax.nn.sigmoid(gates[:, 0 * H:1 * H])
            f_g = jax.nn.sigmoid(gates[:, 1 * H:2 * H])
            g_g = jnp.tanh(gates[:, 2 * H:3 * H])
            o_g = jax.nn.sigmoid(gates[:, 3 * H:4 * H])
            c = f_g * c + i_g * g_g
            h = o_g * jnp.tanh(c)
            # Collect this layer's hidden output for the next layer / heads.
            y_sc[:, t:t + 1, :] = h[:, None, :]

    # Layer 0 reads x; layers 1 & 2 read the previous layer's outputs from
    # the scratch (the full read happens before this layer overwrites it).
    run_layer(x_ref, wih0_ref, whh0_ref, b0_ref)
    run_layer(y_sc, wih1_ref, whh1_ref, b1_ref)
    run_layer(y_sc, wih2_ref, whh2_ref, b2_ref)

    # Fused linear_m / linear_a heads on the final hidden states, in-kernel.
    o2d = y_sc[...].reshape(B * T, H)
    ma = (jnp.dot(o2d, wma_ref[...], preferred_element_type=jnp.float32)
          + bma_ref[...])
    ma_ref[...] = ma.astype(ma_ref.dtype)


# ----------------------------------------------------------------------------
# Wrappers
# ----------------------------------------------------------------------------
def _net_pallas(params, x):
    B, T, _ = x.shape
    H = HIDDEN_DIM
    (w0, u0, b0), (w1, u1, b1), (w2, u2, b2) = params["lstm"]
    ma = pl.pallas_call(
        _net_kernel,
        out_shape=jax.ShapeDtypeStruct((B * T, 2), jnp.float32),
        scratch_shapes=[pltpu.VMEM((B, T, H), jnp.float32)],
    )(x, w0, u0, b0, w1, u1, b1, w2, u2, b2,
      params["heads_w"], params["heads_b"])
    return ma


@jax.jit
def net_forward(params, x, v):
    """Net.forward(x, v): x is (B, T, x_dim) batch_first. Returns (m, a)."""
    del v  # forward_ma is abstract; concrete head here does not use v.
    B, T, _ = x.shape
    ma = _net_pallas(params, x).reshape(B, T, 2)
    m = ma[..., 0:1]
    a = ma[..., 1:2]
    return m, a


def init_params(key, x_dim, hidden_dim):
    """Deterministic params mirroring PyTorch shapes (stored pre-transposed)."""
    params = {"lstm": []}
    k = 1.0 / jnp.sqrt(hidden_dim)
    for layer in range(3):
        d_in = x_dim if layer == 0 else hidden_dim
        key, k1, k2, k3, k4 = jax.random.split(key, 5)
        w_ih = jax.random.uniform(k1, (d_in, 4 * hidden_dim), jnp.float32, -k, k)
        w_hh = jax.random.uniform(k2, (hidden_dim, 4 * hidden_dim), jnp.float32, -k, k)
        b_ih = jax.random.uniform(k3, (4 * hidden_dim,), jnp.float32, -k, k)
        b_hh = jax.random.uniform(k4, (4 * hidden_dim,), jnp.float32, -k, k)
        params["lstm"].append((w_ih, w_hh, (b_ih + b_hh)[None, :]))
    key, k5, k6, k7, k8 = jax.random.split(key, 5)
    w_m = jax.random.uniform(k5, (hidden_dim, 1), jnp.float32, -k, k)
    w_a = jax.random.uniform(k6, (hidden_dim, 1), jnp.float32, -k, k)
    b_m = jax.random.uniform(k7, (1,), jnp.float32, -k, k)
    b_a = jax.random.uniform(k8, (1,), jnp.float32, -k, k)
    params["heads_w"] = jnp.concatenate([w_m, w_a], axis=1)      # (H, 2)
    params["heads_b"] = jnp.concatenate([b_m, b_a])[None, :]     # (1, 2)
    return params


def _net_forward_ref(params, x):
    """Pure-jnp reference (PyTorch LSTM semantics) for correctness check."""
    B, T, _ = x.shape
    seq = x
    for (w_ih, w_hh, bias) in params["lstm"]:
        H = w_hh.shape[0]
        h = jnp.zeros((B, H), jnp.float32)
        c = jnp.zeros((B, H), jnp.float32)
        ys = []
        for t in range(T):
            g = seq[:, t, :] @ w_ih + h @ w_hh + bias
            i_g = jax.nn.sigmoid(g[:, 0 * H:1 * H])
            f_g = jax.nn.sigmoid(g[:, 1 * H:2 * H])
            g_g = jnp.tanh(g[:, 2 * H:3 * H])
            o_g = jax.nn.sigmoid(g[:, 3 * H:4 * H])
            c = f_g * c + i_g * g_g
            h = o_g * jnp.tanh(c)
            ys.append(h)
        seq = jnp.stack(ys, axis=1)
    ma = seq.reshape(B * T, -1) @ params["heads_w"] + params["heads_b"]
    ma = ma.reshape(B, T, 2)
    return ma[..., 0:1], ma[..., 1:2]


if __name__ == "__main__":
    key = jax.random.PRNGKey(0)
    key, kp, kx, kv = jax.random.split(key, 4)
    params = init_params(kp, X_DIM, HIDDEN_DIM)
    x = jax.random.normal(kx, (BATCH, SEQ, X_DIM), jnp.float32)
    v = jax.random.uniform(kv, (BATCH, 1), jnp.float32, 0.5, 1.5)

    m, a = net_forward(params, x, v)
    jax.block_until_ready((m, a))
    assert m.shape == (BATCH, SEQ, 1) and a.shape == (BATCH, SEQ, 1)

    m_ref, a_ref = _net_forward_ref(params, x)
    assert jnp.allclose(m, m_ref, atol=1e-4, rtol=1e-4)
    assert jnp.allclose(a, a_ref, atol=1e-4, rtol=1e-4)

    print("KERNEL_OK")
</pallas_src>

<mosaic_0001>
module attributes {stable_mosaic.version = 11 : i64} {
  func.func @_net_kernel(%arg0: memref<2x8x8xf32, #tpu.memory_space<vmem>>, %arg1: memref<8x128xf32, #tpu.memory_space<vmem>>, %arg2: memref<32x128xf32, #tpu.memory_space<vmem>>, %arg3: memref<1x128xf32, #tpu.memory_space<vmem>>, %arg4: memref<32x128xf32, #tpu.memory_space<vmem>>, %arg5: memref<32x128xf32, #tpu.memory_space<vmem>>, %arg6: memref<1x128xf32, #tpu.memory_space<vmem>>, %arg7: memref<32x128xf32, #tpu.memory_space<vmem>>, %arg8: memref<32x128xf32, #tpu.memory_space<vmem>>, %arg9: memref<1x128xf32, #tpu.memory_space<vmem>>, %arg10: memref<32x2xf32, #tpu.memory_space<vmem>>, %arg11: memref<1x2xf32, #tpu.memory_space<vmem>>, %arg12: memref<16x2xf32, #tpu.memory_space<vmem>>, %arg13: memref<2x8x32xf32, #tpu.memory_space<vmem>>) attributes {dimension_semantics = [], scalar_prefetch = 0 : i64, scratch_operands = 1 : i64, tpu.core_type = #tpu.core_type<tc>} {
    %c0 = arith.constant 0 : index
    %c0_0 = arith.constant 0 : index
    %c0_1 = arith.constant 0 : index
    %0 = vector.load %arg0[%c0, %c0_0, %c0_1] : memref<2x8x8xf32, #tpu.memory_space<vmem>>, vector<2x8x8xf32>
    %1 = vector.shape_cast %0 : vector<2x8x8xf32> to vector<16x8xf32>
    %c0_2 = arith.constant 0 : index
    %c0_3 = arith.constant 0 : index
    %2 = vector.load %arg1[%c0_2, %c0_3] : memref<8x128xf32, #tpu.memory_space<vmem>>, vector<8x128xf32>
    %cst = arith.constant dense<0.000000e+00> : vector<16x128xf32>
    %3 = tpu.matmul %1, %2, %cst {dimension_numbers = #tpu.dot_dimension_numbers<[1], [0], [0], [1], [0, 0, 1, 1], [], []>} : vector<16x8xf32>, vector<8x128xf32>, vector<16x128xf32> -> vector<16x128xf32>
    %c0_4 = arith.constant 0 : index
    %c0_5 = arith.constant 0 : index
    %4 = vector.load %arg3[%c0_4, %c0_5] : memref<1x128xf32, #tpu.memory_space<vmem>>, vector<1x128xf32>
    %5 = vector.broadcast %4 : vector<1x128xf32> to vector<16x128xf32>
    %6 = arith.addf %3, %5 : vector<16x128xf32>
    %7 = vector.shape_cast %6 : vector<16x128xf32> to vector<2x8x128xf32>
    %c0_6 = arith.constant 0 : index
    %c0_7 = arith.constant 0 : index
    %8 = vector.load %arg2[%c0_6, %c0_7] : memref<32x128xf32, #tpu.memory_space<vmem>>, vector<32x128xf32>
    %cst_8 = arith.constant 0.000000e+00 : f32
    %9 = vector.broadcast %cst_8 : f32 to vector<2x32xf32>
    %cst_9 = arith.constant 0.000000e+00 : f32
    %10 = vector.broadcast %cst_9 : f32 to vector<2x32xf32>
    %11 = vector.extract_strided_slice %7 {offsets = [0, 0, 0], sizes = [2, 1, 128], strides = [1, 1, 1]} : vector<2x8x128xf32> to vector<2x1x128xf32>
    %12 = vector.shape_cast %11 : vector<2x1x128xf32> to vector<2x128xf32>
    %cst_10 = arith.constant dense<0.000000e+00> : vector<2x128xf32>
    %13 = tpu.matmul %9, %8, %cst_10 {dimension_numbers = #tpu.dot_dimension_numbers<[1], [0], [0], [1], [0, 0, 1, 1], [], []>} : vector<2x32xf32>, vector<32x128xf32>, vector<2x128xf32> -> vector<2x128xf32>
    %14 = arith.addf %12, %13 : vector<2x128xf32>
    %15 = vector.extract_strided_slice %14 {offsets = [0, 0], sizes = [2, 32], strides = [1, 1]} : vector<2x128xf32> to vector<2x32xf32>
    %16 = arith.negf %15 : vector<2x32xf32>
    %17 = math.exp %16 : vector<2x32xf32>
    %cst_11 = arith.constant 1.000000e+00 : f32
    %18 = vector.broadcast %cst_11 : f32 to vector<2x32xf32>
    %19 = arith.addf %18, %17 : vector<2x32xf32>
    %20 = arith.divf %18, %19 : vector<2x32xf32>
    %21 = vector.extract_strided_slice %14 {offsets = [0, 32], sizes = [2, 32], strides = [1, 1]} : vector<2x128xf32> to vector<2x32xf32>
    %22 = arith.negf %21 : vector<2x32xf32>
    %23 = math.exp %22 : vector<2x32xf32>
    %cst_12 = arith.constant 1.000000e+00 : f32
    %24 = vector.broadcast %cst_12 : f32 to vector<2x32xf32>
    %25 = arith.addf %24, %23 : vector<2x32xf32>
    %26 = arith.divf %24, %25 : vector<2x32xf32>
    %27 = vector.extract_strided_slice %14 {offsets = [0, 64], sizes = [2, 32], strides = [1, 1]} : vector<2x128xf32> to vector<2x32xf32>
    %28 = math.tanh %27 : vector<2x32xf32>
    %29 = vector.extract_strided_slice %14 {offsets = [0, 96], sizes = [2, 32], strides = [1, 1]} : vector<2x128xf32> to vector<2x32xf32>
    %30 = arith.negf %29 : vector<2x32xf32>
    %31 = math.exp %30 : vector<2x32xf32>
    %cst_13 = arith.constant 1.000000e+00 : f32
    %32 = vector.broadcast %cst_13 : f32 to vector<2x32xf32>
    %33 = arith.addf %32, %31 : vector<2x32xf32>
    %34 = arith.divf %32, %33 : vector<2x32xf32>
    %35 = arith.mulf %26, %10 : vector<2x32xf32>
    %36 = arith.mulf %20, %28 : vector<2x32xf32>
    %37 = arith.addf %35, %36 : vector<2x32xf32>
    %38 = math.tanh %37 : vector<2x32xf32>
    %39 = arith.mulf %34, %38 : vector<2x32xf32>
    %40 = vector.shape_cast %39 : vector<2x32xf32> to vector<2x1x32xf32>
    %c0_14 = arith.constant 0 : index
    %c0_15 = arith.constant 0 : index
    %c0_16 = arith.constant 0 : index
    %41 = vector.load %arg13[%c0_14, %c0_15, %c0_16] : memref<2x8x32xf32, #tpu.memory_space<vmem>>, vector<2x1x32xf32>
    tpu.vector_store %arg13[%c0_14, %c0_15, %c0_16], %40 {strides = array<i32>} : memref<2x8x32xf32, #tpu.memory_space<vmem>>, vector<2x1x32xf32>,
    %42 = vector.extract_strided_slice %7 {offsets = [0, 1, 0], sizes = [2, 1, 128], strides = [1, 1, 1]} : vector<2x8x128xf32> to vector<2x1x128xf32>
    %43 = vector.shape_cast %42 : vector<2x1x128xf32> to vector<2x128xf32>
    %cst_17 = arith.constant dense<0.000000e+00> : vector<2x128xf32>
    %44 = tpu.matmul %39, %8, %cst_17 {dimension_numbers = #tpu.dot_dimension_numbers<[1], [0], [0], [1], [0, 0, 1, 1], [], []>} : vector<2x32xf32>, vector<32x128xf32>, vector<2x128xf32> -> vector<2x128xf32>
    %45 = arith.addf %43, %44 : vector<2x128xf32>
    %46 = vector.extract_strided_slice %45 {offsets = [0, 0], sizes = [2, 32], strides = [1, 1]} : vector<2x128xf32> to vector<2x32xf32>
    %47 = arith.negf %46 : vector<2x32xf32>
    %48 = math.exp %47 : vector<2x32xf32>
    %cst_18 = arith.constant 1.000000e+00 : f32
    %49 = vector.broadcast %cst_18 : f32 to vector<2x32xf32>
    %50 = arith.addf %49, %48 : vector<2x32xf32>
    %51 = arith.divf %49, %50 : vector<2x32xf32>
    %52 = vector.extract_strided_slice %45 {offsets = [0, 32], sizes = [2, 32], strides = [1, 1]} : vector<2x128xf32> to vector<2x32xf32>
    %53 = arith.negf %52 : vector<2x32xf32>
    %54 = math.exp %53 : vector<2x32xf32>
    %cst_19 = arith.constant 1.000000e+00 : f32
    %55 = vector.broadcast %cst_19 : f32 to vector<2x32xf32>
    %56 = arith.addf %55, %54 : vector<2x32xf32>
    %57 = arith.divf %55, %56 : vector<2x32xf32>
    %58 = vector.extract_strided_slice %45 {offsets = [0, 64], sizes = [2, 32], strides = [1, 1]} : vector<2x128xf32> to vector<2x32xf32>
    %59 = math.tanh %58 : vector<2x32xf32>
    %60 = vector.extract_strided_slice %45 {offsets = [0, 96], sizes = [2, 32], strides = [1, 1]} : vector<2x128xf32> to vector<2x32xf32>
    %61 = arith.negf %60 : vector<2x32xf32>
    %62 = math.exp %61 : vector<2x32xf32>
    %cst_20 = arith.constant 1.000000e+00 : f32
    %63 = vector.broadcast %cst_20 : f32 to vector<2x32xf32>
    %64 = arith.addf %63, %62 : vector<2x32xf32>
    %65 = arith.divf %63, %64 : vector<2x32xf32>
    %66 = arith.mulf %57, %37 : vector<2x32xf32>
    %67 = arith.mulf %51, %59 : vector<2x32xf32>
    %68 = arith.addf %66, %67 : vector<2x32xf32>
    %69 = math.tanh %68 : vector<2x32xf32>
    %70 = arith.mulf %65, %69 : vector<2x32xf32>
    %71 = vector.shape_cast %70 : vector<2x32xf32> to vector<2x1x32xf32>
    %c0_21 = arith.constant 0 : index
    %c1 = arith.constant 1 : index
    %c0_22 = arith.constant 0 : index
    %72 = vector.load %arg13[%c0_21, %c1, %c0_22] : memref<2x8x32xf32, #tpu.memory_space<vmem>>, vector<2x1x32xf32>
    tpu.vector_store %arg13[%c0_21, %c1, %c0_22], %71 {strides = array<i32>} : memref<2x8x32xf32, #tpu.memory_space<vmem>>, vector<2x1x32xf32>,
    %73 = vector.extract_strided_slice %7 {offsets = [0, 2, 0], sizes = [2, 1, 128], strides = [1, 1, 1]} : vector<2x8x128xf32> to vector<2x1x128xf32>
    %74 = vector.shape_cast %73 : vector<2x1x128xf32> to vector<2x128xf32>
    %cst_23 = arith.constant dense<0.000000e+00> : vector<2x128xf32>
    %75 = tpu.matmul %70, %8, %cst_23 {dimension_numbers = #tpu.dot_dimension_numbers<[1], [0], [0], [1], [0, 0, 1, 1], [], []>} : vector<2x32xf32>, vector<32x128xf32>, vector<2x128xf32> -> vector<2x128xf32>
    %76 = arith.addf %74, %75 : vector<2x128xf32>
    %77 = vector.extract_strided_slice %76 {offsets = [0, 0], sizes = [2, 32], strides = [1, 1]} : vector<2x128xf32> to vector<2x32xf32>
    %78 = arith.negf %77 : vector<2x32xf32>
    %79 = math.exp %78 : vector<2x32xf32>
    %cst_24 = arith.constant 1.000000e+00 : f32
    %80 = vector.broadcast %cst_24 : f32 to vector<2x32xf32>
    %81 = arith.addf %80, %79 : vector<2x32xf32>
    %82 = arith.divf %80, %81 : vector<2x32xf32>
    %83 = vector.extract_strided_slice %76 {offsets = [0, 32], sizes = [2, 32], strides = [1, 1]} : vector<2x128xf32> to vector<2x32xf32>
    %84 = arith.negf %83 : vector<2x32xf32>
    %85 = math.exp %84 : vector<2x32xf32>
    %cst_25 = arith.constant 1.000000e+00 : f32
    %86 = vector.broadcast %cst_25 : f32 to vector<2x32xf32>
    %87 = arith.addf %86, %85 : vector<2x32xf32>
    %88 = arith.divf %86, %87 : vector<2x32xf32>
    %89 = vector.extract_strided_slice %76 {offsets = [0, 64], sizes = [2, 32], strides = [1, 1]} : vector<2x128xf32> to vector<2x32xf32>
    %90 = math.tanh %89 : vector<2x32xf32>
    %91 = vector.extract_strided_slice %76 {offsets = [0, 96], sizes = [2, 32], strides = [1, 1]} : vector<2x128xf32> to vector<2x32xf32>
    %92 = arith.negf %91 : vector<2x32xf32>
    %93 = math.exp %92 : vector<2x32xf32>
    %cst_26 = arith.constant 1.000000e+00 : f32
    %94 = vector.broadcast %cst_26 : f32 to vector<2x32xf32>
    %95 = arith.addf %94, %93 : vector<2x32xf32>
    %96 = arith.divf %94, %95 : vector<2x32xf32>
    %97 = arith.mulf %88, %68 : vector<2x32xf32>
    %98 = arith.mulf %82, %90 : vector<2x32xf32>
    %99 = arith.addf %97, %98 : vector<2x32xf32>
    %100 = math.tanh %99 : vector<2x32xf32>
    %101 = arith.mulf %96, %100 : vector<2x32xf32>
    %102 = vector.shape_cast %101 : vector<2x32xf32> to vector<2x1x32xf32>
    %c0_27 = arith.constant 0 : index
    %c2 = arith.constant 2 : index
    %c0_28 = arith.constant 0 : index
    %103 = vector.load %arg13[%c0_27, %c2, %c0_28] : memref<2x8x32xf32, #tpu.memory_space<vmem>>, vector<2x1x32xf32>
    tpu.vector_store %arg13[%c0_27, %c2, %c0_28], %102 {strides = array<i32>} : memref<2x8x32xf32, #tpu.memory_space<vmem>>, vector<2x1x32xf32>,
    %104 = vector.extract_strided_slice %7 {offsets = [0, 3, 0], sizes = [2, 1, 128], strides = [1, 1, 1]} : vector<2x8x128xf32> to vector<2x1x128xf32>
    %105 = vector.shape_cast %104 : vector<2x1x128xf32> to vector<2x128xf32>
    %cst_29 = arith.constant dense<0.000000e+00> : vector<2x128xf32>
    %106 = tpu.matmul %101, %8, %cst_29 {dimension_numbers = #tpu.dot_dimension_numbers<[1], [0], [0], [1], [0, 0, 1, 1], [], []>} : vector<2x32xf32>, vector<32x128xf32>, vector<2x128xf32> -> vector<2x128xf32>
    %107 = arith.addf %105, %106 : vector<2x128xf32>
    %108 = vector.extract_strided_slice %107 {offsets = [0, 0], sizes = [2, 32], strides = [1, 1]} : vector<2x128xf32> to vector<2x32xf32>
    %109 = arith.negf %108 : vector<2x32xf32>
    %110 = math.exp %109 : vector<2x32xf32>
    %cst_30 = arith.constant 1.000000e+00 : f32
    %111 = vector.broadcast %cst_30 : f32 to vector<2x32xf32>
    %112 = arith.addf %111, %110 : vector<2x32xf32>
    %113 = arith.divf %111, %112 : vector<2x32xf32>
    %114 = vector.extract_strided_slice %107 {offsets = [0, 32], sizes = [2, 32], strides = [1, 1]} : vector<2x128xf32> to vector<2x32xf32>
    %115 = arith.negf %114 : vector<2x32xf32>
    %116 = math.exp %115 : vector<2x32xf32>
    %cst_31 = arith.constant 1.000000e+00 : f32
    %117 = vector.broadcast %cst_31 : f32 to vector<2x32xf32>
    %118 = arith.addf %117, %116 : vector<2x32xf32>
    %119 = arith.divf %117, %118 : vector<2x32xf32>
    %120 = vector.extract_strided_slice %107 {offsets = [0, 64], sizes = [2, 32], strides = [1, 1]} : vector<2x128xf32> to vector<2x32xf32>
    %121 = math.tanh %120 : vector<2x32xf32>
    %122 = vector.extract_strided_slice %107 {offsets = [0, 96], sizes = [2, 32], strides = [1, 1]} : vector<2x128xf32> to vector<2x32xf32>
    %123 = arith.negf %122 : vector<2x32xf32>
    %124 = math.exp %123 : vector<2x32xf32>
    %cst_32 = arith.constant 1.000000e+00 : f32
    %125 = vector.broadcast %cst_32 : f32 to vector<2x32xf32>
    %126 = arith.addf %125, %124 : vector<2x32xf32>
    %127 = arith.divf %125, %126 : vector<2x32xf32>
    %128 = arith.mulf %119, %99 : vector<2x32xf32>
    %129 = arith.mulf %113, %121 : vector<2x32xf32>
    %130 = arith.addf %128, %129 : vector<2x32xf32>
    %131 = math.tanh %130 : vector<2x32xf32>
    %132 = arith.mulf %127, %131 : vector<2x32xf32>
    %133 = vector.shape_cast %132 : vector<2x32xf32> to vector<2x1x32xf32>
    %c0_33 = arith.constant 0 : index
    %c3 = arith.constant 3 : index
    %c0_34 = arith.constant 0 : index
    %134 = vector.load %arg13[%c0_33, %c3, %c0_34] : memref<2x8x32xf32, #tpu.memory_space<vmem>>, vector<2x1x32xf32>
    tpu.vector_store %arg13[%c0_33, %c3, %c0_34], %133 {strides = array<i32>} : memref<2x8x32xf32, #tpu.memory_space<vmem>>, vector<2x1x32xf32>,
    %135 = vector.extract_strided_slice %7 {offsets = [0, 4, 0], sizes = [2, 1, 128], strides = [1, 1, 1]} : vector<2x8x128xf32> to vector<2x1x128xf32>
    %136 = vector.shape_cast %135 : vector<2x1x128xf32> to vector<2x128xf32>
    %cst_35 = arith.constant dense<0.000000e+00> : vector<2x128xf32>
    %137 = tpu.matmul %132, %8, %cst_35 {dimension_numbers = #tpu.dot_dimension_numbers<[1], [0], [0], [1], [0, 0, 1, 1], [], []>} : vector<2x32xf32>, vector<32x128xf32>, vector<2x128xf32> -> vector<2x128xf32>
    %138 = arith.addf %136, %137 : vector<2x128xf32>
    %139 = vector.extract_strided_slice %138 {offsets = [0, 0], sizes = [2, 32], strides = [1, 1]} : vector<2x128xf32> to vector<2x32xf32>
    %140 = arith.negf %139 : vector<2x32xf32>
    %141 = math.exp %140 : vector<2x32xf32>
    %cst_36 = arith.constant 1.000000e+00 : f32
    %142 = vector.broadcast %cst_36 : f32 to vector<2x32xf32>
    %143 = arith.addf %142, %141 : vector<2x32xf32>
    %144 = arith.divf %142, %143 : vector<2x32xf32>
    %145 = vector.extract_strided_slice %138 {offsets = [0, 32], sizes = [2, 32], strides = [1, 1]} : vector<2x128xf32> to vector<2x32xf32>
    %146 = arith.negf %145 : vector<2x32xf32>
    %147 = math.exp %146 : vector<2x32xf32>
    %cst_37 = arith.constant 1.000000e+00 : f32
    %148 = vector.broadcast %cst_37 : f32 to vector<2x32xf32>
    %149 = arith.addf %148, %147 : vector<2x32xf32>
    %150 = arith.divf %148, %149 : vector<2x32xf32>
    %151 = vector.extract_strided_slice %138 {offsets = [0, 64], sizes = [2, 32], strides = [1, 1]} : vector<2x128xf32> to vector<2x32xf32>
    %152 = math.tanh %151 : vector<2x32xf32>
    %153 = vector.extract_strided_slice %138 {offsets = [0, 96], sizes = [2, 32], strides = [1, 1]} : vector<2x128xf32> to vector<2x32xf32>
    %154 = arith.negf %153 : vector<2x32xf32>
    %155 = math.exp %154 : vector<2x32xf32>
    %cst_38 = arith.constant 1.000000e+00 : f32
    %156 = vector.broadcast %cst_38 : f32 to vector<2x32xf32>
    %157 = arith.addf %156, %155 : vector<2x32xf32>
    %158 = arith.divf %156, %157 : vector<2x32xf32>
    %159 = arith.mulf %150, %130 : vector<2x32xf32>
    %160 = arith.mulf %144, %152 : vector<2x32xf32>
    %161 = arith.addf %159, %160 : vector<2x32xf32>
    %162 = math.tanh %161 : vector<2x32xf32>
    %163 = arith.mulf %158, %162 : vector<2x32xf32>
    %164 = vector.shape_cast %163 : vector<2x32xf32> to vector<2x1x32xf32>
    %c0_39 = arith.constant 0 : index
    %c4 = arith.constant 4 : index
    %c0_40 = arith.constant 0 : index
    %165 = vector.load %arg13[%c0_39, %c4, %c0_40] : memref<2x8x32xf32, #tpu.memory_space<vmem>>, vector<2x1x32xf32>
    tpu.vector_store %arg13[%c0_39, %c4, %c0_40], %164 {strides = array<i32>} : memref<2x8x32xf32, #tpu.memory_space<vmem>>, vector<2x1x32xf32>,
    %166 = vector.extract_strided_slice %7 {offsets = [0, 5, 0], sizes = [2, 1, 128], strides = [1, 1, 1]} : vector<2x8x128xf32> to vector<2x1x128xf32>
    %167 = vector.shape_cast %166 : vector<2x1x128xf32> to vector<2x128xf32>
    %cst_41 = arith.constant dense<0.000000e+00> : vector<2x128xf32>
    %168 = tpu.matmul %163, %8, %cst_41 {dimension_numbers = #tpu.dot_dimension_numbers<[1], [0], [0], [1], [0, 0, 1, 1], [], []>} : vector<2x32xf32>, vector<32x128xf32>, vector<2x128xf32> -> vector<2x128xf32>
    %169 = arith.addf %167, %168 : vector<2x128xf32>
    %170 = vector.extract_strided_slice %169 {offsets = [0, 0], sizes = [2, 32], strides = [1, 1]} : vector<2x128xf32> to vector<2x32xf32>
    %171 = arith.negf %170 : vector<2x32xf32>
    %172 = math.exp %171 : vector<2x32xf32>
    %cst_42 = arith.constant 1.000000e+00 : f32
    %173 = vector.broadcast %cst_42 : f32 to vector<2x32xf32>
    %174 = arith.addf %173, %172 : vector<2x32xf32>
    %175 = arith.divf %173, %174 : vector<2x32xf32>
    %176 = vector.extract_strided_slice %169 {offsets = [0, 32], sizes = [2, 32], strides = [1, 1]} : vector<2x128xf32> to vector<2x32xf32>
    %177 = arith.negf %176 : vector<2x32xf32>
    %178 = math.exp %177 : vector<2x32xf32>
    %cst_43 = arith.constant 1.000000e+00 : f32
    %179 = vector.broadcast %cst_43 : f32 to vector<2x32xf32>
    %180 = arith.addf %179, %178 : vector<2x32xf32>
    %181 = arith.divf %179, %180 : vector<2x32xf32>
    %182 = vector.extract_strided_slice %169 {offsets = [0, 64], sizes = [2, 32], strides = [1, 1]} : vector<2x128xf32> to vector<2x32xf32>
    %183 = math.tanh %182 : vector<2x32xf32>
    %184 = vector.extract_strided_slice %169 {offsets = [0, 96], sizes = [2, 32], strides = [1, 1]} : vector<2x128xf32> to vector<2x32xf32>
    %185 = arith.negf %184 : vector<2x32xf32>
    %186 = math.exp %185 : vector<2x32xf32>
    %cst_44 = arith.constant 1.000000e+00 : f32
    %187 = vector.broadcast %cst_44 : f32 to vector<2x32xf32>
    %188 = arith.addf %187, %186 : vector<2x32xf32>
    %189 = arith.divf %187, %188 : vector<2x32xf32>
    %190 = arith.mulf %181, %161 : vector<2x32xf32>
    %191 = arith.mulf %175, %183 : vector<2x32xf32>
    %192 = arith.addf %190, %191 : vector<2x32xf32>
    %193 = math.tanh %192 : vector<2x32xf32>
    %194 = arith.mulf %189, %193 : vector<2x32xf32>
    %195 = vector.shape_cast %194 : vector<2x32xf32> to vector<2x1x32xf32>
    %c0_45 = arith.constant 0 : index
    %c5 = arith.constant 5 : index
    %c0_46 = arith.constant 0 : index
    %196 = vector.load %arg13[%c0_45, %c5, %c0_46] : memref<2x8x32xf32, #tpu.memory_space<vmem>>, vector<2x1x32xf32>
    tpu.vector_store %arg13[%c0_45, %c5, %c0_46], %195 {strides = array<i32>} : memref<2x8x32xf32, #tpu.memory_space<vmem>>, vector<2x1x32xf32>,
    %197 = vector.extract_strided_slice %7 {offsets = [0, 6, 0], sizes = [2, 1, 128], strides = [1, 1, 1]} : vector<2x8x128xf32> to vector<2x1x128xf32>
    %198 = vector.shape_cast %197 : vector<2x1x128xf32> to vector<2x128xf32>
    %cst_47 = arith.constant dense<0.000000e+00> : vector<2x128xf32>
    %199 = tpu.matmul %194, %8, %cst_47 {dimension_numbers = #tpu.dot_dimension_numbers<[1], [0], [0], [1], [0, 0, 1, 1], [], []>} : vector<2x32xf32>, vector<32x128xf32>, vector<2x128xf32> -> vector<2x128xf32>
    %200 = arith.addf %198, %199 : vector<2x128xf32>
    %201 = vector.extract_strided_slice %200 {offsets = [0, 0], sizes = [2, 32], strides = [1, 1]} : vector<2x128xf32> to vector<2x32xf32>
    %202 = arith.negf %201 : vector<2x32xf32>
    %203 = math.exp %202 : vector<2x32xf32>
    %cst_48 = arith.constant 1.000000e+00 : f32
    %204 = vector.broadcast %cst_48 : f32 to vector<2x32xf32>
    %205 = arith.addf %204, %203 : vector<2x32xf32>
    %206 = arith.divf %204, %205 : vector<2x32xf32>
    %207 = vector.extract_strided_slice %200 {offsets = [0, 32], sizes = [2, 32], strides = [1, 1]} : vector<2x128xf32> to vector<2x32xf32>
    %208 = arith.negf %207 : vector<2x32xf32>
    %209 = math.exp %208 : vector<2x32xf32>
    %cst_49 = arith.constant 1.000000e+00 : f32
    %210 = vector.broadcast %cst_49 : f32 to vector<2x32xf32>
    %211 = arith.addf %210, %209 : vector<2x32xf32>
    %212 = arith.divf %210, %211 : vector<2x32xf32>
    %213 = vector.extract_strided_slice %200 {offsets = [0, 64], sizes = [2, 32], strides = [1, 1]} : vector<2x128xf32> to vector<2x32xf32>
    %214 = math.tanh %213 : vector<2x32xf32>
    %215 = vector.extract_strided_slice %200 {offsets = [0, 96], sizes = [2, 32], strides = [1, 1]} : vector<2x128xf32> to vector<2x32xf32>
    %216 = arith.negf %215 : vector<2x32xf32>
    %217 = math.exp %216 : vector<2x32xf32>
    %cst_50 = arith.constant 1.000000e+00 : f32
    %218 = vector.broadcast %cst_50 : f32 to vector<2x32xf32>
    %219 = arith.addf %218, %217 : vector<2x32xf32>
    %220 = arith.divf %218, %219 : vector<2x32xf32>
    %221 = arith.mulf %212, %192 : vector<2x32xf32>
    %222 = arith.mulf %206, %214 : vector<2x32xf32>
    %223 = arith.addf %221, %222 : vector<2x32xf32>
    %224 = math.tanh %223 : vector<2x32xf32>
    %225 = arith.mulf %220, %224 : vector<2x32xf32>
    %226 = vector.shape_cast %225 : vector<2x32xf32> to vector<2x1x32xf32>
    %c0_51 = arith.constant 0 : index
    %c6 = arith.constant 6 : index
    %c0_52 = arith.constant 0 : index
    %227 = vector.load %arg13[%c0_51, %c6, %c0_52] : memref<2x8x32xf32, #tpu.memory_space<vmem>>, vector<2x1x32xf32>
    tpu.vector_store %arg13[%c0_51, %c6, %c0_52], %226 {strides = array<i32>} : memref<2x8x32xf32, #tpu.memory_space<vmem>>, vector<2x1x32xf32>,
    %228 = vector.extract_strided_slice %7 {offsets = [0, 7, 0], sizes = [2, 1, 128], strides = [1, 1, 1]} : vector<2x8x128xf32> to vector<2x1x128xf32>
    %229 = vector.shape_cast %228 : vector<2x1x128xf32> to vector<2x128xf32>
    %cst_53 = arith.constant dense<0.000000e+00> : vector<2x128xf32>
    %230 = tpu.matmul %225, %8, %cst_53 {dimension_numbers = #tpu.dot_dimension_numbers<[1], [0], [0], [1], [0, 0, 1, 1], [], []>} : vector<2x32xf32>, vector<32x128xf32>, vector<2x128xf32> -> vector<2x128xf32>
    %231 = arith.addf %229, %230 : vector<2x128xf32>
    %232 = vector.extract_strided_slice %231 {offsets = [0, 0], sizes = [2, 32], strides = [1, 1]} : vector<2x128xf32> to vector<2x32xf32>
    %233 = arith.negf %232 : vector<2x32xf32>
    %234 = math.exp %233 : vector<2x32xf32>
    %cst_54 = arith.constant 1.000000e+00 : f32
    %235 = vector.broadcast %cst_54 : f32 to vector<2x32xf32>
    %236 = arith.addf %235, %234 : vector<2x32xf32>
    %237 = arith.divf %235, %236 : vector<2x32xf32>
    %238 = vector.extract_strided_slice %231 {offsets = [0, 32], sizes = [2, 32], strides = [1, 1]} : vector<2x128xf32> to vector<2x32xf32>
    %239 = arith.negf %238 : vector<2x32xf32>
    %240 = math.exp %239 : vector<2x32xf32>
    %cst_55 = arith.constant 1.000000e+00 : f32
    %241 = vector.broadcast %cst_55 : f32 to vector<2x32xf32>
    %242 = arith.addf %241, %240 : vector<2x32xf32>
    %243 = arith.divf %241, %242 : vector<2x32xf32>
    %244 = vector.extract_strided_slice %231 {offsets = [0, 64], sizes = [2, 32], strides = [1, 1]} : vector<2x128xf32> to vector<2x32xf32>
    %245 = math.tanh %244 : vector<2x32xf32>
    %246 = vector.extract_strided_slice %231 {offsets = [0, 96], sizes = [2, 32], strides = [1, 1]} : vector<2x128xf32> to vector<2x32xf32>
    %247 = arith.negf %246 : vector<2x32xf32>
    %248 = math.exp %247 : vector<2x32xf32>
    %cst_56 = arith.constant 1.000000e+00 : f32
    %249 = vector.broadcast %cst_56 : f32 to vector<2x32xf32>
    %250 = arith.addf %249, %248 : vector<2x32xf32>
    %251 = arith.divf %249, %250 : vector<2x32xf32>
    %252 = arith.mulf %243, %223 : vector<2x32xf32>
    %253 = arith.mulf %237, %245 : vector<2x32xf32>
    %254 = arith.addf %252, %253 : vector<2x32xf32>
    %255 = math.tanh %254 : vector<2x32xf32>
    %256 = arith.mulf %251, %255 : vector<2x32xf32>
    %257 = vector.shape_cast %256 : vector<2x32xf32> to vector<2x1x32xf32>
    %c0_57 = arith.constant 0 : index
    %c7 = arith.constant 7 : index
    %c0_58 = arith.constant 0 : index
    %258 = vector.load %arg13[%c0_57, %c7, %c0_58] : memref<2x8x32xf32, #tpu.memory_space<vmem>>, vector<2x1x32xf32>
    tpu.vector_store %arg13[%c0_57, %c7, %c0_58], %257 {strides = array<i32>} : memref<2x8x32xf32, #tpu.memory_space<vmem>>, vector<2x1x32xf32>,
    %c0_59 = arith.constant 0 : index
    %c0_60 = arith.constant 0 : index
    %c0_61 = arith.constant 0 : index
    %259 = vector.load %arg13[%c0_59, %c0_60, %c0_61] : memref<2x8x32xf32, #tpu.memory_space<vmem>>, vector<2x8x32xf32>
    %260 = vector.shape_cast %259 : vector<2x8x32xf32> to vector<16x32xf32>
    %c0_62 = arith.constant 0 : index
    %c0_63 = arith.constant 0 : index
    %261 = vector.load %arg4[%c0_62, %c0_63] : memref<32x128xf32, #tpu.memory_space<vmem>>, vector<32x128xf32>
    %cst_64 = arith.constant dense<0.000000e+00> : vector<16x128xf32>
    %262 = tpu.matmul %260, %261, %cst_64 {dimension_numbers = #tpu.dot_dimension_numbers<[1], [0], [0], [1], [0, 0, 1, 1], [], []>} : vector<16x32xf32>, vector<32x128xf32>, vector<16x128xf32> -> vector<16x128xf32>
    %c0_65 = arith.constant 0 : index
    %c0_66 = arith.constant 0 : index
    %263 = vector.load %arg6[%c0_65, %c0_66] : memref<1x128xf32, #tpu.memory_space<vmem>>, vector<1x128xf32>
    %264 = vector.broadcast %263 : vector<1x128xf32> to vector<16x128xf32>
    %265 = arith.addf %262, %264 : vector<16x128xf32>
    %266 = vector.shape_cast %265 : vector<16x128xf32> to vector<2x8x128xf32>
    %c0_67 = arith.constant 0 : index
    %c0_68 = arith.constant 0 : index
    %267 = vector.load %arg5[%c0_67, %c0_68] : memref<32x128xf32, #tpu.memory_space<vmem>>, vector<32x128xf32>
    %cst_69 = arith.constant 0.000000e+00 : f32
    %268 = vector.broadcast %cst_69 : f32 to vector<2x32xf32>
    %cst_70 = arith.constant 0.000000e+00 : f32
    %269 = vector.broadcast %cst_70 : f32 to vector<2x32xf32>
    %270 = vector.extract_strided_slice %266 {offsets = [0, 0, 0], sizes = [2, 1, 128], strides = [1, 1, 1]} : vector<2x8x128xf32> to vector<2x1x128xf32>
    %271 = vector.shape_cast %270 : vector<2x1x128xf32> to vector<2x128xf32>
    %cst_71 = arith.constant dense<0.000000e+00> : vector<2x128xf32>
    %272 = tpu.matmul %268, %267, %cst_71 {dimension_numbers = #tpu.dot_dimension_numbers<[1], [0], [0], [1], [0, 0, 1, 1], [], []>} : vector<2x32xf32>, vector<32x128xf32>, vector<2x128xf32> -> vector<2x128xf32>
    %273 = arith.addf %271, %272 : vector<2x128xf32>
    %274 = vector.extract_strided_slice %273 {offsets = [0, 0], sizes = [2, 32], strides = [1, 1]} : vector<2x128xf32> to vector<2x32xf32>
    %275 = arith.negf %274 : vector<2x32xf32>
    %276 = math.exp %275 : vector<2x32xf32>
    %cst_72 = arith.constant 1.000000e+00 : f32
    %277 = vector.broadcast %cst_72 : f32 to vector<2x32xf32>
    %278 = arith.addf %277, %276 : vector<2x32xf32>
    %279 = arith.divf %277, %278 : vector<2x32xf32>
    %280 = vector.extract_strided_slice %273 {offsets = [0, 32], sizes = [2, 32], strides = [1, 1]} : vector<2x128xf32> to vector<2x32xf32>
    %281 = arith.negf %280 : vector<2x32xf32>
    %282 = math.exp %281 : vector<2x32xf32>
    %cst_73 = arith.constant 1.000000e+00 : f32
    %283 = vector.broadcast %cst_73 : f32 to vector<2x32xf32>
    %284 = arith.addf %283, %282 : vector<2x32xf32>
    %285 = arith.divf %283, %284 : vector<2x32xf32>
    %286 = vector.extract_strided_slice %273 {offsets = [0, 64], sizes = [2, 32], strides = [1, 1]} : vector<2x128xf32> to vector<2x32xf32>
    %287 = math.tanh %286 : vector<2x32xf32>
    %288 = vector.extract_strided_slice %273 {offsets = [0, 96], sizes = [2, 32], strides = [1, 1]} : vector<2x128xf32> to vector<2x32xf32>
    %289 = arith.negf %288 : vector<2x32xf32>
    %290 = math.exp %289 : vector<2x32xf32>
    %cst_74 = arith.constant 1.000000e+00 : f32
    %291 = vector.broadcast %cst_74 : f32 to vector<2x32xf32>
    %292 = arith.addf %291, %290 : vector<2x32xf32>
    %293 = arith.divf %291, %292 : vector<2x32xf32>
    %294 = arith.mulf %285, %269 : vector<2x32xf32>
    %295 = arith.mulf %279, %287 : vector<2x32xf32>
    %296 = arith.addf %294, %295 : vector<2x32xf32>
    %297 = math.tanh %296 : vector<2x32xf32>
    %298 = arith.mulf %293, %297 : vector<2x32xf32>
    %299 = vector.shape_cast %298 : vector<2x32xf32> to vector<2x1x32xf32>
    %c0_75 = arith.constant 0 : index
    %c0_76 = arith.constant 0 : index
    %c0_77 = arith.constant 0 : index
    %300 = vector.load %arg13[%c0_75, %c0_76, %c0_77] : memref<2x8x32xf32, #tpu.memory_space<vmem>>, vector<2x1x32xf32>
    tpu.vector_store %arg13[%c0_75, %c0_76, %c0_77], %299 {strides = array<i32>} : memref<2x8x32xf32, #tpu.memory_space<vmem>>, vector<2x1x32xf32>,
    %301 = vector.extract_strided_slice %266 {offsets = [0, 1, 0], sizes = [2, 1, 128], strides = [1, 1, 1]} : vector<2x8x128xf32> to vector<2x1x128xf32>
    %302 = vector.shape_cast %301 : vector<2x1x128xf32> to vector<2x128xf32>
    %cst_78 = arith.constant dense<0.000000e+00> : vector<2x128xf32>
    %303 = tpu.matmul %298, %267, %cst_78 {dimension_numbers = #tpu.dot_dimension_numbers<[1], [0], [0], [1], [0, 0, 1, 1], [], []>} : vector<2x32xf32>, vector<32x128xf32>, vector<2x128xf32> -> vector<2x128xf32>
    %304 = arith.addf %302, %303 : vector<2x128xf32>
    %305 = vector.extract_strided_slice %304 {offsets = [0, 0], sizes = [2, 32], strides = [1, 1]} : vector<2x128xf32> to vector<2x32xf32>
    %306 = arith.negf %305 : vector<2x32xf32>
    %307 = math.exp %306 : vector<2x32xf32>
    %cst_79 = arith.constant 1.000000e+00 : f32
    %308 = vector.broadcast %cst_79 : f32 to vector<2x32xf32>
    %309 = arith.addf %308, %307 : vector<2x32xf32>
    %310 = arith.divf %308, %309 : vector<2x32xf32>
    %311 = vector.extract_strided_slice %304 {offsets = [0, 32], sizes = [2, 32], strides = [1, 1]} : vector<2x128xf32> to vector<2x32xf32>
    %312 = arith.negf %311 : vector<2x32xf32>
    %313 = math.exp %312 : vector<2x32xf32>
    %cst_80 = arith.constant 1.000000e+00 : f32
    %314 = vector.broadcast %cst_80 : f32 to vector<2x32xf32>
    %315 = arith.addf %314, %313 : vector<2x32xf32>
    %316 = arith.divf %314, %315 : vector<2x32xf32>
    %317 = vector.extract_strided_slice %304 {offsets = [0, 64], sizes = [2, 32], strides = [1, 1]} : vector<2x128xf32> to vector<2x32xf32>
    %318 = math.tanh %317 : vector<2x32xf32>
    %319 = vector.extract_strided_slice %304 {offsets = [0, 96], sizes = [2, 32], strides = [1, 1]} : vector<2x128xf32> to vector<2x32xf32>
    %320 = arith.negf %319 : vector<2x32xf32>
    %321 = math.exp %320 : vector<2x32xf32>
    %cst_81 = arith.constant 1.000000e+00 : f32
    %322 = vector.broadcast %cst_81 : f32 to vector<2x32xf32>
    %323 = arith.addf %322, %321 : vector<2x32xf32>
    %324 = arith.divf %322, %323 : vector<2x32xf32>
    %325 = arith.mulf %316, %296 : vector<2x32xf32>
    %326 = arith.mulf %310, %318 : vector<2x32xf32>
    %327 = arith.addf %325, %326 : vector<2x32xf32>
    %328 = math.tanh %327 : vector<2x32xf32>
    %329 = arith.mulf %324, %328 : vector<2x32xf32>
    %330 = vector.shape_cast %329 : vector<2x32xf32> to vector<2x1x32xf32>
    %c0_82 = arith.constant 0 : index
    %c1_83 = arith.constant 1 : index
    %c0_84 = arith.constant 0 : index
    %331 = vector.load %arg13[%c0_82, %c1_83, %c0_84] : memref<2x8x32xf32, #tpu.memory_space<vmem>>, vector<2x1x32xf32>
    tpu.vector_store %arg13[%c0_82, %c1_83, %c0_84], %330 {strides = array<i32>} : memref<2x8x32xf32, #tpu.memory_space<vmem>>, vector<2x1x32xf32>,
    %332 = vector.extract_strided_slice %266 {offsets = [0, 2, 0], sizes = [2, 1, 128], strides = [1, 1, 1]} : vector<2x8x128xf32> to vector<2x1x128xf32>
    %333 = vector.shape_cast %332 : vector<2x1x128xf32> to vector<2x128xf32>
    %cst_85 = arith.constant dense<0.000000e+00> : vector<2x128xf32>
    %334 = tpu.matmul %329, %267, %cst_85 {dimension_numbers = #tpu.dot_dimension_numbers<[1], [0], [0], [1], [0, 0, 1, 1], [], []>} : vector<2x32xf32>, vector<32x128xf32>, vector<2x128xf32> -> vector<2x128xf32>
    %335 = arith.addf %333, %334 : vector<2x128xf32>
    %336 = vector.extract_strided_slice %335 {offsets = [0, 0], sizes = [2, 32], strides = [1, 1]} : vector<2x128xf32> to vector<2x32xf32>
    %337 = arith.negf %336 : vector<2x32xf32>
    %338 = math.exp %337 : vector<2x32xf32>
    %cst_86 = arith.constant 1.000000e+00 : f32
    %339 = vector.broadcast %cst_86 : f32 to vector<2x32xf32>
    %340 = arith.addf %339, %338 : vector<2x32xf32>
    %341 = arith.divf %339, %340 : vector<2x32xf32>
    %342 = vector.extract_strided_slice %335 {offsets = [0, 32], sizes = [2, 32], strides = [1, 1]} : vector<2x128xf32> to vector<2x32xf32>
    %343 = arith.negf %342 : vector<2x32xf32>
    %344 = math.exp %343 : vector<2x32xf32>
    %cst_87 = arith.constant 1.000000e+00 : f32
    %345 = vector.broadcast %cst_87 : f32 to vector<2x32xf32>
    %346 = arith.addf %345, %344 : vector<2x32xf32>
    %347 = arith.divf %345, %346 : vector<2x32xf32>
    %348 = vector.extract_strided_slice %335 {offsets = [0, 64], sizes = [2, 32], strides = [1, 1]} : vector<2x128xf32> to vector<2x32xf32>
    %349 = math.tanh %348 : vector<2x32xf32>
    %350 = vector.extract_strided_slice %335 {offsets = [0, 96], sizes = [2, 32], strides = [1, 1]} : vector<2x128xf32> to vector<2x32xf32>
    %351 = arith.negf %350 : vector<2x32xf32>
    %352 = math.exp %351 : vector<2x32xf32>
    %cst_88 = arith.constant 1.000000e+00 : f32
    %353 = vector.broadcast %cst_88 : f32 to vector<2x32xf32>
    %354 = arith.addf %353, %352 : vector<2x32xf32>
    %355 = arith.divf %353, %354 : vector<2x32xf32>
    %356 = arith.mulf %347, %327 : vector<2x32xf32>
    %357 = arith.mulf %341, %349 : vector<2x32xf32>
    %358 = arith.addf %356, %357 : vector<2x32xf32>
    %359 = math.tanh %358 : vector<2x32xf32>
    %360 = arith.mulf %355, %359 : vector<2x32xf32>
    %361 = vector.shape_cast %360 : vector<2x32xf32> to vector<2x1x32xf32>
    %c0_89 = arith.constant 0 : index
    %c2_90 = arith.constant 2 : index
    %c0_91 = arith.constant 0 : index
    %362 = vector.load %arg13[%c0_89, %c2_90, %c0_91] : memref<2x8x32xf32, #tpu.memory_space<vmem>>, vector<2x1x32xf32>
    tpu.vector_store %arg13[%c0_89, %c2_90, %c0_91], %361 {strides = array<i32>} : memref<2x8x32xf32, #tpu.memory_space<vmem>>, vector<2x1x32xf32>,
    %363 = vector.extract_strided_slice %266 {offsets = [0, 3, 0], sizes = [2, 1, 128], strides = [1, 1, 1]} : vector<2x8x128xf32> to vector<2x1x128xf32>
    %364 = vector.shape_cast %363 : vector<2x1x128xf32> to vector<2x128xf32>
    %cst_92 = arith.constant dense<0.000000e+00> : vector<2x128xf32>
    %365 = tpu.matmul %360, %267, %cst_92 {dimension_numbers = #tpu.dot_dimension_numbers<[1], [0], [0], [1], [0, 0, 1, 1], [], []>} : vector<2x32xf32>, vector<32x128xf32>, vector<2x128xf32> -> vector<2x128xf32>
    %366 = arith.addf %364, %365 : vector<2x128xf32>
    %367 = vector.extract_strided_slice %366 {offsets = [0, 0], sizes = [2, 32], strides = [1, 1]} : vector<2x128xf32> to vector<2x32xf32>
    %368 = arith.negf %367 : vector<2x32xf32>
    %369 = math.exp %368 : vector<2x32xf32>
    %cst_93 = arith.constant 1.000000e+00 : f32
    %370 = vector.broadcast %cst_93 : f32 to vector<2x32xf32>
    %371 = arith.addf %370, %369 : vector<2x32xf32>
    %372 = arith.divf %370, %371 : vector<2x32xf32>
    %373 = vector.extract_strided_slice %366 {offsets = [0, 32], sizes = [2, 32], strides = [1, 1]} : vector<2x128xf32> to vector<2x32xf32>
    %374 = arith.negf %373 : vector<2x32xf32>
    %375 = math.exp %374 : vector<2x32xf32>
    %cst_94 = arith.constant 1.000000e+00 : f32
    %376 = vector.broadcast %cst_94 : f32 to vector<2x32xf32>
    %377 = arith.addf %376, %375 : vector<2x32xf32>
    %378 = arith.divf %376, %377 : vector<2x32xf32>
    %379 = vector.extract_strided_slice %366 {offsets = [0, 64], sizes = [2, 32], strides = [1, 1]} : vector<2x128xf32> to vector<2x32xf32>
    %380 = math.tanh %379 : vector<2x32xf32>
    %381 = vector.extract_strided_slice %366 {offsets = [0, 96], sizes = [2, 32], strides = [1, 1]} : vector<2x128xf32> to vector<2x32xf32>
    %382 = arith.negf %381 : vector<2x32xf32>
    %383 = math.exp %382 : vector<2x32xf32>
    %cst_95 = arith.constant 1.000000e+00 : f32
    %384 = vector.broadcast %cst_95 : f32 to vector<2x32xf32>
    %385 = arith.addf %384, %383 : vector<2x32xf32>
    %386 = arith.divf %384, %385 : vector<2x32xf32>
    %387 = arith.mulf %378, %358 : vector<2x32xf32>
    %388 = arith.mulf %372, %380 : vector<2x32xf32>
    %389 = arith.addf %387, %388 : vector<2x32xf32>
    %390 = math.tanh %389 : vector<2x32xf32>
    %391 = arith.mulf %386, %390 : vector<2x32xf32>
    %392 = vector.shape_cast %391 : vector<2x32xf32> to vector<2x1x32xf32>
    %c0_96 = arith.constant 0 : index
    %c3_97 = arith.constant 3 : index
    %c0_98 = arith.constant 0 : index
    %393 = vector.load %arg13[%c0_96, %c3_97, %c0_98] : memref<2x8x32xf32, #tpu.memory_space<vmem>>, vector<2x1x32xf32>
    tpu.vector_store %arg13[%c0_96, %c3_97, %c0_98], %392 {strides = array<i32>} : memref<2x8x32xf32, #tpu.memory_space<vmem>>, vector<2x1x32xf32>,
    %394 = vector.extract_strided_slice %266 {offsets = [0, 4, 0], sizes = [2, 1, 128], strides = [1, 1, 1]} : vector<2x8x128xf32> to vector<2x1x128xf32>
    %395 = vector.shape_cast %394 : vector<2x1x128xf32> to vector<2x128xf32>
    %cst_99 = arith.constant dense<0.000000e+00> : vector<2x128xf32>
    %396 = tpu.matmul %391, %267, %cst_99 {dimension_numbers = #tpu.dot_dimension_numbers<[1], [0], [0], [1], [0, 0, 1, 1], [], []>} : vector<2x32xf32>, vector<32x128xf32>, vector<2x128xf32> -> vector<2x128xf32>
    %397 = arith.addf %395, %396 : vector<2x128xf32>
    %398 = vector.extract_strided_slice %397 {offsets = [0, 0], sizes = [2, 32], strides = [1, 1]} : vector<2x128xf32> to vector<2x32xf32>
    %399 = arith.negf %398 : vector<2x32xf32>
    %400 = math.exp %399 : vector<2x32xf32>
    %cst_100 = arith.constant 1.000000e+00 : f32
    %401 = vector.broadcast %cst_100 : f32 to vector<2x32xf32>
    %402 = arith.addf %401, %400 : vector<2x32xf32>
    %403 = arith.divf %401, %402 : vector<2x32xf32>
    %404 = vector.extract_strided_slice %397 {offsets = [0, 32], sizes = [2, 32], strides = [1, 1]} : vector<2x128xf32> to vector<2x32xf32>
    %405 = arith.negf %404 : vector<2x32xf32>
    %406 = math.exp %405 : vector<2x32xf32>
    %cst_101 = arith.constant 1.000000e+00 : f32
    %407 = vector.broadcast %cst_101 : f32 to vector<2x32xf32>
    %408 = arith.addf %407, %406 : vector<2x32xf32>
    %409 = arith.divf %407, %408 : vector<2x32xf32>
    %410 = vector.extract_strided_slice %397 {offsets = [0, 64], sizes = [2, 32], strides = [1, 1]} : vector<2x128xf32> to vector<2x32xf32>
    %411 = math.tanh %410 : vector<2x32xf32>
    %412 = vector.extract_strided_slice %397 {offsets = [0, 96], sizes = [2, 32], strides = [1, 1]} : vector<2x128xf32> to vector<2x32xf32>
    %413 = arith.negf %412 : vector<2x32xf32>
    %414 = math.exp %413 : vector<2x32xf32>
    %cst_102 = arith.constant 1.000000e+00 : f32
    %415 = vector.broadcast %cst_102 : f32 to vector<2x32xf32>
    %416 = arith.addf %415, %414 : vector<2x32xf32>
    %417 = arith.divf %415, %416 : vector<2x32xf32>
    %418 = arith.mulf %409, %389 : vector<2x32xf32>
    %419 = arith.mulf %403, %411 : vector<2x32xf32>
    %420 = arith.addf %418, %419 : vector<2x32xf32>
    %421 = math.tanh %420 : vector<2x32xf32>
    %422 = arith.mulf %417, %421 : vector<2x32xf32>
    %423 = vector.shape_cast %422 : vector<2x32xf32> to vector<2x1x32xf32>
    %c0_103 = arith.constant 0 : index
    %c4_104 = arith.constant 4 : index
    %c0_105 = arith.constant 0 : index
    %424 = vector.load %arg13[%c0_103, %c4_104, %c0_105] : memref<2x8x32xf32, #tpu.memory_space<vmem>>, vector<2x1x32xf32>
    tpu.vector_store %arg13[%c0_103, %c4_104, %c0_105], %423 {strides = array<i32>} : memref<2x8x32xf32, #tpu.memory_space<vmem>>, vector<2x1x32xf32>,
    %425 = vector.extract_strided_slice %266 {offsets = [0, 5, 0], sizes = [2, 1, 128], strides = [1, 1, 1]} : vector<2x8x128xf32> to vector<2x1x128xf32>
    %426 = vector.shape_cast %425 : vector<2x1x128xf32> to vector<2x128xf32>
    %cst_106 = arith.constant dense<0.000000e+00> : vector<2x128xf32>
    %427 = tpu.matmul %422, %267, %cst_106 {dimension_numbers = #tpu.dot_dimension_numbers<[1], [0], [0], [1], [0, 0, 1, 1], [], []>} : vector<2x32xf32>, vector<32x128xf32>, vector<2x128xf32> -> vector<2x128xf32>
    %428 = arith.addf %426, %427 : vector<2x128xf32>
    %429 = vector.extract_strided_slice %428 {offsets = [0, 0], sizes = [2, 32], strides = [1, 1]} : vector<2x128xf32> to vector<2x32xf32>
    %430 = arith.negf %429 : vector<2x32xf32>
    %431 = math.exp %430 : vector<2x32xf32>
    %cst_107 = arith.constant 1.000000e+00 : f32
    %432 = vector.broadcast %cst_107 : f32 to vector<2x32xf32>
    %433 = arith.addf %432, %431 : vector<2x32xf32>
    %434 = arith.divf %432, %433 : vector<2x32xf32>
    %435 = vector.extract_strided_slice %428 {offsets = [0, 32], sizes = [2, 32], strides = [1, 1]} : vector<2x128xf32> to vector<2x32xf32>
    %436 = arith.negf %435 : vector<2x32xf32>
    %437 = math.exp %436 : vector<2x32xf32>
    %cst_108 = arith.constant 1.000000e+00 : f32
    %438 = vector.broadcast %cst_108 : f32 to vector<2x32xf32>
    %439 = arith.addf %438, %437 : vector<2x32xf32>
    %440 = arith.divf %438, %439 : vector<2x32xf32>
    %441 = vector.extract_strided_slice %428 {offsets = [0, 64], sizes = [2, 32], strides = [1, 1]} : vector<2x128xf32> to vector<2x32xf32>
    %442 = math.tanh %441 : vector<2x32xf32>
    %443 = vector.extract_strided_slice %428 {offsets = [0, 96], sizes = [2, 32], strides = [1, 1]} : vector<2x128xf32> to vector<2x32xf32>
    %444 = arith.negf %443 : vector<2x32xf32>
    %445 = math.exp %444 : vector<2x32xf32>
    %cst_109 = arith.constant 1.000000e+00 : f32
    %446 = vector.broadcast %cst_109 : f32 to vector<2x32xf32>
    %447 = arith.addf %446, %445 : vector<2x32xf32>
    %448 = arith.divf %446, %447 : vector<2x32xf32>
    %449 = arith.mulf %440, %420 : vector<2x32xf32>
    %450 = arith.mulf %434, %442 : vector<2x32xf32>
    %451 = arith.addf %449, %450 : vector<2x32xf32>
    %452 = math.tanh %451 : vector<2x32xf32>
    %453 = arith.mulf %448, %452 : vector<2x32xf32>
    %454 = vector.shape_cast %453 : vector<2x32xf32> to vector<2x1x32xf32>
    %c0_110 = arith.constant 0 : index
    %c5_111 = arith.constant 5 : index
    %c0_112 = arith.constant 0 : index
    %455 = vector.load %arg13[%c0_110, %c5_111, %c0_112] : memref<2x8x32xf32, #tpu.memory_space<vmem>>, vector<2x1x32xf32>
    tpu.vector_store %arg13[%c0_110, %c5_111, %c0_112], %454 {strides = array<i32>} : memref<2x8x32xf32, #tpu.memory_space<vmem>>, vector<2x1x32xf32>,
    %456 = vector.extract_strided_slice %266 {offsets = [0, 6, 0], sizes = [2, 1, 128], strides = [1, 1, 1]} : vector<2x8x128xf32> to vector<2x1x128xf32>
    %457 = vector.shape_cast %456 : vector<2x1x128xf32> to vector<2x128xf32>
    %cst_113 = arith.constant dense<0.000000e+00> : vector<2x128xf32>
    %458 = tpu.matmul %453, %267, %cst_113 {dimension_numbers = #tpu.dot_dimension_numbers<[1], [0], [0], [1], [0, 0, 1, 1], [], []>} : vector<2x32xf32>, vector<32x128xf32>, vector<2x128xf32> -> vector<2x128xf32>
    %459 = arith.addf %457, %458 : vector<2x128xf32>
    %460 = vector.extract_strided_slice %459 {offsets = [0, 0], sizes = [2, 32], strides = [1, 1]} : vector<2x128xf32> to vector<2x32xf32>
    %461 = arith.negf %460 : vector<2x32xf32>
    %462 = math.exp %461 : vector<2x32xf32>
    %cst_114 = arith.constant 1.000000e+00 : f32
    %463 = vector.broadcast %cst_114 : f32 to vector<2x32xf32>
    %464 = arith.addf %463, %462 : vector<2x32xf32>
    %465 = arith.divf %463, %464 : vector<2x32xf32>
    %466 = vector.extract_strided_slice %459 {offsets = [0, 32], sizes = [2, 32], strides = [1, 1]} : vector<2x128xf32> to vector<2x32xf32>
    %467 = arith.negf %466 : vector<2x32xf32>
    %468 = math.exp %467 : vector<2x32xf32>
    %cst_115 = arith.constant 1.000000e+00 : f32
    %469 = vector.broadcast %cst_115 : f32 to vector<2x32xf32>
    %470 = arith.addf %469, %468 : vector<2x32xf32>
    %471 = arith.divf %469, %470 : vector<2x32xf32>
    %472 = vector.extract_strided_slice %459 {offsets = [0, 64], sizes = [2, 32], strides = [1, 1]} : vector<2x128xf32> to vector<2x32xf32>
    %473 = math.tanh %472 : vector<2x32xf32>
    %474 = vector.extract_strided_slice %459 {offsets = [0, 96], sizes = [2, 32], strides = [1, 1]} : vector<2x128xf32> to vector<2x32xf32>
    %475 = arith.negf %474 : vector<2x32xf32>
    %476 = math.exp %475 : vector<2x32xf32>
    %cst_116 = arith.constant 1.000000e+00 : f32
    %477 = vector.broadcast %cst_116 : f32 to vector<2x32xf32>
    %478 = arith.addf %477, %476 : vector<2x32xf32>
    %479 = arith.divf %477, %478 : vector<2x32xf32>
    %480 = arith.mulf %471, %451 : vector<2x32xf32>
    %481 = arith.mulf %465, %473 : vector<2x32xf32>
    %482 = arith.addf %480, %481 : vector<2x32xf32>
    %483 = math.tanh %482 : vector<2x32xf32>
    %484 = arith.mulf %479, %483 : vector<2x32xf32>
    %485 = vector.shape_cast %484 : vector<2x32xf32> to vector<2x1x32xf32>
    %c0_117 = arith.constant 0 : index
    %c6_118 = arith.constant 6 : index
    %c0_119 = arith.constant 0 : index
    %486 = vector.load %arg13[%c0_117, %c6_118, %c0_119] : memref<2x8x32xf32, #tpu.memory_space<vmem>>, vector<2x1x32xf32>
    tpu.vector_store %arg13[%c0_117, %c6_118, %c0_119], %485 {strides = array<i32>} : memref<2x8x32xf32, #tpu.memory_space<vmem>>, vector<2x1x32xf32>,
    %487 = vector.extract_strided_slice %266 {offsets = [0, 7, 0], sizes = [2, 1, 128], strides = [1, 1, 1]} : vector<2x8x128xf32> to vector<2x1x128xf32>
    %488 = vector.shape_cast %487 : vector<2x1x128xf32> to vector<2x128xf32>
    %cst_120 = arith.constant dense<0.000000e+00> : vector<2x128xf32>
    %489 = tpu.matmul %484, %267, %cst_120 {dimension_numbers = #tpu.dot_dimension_numbers<[1], [0], [0], [1], [0, 0, 1, 1], [], []>} : vector<2x32xf32>, vector<32x128xf32>, vector<2x128xf32> -> vector<2x128xf32>
    %490 = arith.addf %488, %489 : vector<2x128xf32>
    %491 = vector.extract_strided_slice %490 {offsets = [0, 0], sizes = [2, 32], strides = [1, 1]} : vector<2x128xf32> to vector<2x32xf32>
    %492 = arith.negf %491 : vector<2x32xf32>
    %493 = math.exp %492 : vector<2x32xf32>
    %cst_121 = arith.constant 1.000000e+00 : f32
    %494 = vector.broadcast %cst_121 : f32 to vector<2x32xf32>
    %495 = arith.addf %494, %493 : vector<2x32xf32>
    %496 = arith.divf %494, %495 : vector<2x32xf32>
    %497 = vector.extract_strided_slice %490 {offsets = [0, 32], sizes = [2, 32], strides = [1, 1]} : vector<2x128xf32> to vector<2x32xf32>
    %498 = arith.negf %497 : vector<2x32xf32>
    %499 = math.exp %498 : vector<2x32xf32>
    %cst_122 = arith.constant 1.000000e+00 : f32
    %500 = vector.broadcast %cst_122 : f32 to vector<2x32xf32>
    %501 = arith.addf %500, %499 : vector<2x32xf32>
    %502 = arith.divf %500, %501 : vector<2x32xf32>
    %503 = vector.extract_strided_slice %490 {offsets = [0, 64], sizes = [2, 32], strides = [1, 1]} : vector<2x128xf32> to vector<2x32xf32>
    %504 = math.tanh %503 : vector<2x32xf32>
    %505 = vector.extract_strided_slice %490 {offsets = [0, 96], sizes = [2, 32], strides = [1, 1]} : vector<2x128xf32> to vector<2x32xf32>
    %506 = arith.negf %505 : vector<2x32xf32>
    %507 = math.exp %506 : vector<2x32xf32>
    %cst_123 = arith.constant 1.000000e+00 : f32
    %508 = vector.broadcast %cst_123 : f32 to vector<2x32xf32>
    %509 = arith.addf %508, %507 : vector<2x32xf32>
    %510 = arith.divf %508, %509 : vector<2x32xf32>
    %511 = arith.mulf %502, %482 : vector<2x32xf32>
    %512 = arith.mulf %496, %504 : vector<2x32xf32>
    %513 = arith.addf %511, %512 : vector<2x32xf32>
    %514 = math.tanh %513 : vector<2x32xf32>
    %515 = arith.mulf %510, %514 : vector<2x32xf32>
    %516 = vector.shape_cast %515 : vector<2x32xf32> to vector<2x1x32xf32>
    %c0_124 = arith.constant 0 : index
    %c7_125 = arith.constant 7 : index
    %c0_126 = arith.constant 0 : index
    %517 = vector.load %arg13[%c0_124, %c7_125, %c0_126] : memref<2x8x32xf32, #tpu.memory_space<vmem>>, vector<2x1x32xf32>
    tpu.vector_store %arg13[%c0_124, %c7_125, %c0_126], %516 {strides = array<i32>} : memref<2x8x32xf32, #tpu.memory_space<vmem>>, vector<2x1x32xf32>,
    %c0_127 = arith.constant 0 : index
    %c0_128 = arith.constant 0 : index
    %c0_129 = arith.constant 0 : index
    %518 = vector.load %arg13[%c0_127, %c0_128, %c0_129] : memref<2x8x32xf32, #tpu.memory_space<vmem>>, vector<2x8x32xf32>
    %519 = vector.shape_cast %518 : vector<2x8x32xf32> to vector<16x32xf32>
    %c0_130 = arith.constant 0 : index
    %c0_131 = arith.constant 0 : index
    %520 = vector.load %arg7[%c0_130, %c0_131] : memref<32x128xf32, #tpu.memory_space<vmem>>, vector<32x128xf32>
    %cst_132 = arith.constant dense<0.000000e+00> : vector<16x128xf32>
    %521 = tpu.matmul %519, %520, %cst_132 {dimension_numbers = #tpu.dot_dimension_numbers<[1], [0], [0], [1], [0, 0, 1, 1], [], []>} : vector<16x32xf32>, vector<32x128xf32>, vector<16x128xf32> -> vector<16x128xf32>
    %c0_133 = arith.constant 0 : index
    %c0_134 = arith.constant 0 : index
    %522 = vector.load %arg9[%c0_133, %c0_134] : memref<1x128xf32, #tpu.memory_space<vmem>>, vector<1x128xf32>
    %523 = vector.broadcast %522 : vector<1x128xf32> to vector<16x128xf32>
    %524 = arith.addf %521, %523 : vector<16x128xf32>
    %525 = vector.shape_cast %524 : vector<16x128xf32> to vector<2x8x128xf32>
    %c0_135 = arith.constant 0 : index
    %c0_136 = arith.constant 0 : index
    %526 = vector.load %arg8[%c0_135, %c0_136] : memref<32x128xf32, #tpu.memory_space<vmem>>, vector<32x128xf32>
    %cst_137 = arith.constant 0.000000e+00 : f32
    %527 = vector.broadcast %cst_137 : f32 to vector<2x32xf32>
    %cst_138 = arith.constant 0.000000e+00 : f32
    %528 = vector.broadcast %cst_138 : f32 to vector<2x32xf32>
    %529 = vector.extract_strided_slice %525 {offsets = [0, 0, 0], sizes = [2, 1, 128], strides = [1, 1, 1]} : vector<2x8x128xf32> to vector<2x1x128xf32>
    %530 = vector.shape_cast %529 : vector<2x1x128xf32> to vector<2x128xf32>
    %cst_139 = arith.constant dense<0.000000e+00> : vector<2x128xf32>
    %531 = tpu.matmul %527, %526, %cst_139 {dimension_numbers = #tpu.dot_dimension_numbers<[1], [0], [0], [1], [0, 0, 1, 1], [], []>} : vector<2x32xf32>, vector<32x128xf32>, vector<2x128xf32> -> vector<2x128xf32>
    %532 = arith.addf %530, %531 : vector<2x128xf32>
    %533 = vector.extract_strided_slice %532 {offsets = [0, 0], sizes = [2, 32], strides = [1, 1]} : vector<2x128xf32> to vector<2x32xf32>
    %534 = arith.negf %533 : vector<2x32xf32>
    %535 = math.exp %534 : vector<2x32xf32>
    %cst_140 = arith.constant 1.000000e+00 : f32
    %536 = vector.broadcast %cst_140 : f32 to vector<2x32xf32>
    %537 = arith.addf %536, %535 : vector<2x32xf32>
    %538 = arith.divf %536, %537 : vector<2x32xf32>
    %539 = vector.extract_strided_slice %532 {offsets = [0, 32], sizes = [2, 32], strides = [1, 1]} : vector<2x128xf32> to vector<2x32xf32>
    %540 = arith.negf %539 : vector<2x32xf32>
    %541 = math.exp %540 : vector<2x32xf32>
    %cst_141 = arith.constant 1.000000e+00 : f32
    %542 = vector.broadcast %cst_141 : f32 to vector<2x32xf32>
    %543 = arith.addf %542, %541 : vector<2x32xf32>
    %544 = arith.divf %542, %543 : vector<2x32xf32>
    %545 = vector.extract_strided_slice %532 {offsets = [0, 64], sizes = [2, 32], strides = [1, 1]} : vector<2x128xf32> to vector<2x32xf32>
    %546 = math.tanh %545 : vector<2x32xf32>
    %547 = vector.extract_strided_slice %532 {offsets = [0, 96], sizes = [2, 32], strides = [1, 1]} : vector<2x128xf32> to vector<2x32xf32>
    %548 = arith.negf %547 : vector<2x32xf32>
    %549 = math.exp %548 : vector<2x32xf32>
    %cst_142 = arith.constant 1.000000e+00 : f32
    %550 = vector.broadcast %cst_142 : f32 to vector<2x32xf32>
    %551 = arith.addf %550, %549 : vector<2x32xf32>
    %552 = arith.divf %550, %551 : vector<2x32xf32>
    %553 = arith.mulf %544, %528 : vector<2x32xf32>
    %554 = arith.mulf %538, %546 : vector<2x32xf32>
    %555 = arith.addf %553, %554 : vector<2x32xf32>
    %556 = math.tanh %555 : vector<2x32xf32>
    %557 = arith.mulf %552, %556 : vector<2x32xf32>
    %558 = vector.shape_cast %557 : vector<2x32xf32> to vector<2x1x32xf32>
    %c0_143 = arith.constant 0 : index
    %c0_144 = arith.constant 0 : index
    %c0_145 = arith.constant 0 : index
    %559 = vector.load %arg13[%c0_143, %c0_144, %c0_145] : memref<2x8x32xf32, #tpu.memory_space<vmem>>, vector<2x1x32xf32>
    tpu.vector_store %arg13[%c0_143, %c0_144, %c0_145], %558 {strides = array<i32>} : memref<2x8x32xf32, #tpu.memory_space<vmem>>, vector<2x1x32xf32>,
    %560 = vector.extract_strided_slice %525 {offsets = [0, 1, 0], sizes = [2, 1, 128], strides = [1, 1, 1]} : vector<2x8x128xf32> to vector<2x1x128xf32>
    %561 = vector.shape_cast %560 : vector<2x1x128xf32> to vector<2x128xf32>
    %cst_146 = arith.constant dense<0.000000e+00> : vector<2x128xf32>
    %562 = tpu.matmul %557, %526, %cst_146 {dimension_numbers = #tpu.dot_dimension_numbers<[1], [0], [0], [1], [0, 0, 1, 1], [], []>} : vector<2x32xf32>, vector<32x128xf32>, vector<2x128xf32> -> vector<2x128xf32>
    %563 = arith.addf %561, %562 : vector<2x128xf32>
    %564 = vector.extract_strided_slice %563 {offsets = [0, 0], sizes = [2, 32], strides = [1, 1]} : vector<2x128xf32> to vector<2x32xf32>
    %565 = arith.negf %564 : vector<2x32xf32>
    %566 = math.exp %565 : vector<2x32xf32>
    %cst_147 = arith.constant 1.000000e+00 : f32
    %567 = vector.broadcast %cst_147 : f32 to vector<2x32xf32>
    %568 = arith.addf %567, %566 : vector<2x32xf32>
    %569 = arith.divf %567, %568 : vector<2x32xf32>
    %570 = vector.extract_strided_slice %563 {offsets = [0, 32], sizes = [2, 32], strides = [1, 1]} : vector<2x128xf32> to vector<2x32xf32>
    %571 = arith.negf %570 : vector<2x32xf32>
    %572 = math.exp %571 : vector<2x32xf32>
    %cst_148 = arith.constant 1.000000e+00 : f32
    %573 = vector.broadcast %cst_148 : f32 to vector<2x32xf32>
    %574 = arith.addf %573, %572 : vector<2x32xf32>
    %575 = arith.divf %573, %574 : vector<2x32xf32>
    %576 = vector.extract_strided_slice %563 {offsets = [0, 64], sizes = [2, 32], strides = [1, 1]} : vector<2x128xf32> to vector<2x32xf32>
    %577 = math.tanh %576 : vector<2x32xf32>
    %578 = vector.extract_strided_slice %563 {offsets = [0, 96], sizes = [2, 32], strides = [1, 1]} : vector<2x128xf32> to vector<2x32xf32>
    %579 = arith.negf %578 : vector<2x32xf32>
    %580 = math.exp %579 : vector<2x32xf32>
    %cst_149 = arith.constant 1.000000e+00 : f32
    %581 = vector.broadcast %cst_149 : f32 to vector<2x32xf32>
    %582 = arith.addf %581, %580 : vector<2x32xf32>
    %583 = arith.divf %581, %582 : vector<2x32xf32>
    %584 = arith.mulf %575, %555 : vector<2x32xf32>
    %585 = arith.mulf %569, %577 : vector<2x32xf32>
    %586 = arith.addf %584, %585 : vector<2x32xf32>
    %587 = math.tanh %586 : vector<2x32xf32>
    %588 = arith.mulf %583, %587 : vector<2x32xf32>
    %589 = vector.shape_cast %588 : vector<2x32xf32> to vector<2x1x32xf32>
    %c0_150 = arith.constant 0 : index
    %c1_151 = arith.constant 1 : index
    %c0_152 = arith.constant 0 : index
    %590 = vector.load %arg13[%c0_150, %c1_151, %c0_152] : memref<2x8x32xf32, #tpu.memory_space<vmem>>, vector<2x1x32xf32>
    tpu.vector_store %arg13[%c0_150, %c1_151, %c0_152], %589 {strides = array<i32>} : memref<2x8x32xf32, #tpu.memory_space<vmem>>, vector<2x1x32xf32>,
    %591 = vector.extract_strided_slice %525 {offsets = [0, 2, 0], sizes = [2, 1, 128], strides = [1, 1, 1]} : vector<2x8x128xf32> to vector<2x1x128xf32>
    %592 = vector.shape_cast %591 : vector<2x1x128xf32> to vector<2x128xf32>
    %cst_153 = arith.constant dense<0.000000e+00> : vector<2x128xf32>
    %593 = tpu.matmul %588, %526, %cst_153 {dimension_numbers = #tpu.dot_dimension_numbers<[1], [0], [0], [1], [0, 0, 1, 1], [], []>} : vector<2x32xf32>, vector<32x128xf32>, vector<2x128xf32> -> vector<2x128xf32>
    %594 = arith.addf %592, %593 : vector<2x128xf32>
    %595 = vector.extract_strided_slice %594 {offsets = [0, 0], sizes = [2, 32], strides = [1, 1]} : vector<2x128xf32> to vector<2x32xf32>
    %596 = arith.negf %595 : vector<2x32xf32>
    %597 = math.exp %596 : vector<2x32xf32>
    %cst_154 = arith.constant 1.000000e+00 : f32
    %598 = vector.broadcast %cst_154 : f32 to vector<2x32xf32>
    %599 = arith.addf %598, %597 : vector<2x32xf32>
    %600 = arith.divf %598, %599 : vector<2x32xf32>
    %601 = vector.extract_strided_slice %594 {offsets = [0, 32], sizes = [2, 32], strides = [1, 1]} : vector<2x128xf32> to vector<2x32xf32>
    %602 = arith.negf %601 : vector<2x32xf32>
    %603 = math.exp %602 : vector<2x32xf32>
    %cst_155 = arith.constant 1.000000e+00 : f32
    %604 = vector.broadcast %cst_155 : f32 to vector<2x32xf32>
    %605 = arith.addf %604, %603 : vector<2x32xf32>
    %606 = arith.divf %604, %605 : vector<2x32xf32>
    %607 = vector.extract_strided_slice %594 {offsets = [0, 64], sizes = [2, 32], strides = [1, 1]} : vector<2x128xf32> to vector<2x32xf32>
    %608 = math.tanh %607 : vector<2x32xf32>
    %609 = vector.extract_strided_slice %594 {offsets = [0, 96], sizes = [2, 32], strides = [1, 1]} : vector<2x128xf32> to vector<2x32xf32>
    %610 = arith.negf %609 : vector<2x32xf32>
    %611 = math.exp %610 : vector<2x32xf32>
    %cst_156 = arith.constant 1.000000e+00 : f32
    %612 = vector.broadcast %cst_156 : f32 to vector<2x32xf32>
    %613 = arith.addf %612, %611 : vector<2x32xf32>
    %614 = arith.divf %612, %613 : vector<2x32xf32>
    %615 = arith.mulf %606, %586 : vector<2x32xf32>
    %616 = arith.mulf %600, %608 : vector<2x32xf32>
    %617 = arith.addf %615, %616 : vector<2x32xf32>
    %618 = math.tanh %617 : vector<2x32xf32>
    %619 = arith.mulf %614, %618 : vector<2x32xf32>
    %620 = vector.shape_cast %619 : vector<2x32xf32> to vector<2x1x32xf32>
    %c0_157 = arith.constant 0 : index
    %c2_158 = arith.constant 2 : index
    %c0_159 = arith.constant 0 : index
    %621 = vector.load %arg13[%c0_157, %c2_158, %c0_159] : memref<2x8x32xf32, #tpu.memory_space<vmem>>, vector<2x1x32xf32>
    tpu.vector_store %arg13[%c0_157, %c2_158, %c0_159], %620 {strides = array<i32>} : memref<2x8x32xf32, #tpu.memory_space<vmem>>, vector<2x1x32xf32>,
    %622 = vector.extract_strided_slice %525 {offsets = [0, 3, 0], sizes = [2, 1, 128], strides = [1, 1, 1]} : vector<2x8x128xf32> to vector<2x1x128xf32>
    %623 = vector.shape_cast %622 : vector<2x1x128xf32> to vector<2x128xf32>
    %cst_160 = arith.constant dense<0.000000e+00> : vector<2x128xf32>
    %624 = tpu.matmul %619, %526, %cst_160 {dimension_numbers = #tpu.dot_dimension_numbers<[1], [0], [0], [1], [0, 0, 1, 1], [], []>} : vector<2x32xf32>, vector<32x128xf32>, vector<2x128xf32> -> vector<2x128xf32>
    %625 = arith.addf %623, %624 : vector<2x128xf32>
    %626 = vector.extract_strided_slice %625 {offsets = [0, 0], sizes = [2, 32], strides = [1, 1]} : vector<2x128xf32> to vector<2x32xf32>
    %627 = arith.negf %626 : vector<2x32xf32>
    %628 = math.exp %627 : vector<2x32xf32>
    %cst_161 = arith.constant 1.000000e+00 : f32
    %629 = vector.broadcast %cst_161 : f32 to vector<2x32xf32>
    %630 = arith.addf %629, %628 : vector<2x32xf32>
    %631 = arith.divf %629, %630 : vector<2x32xf32>
    %632 = vector.extract_strided_slice %625 {offsets = [0, 32], sizes = [2, 32], strides = [1, 1]} : vector<2x128xf32> to vector<2x32xf32>
    %633 = arith.negf %632 : vector<2x32xf32>
    %634 = math.exp %633 : vector<2x32xf32>
    %cst_162 = arith.constant 1.000000e+00 : f32
    %635 = vector.broadcast %cst_162 : f32 to vector<2x32xf32>
    %636 = arith.addf %635, %634 : vector<2x32xf32>
    %637 = arith.divf %635, %636 : vector<2x32xf32>
    %638 = vector.extract_strided_slice %625 {offsets = [0, 64], sizes = [2, 32], strides = [1, 1]} : vector<2x128xf32> to vector<2x32xf32>
    %639 = math.tanh %638 : vector<2x32xf32>
    %640 = vector.extract_strided_slice %625 {offsets = [0, 96], sizes = [2, 32], strides = [1, 1]} : vector<2x128xf32> to vector<2x32xf32>
    %641 = arith.negf %640 : vector<2x32xf32>
    %642 = math.exp %641 : vector<2x32xf32>
    %cst_163 = arith.constant 1.000000e+00 : f32
    %643 = vector.broadcast %cst_163 : f32 to vector<2x32xf32>
    %644 = arith.addf %643, %642 : vector<2x32xf32>
    %645 = arith.divf %643, %644 : vector<2x32xf32>
    %646 = arith.mulf %637, %617 : vector<2x32xf32>
    %647 = arith.mulf %631, %639 : vector<2x32xf32>
    %648 = arith.addf %646, %647 : vector<2x32xf32>
    %649 = math.tanh %648 : vector<2x32xf32>
    %650 = arith.mulf %645, %649 : vector<2x32xf32>
    %651 = vector.shape_cast %650 : vector<2x32xf32> to vector<2x1x32xf32>
    %c0_164 = arith.constant 0 : index
    %c3_165 = arith.constant 3 : index
    %c0_166 = arith.constant 0 : index
    %652 = vector.load %arg13[%c0_164, %c3_165, %c0_166] : memref<2x8x32xf32, #tpu.memory_space<vmem>>, vector<2x1x32xf32>
    tpu.vector_store %arg13[%c0_164, %c3_165, %c0_166], %651 {strides = array<i32>} : memref<2x8x32xf32, #tpu.memory_space<vmem>>, vector<2x1x32xf32>,
    %653 = vector.extract_strided_slice %525 {offsets = [0, 4, 0], sizes = [2, 1, 128], strides = [1, 1, 1]} : vector<2x8x128xf32> to vector<2x1x128xf32>
    %654 = vector.shape_cast %653 : vector<2x1x128xf32> to vector<2x128xf32>
    %cst_167 = arith.constant dense<0.000000e+00> : vector<2x128xf32>
    %655 = tpu.matmul %650, %526, %cst_167 {dimension_numbers = #tpu.dot_dimension_numbers<[1], [0], [0], [1], [0, 0, 1, 1], [], []>} : vector<2x32xf32>, vector<32x128xf32>, vector<2x128xf32> -> vector<2x128xf32>
    %656 = arith.addf %654, %655 : vector<2x128xf32>
    %657 = vector.extract_strided_slice %656 {offsets = [0, 0], sizes = [2, 32], strides = [1, 1]} : vector<2x128xf32> to vector<2x32xf32>
    %658 = arith.negf %657 : vector<2x32xf32>
    %659 = math.exp %658 : vector<2x32xf32>
    %cst_168 = arith.constant 1.000000e+00 : f32
    %660 = vector.broadcast %cst_168 : f32 to vector<2x32xf32>
    %661 = arith.addf %660, %659 : vector<2x32xf32>
    %662 = arith.divf %660, %661 : vector<2x32xf32>
    %663 = vector.extract_strided_slice %656 {offsets = [0, 32], sizes = [2, 32], strides = [1, 1]} : vector<2x128xf32> to vector<2x32xf32>
    %664 = arith.negf %663 : vector<2x32xf32>
    %665 = math.exp %664 : vector<2x32xf32>
    %cst_169 = arith.constant 1.000000e+00 : f32
    %666 = vector.broadcast %cst_169 : f32 to vector<2x32xf32>
    %667 = arith.addf %666, %665 : vector<2x32xf32>
    %668 = arith.divf %666, %667 : vector<2x32xf32>
    %669 = vector.extract_strided_slice %656 {offsets = [0, 64], sizes = [2, 32], strides = [1, 1]} : vector<2x128xf32> to vector<2x32xf32>
    %670 = math.tanh %669 : vector<2x32xf32>
    %671 = vector.extract_strided_slice %656 {offsets = [0, 96], sizes = [2, 32], strides = [1, 1]} : vector<2x128xf32> to vector<2x32xf32>
    %672 = arith.negf %671 : vector<2x32xf32>
    %673 = math.exp %672 : vector<2x32xf32>
    %cst_170 = arith.constant 1.000000e+00 : f32
    %674 = vector.broadcast %cst_170 : f32 to vector<2x32xf32>
    %675 = arith.addf %674, %673 : vector<2x32xf32>
    %676 = arith.divf %674, %675 : vector<2x32xf32>
    %677 = arith.mulf %668, %648 : vector<2x32xf32>
    %678 = arith.mulf %662, %670 : vector<2x32xf32>
    %679 = arith.addf %677, %678 : vector<2x32xf32>
    %680 = math.tanh %679 : vector<2x32xf32>
    %681 = arith.mulf %676, %680 : vector<2x32xf32>
    %682 = vector.shape_cast %681 : vector<2x32xf32> to vector<2x1x32xf32>
    %c0_171 = arith.constant 0 : index
    %c4_172 = arith.constant 4 : index
    %c0_173 = arith.constant 0 : index
    %683 = vector.load %arg13[%c0_171, %c4_172, %c0_173] : memref<2x8x32xf32, #tpu.memory_space<vmem>>, vector<2x1x32xf32>
    tpu.vector_store %arg13[%c0_171, %c4_172, %c0_173], %682 {strides = array<i32>} : memref<2x8x32xf32, #tpu.memory_space<vmem>>, vector<2x1x32xf32>,
    %684 = vector.extract_strided_slice %525 {offsets = [0, 5, 0], sizes = [2, 1, 128], strides = [1, 1, 1]} : vector<2x8x128xf32> to vector<2x1x128xf32>
    %685 = vector.shape_cast %684 : vector<2x1x128xf32> to vector<2x128xf32>
    %cst_174 = arith.constant dense<0.000000e+00> : vector<2x128xf32>
    %686 = tpu.matmul %681, %526, %cst_174 {dimension_numbers = #tpu.dot_dimension_numbers<[1], [0], [0], [1], [0, 0, 1, 1], [], []>} : vector<2x32xf32>, vector<32x128xf32>, vector<2x128xf32> -> vector<2x128xf32>
    %687 = arith.addf %685, %686 : vector<2x128xf32>
    %688 = vector.extract_strided_slice %687 {offsets = [0, 0], sizes = [2, 32], strides = [1, 1]} : vector<2x128xf32> to vector<2x32xf32>
    %689 = arith.negf %688 : vector<2x32xf32>
    %690 = math.exp %689 : vector<2x32xf32>
    %cst_175 = arith.constant 1.000000e+00 : f32
    %691 = vector.broadcast %cst_175 : f32 to vector<2x32xf32>
    %692 = arith.addf %691, %690 : vector<2x32xf32>
    %693 = arith.divf %691, %692 : vector<2x32xf32>
    %694 = vector.extract_strided_slice %687 {offsets = [0, 32], sizes = [2, 32], strides = [1, 1]} : vector<2x128xf32> to vector<2x32xf32>
    %695 = arith.negf %694 : vector<2x32xf32>
    %696 = math.exp %695 : vector<2x32xf32>
    %cst_176 = arith.constant 1.000000e+00 : f32
    %697 = vector.broadcast %cst_176 : f32 to vector<2x32xf32>
    %698 = arith.addf %697, %696 : vector<2x32xf32>
    %699 = arith.divf %697, %698 : vector<2x32xf32>
    %700 = vector.extract_strided_slice %687 {offsets = [0, 64], sizes = [2, 32], strides = [1, 1]} : vector<2x128xf32> to vector<2x32xf32>
    %701 = math.tanh %700 : vector<2x32xf32>
    %702 = vector.extract_strided_slice %687 {offsets = [0, 96], sizes = [2, 32], strides = [1, 1]} : vector<2x128xf32> to vector<2x32xf32>
    %703 = arith.negf %702 : vector<2x32xf32>
    %704 = math.exp %703 : vector<2x32xf32>
    %cst_177 = arith.constant 1.000000e+00 : f32
    %705 = vector.broadcast %cst_177 : f32 to vector<2x32xf32>
    %706 = arith.addf %705, %704 : vector<2x32xf32>
    %707 = arith.divf %705, %706 : vector<2x32xf32>
    %708 = arith.mulf %699, %679 : vector<2x32xf32>
    %709 = arith.mulf %693, %701 : vector<2x32xf32>
    %710 = arith.addf %708, %709 : vector<2x32xf32>
    %711 = math.tanh %710 : vector<2x32xf32>
    %712 = arith.mulf %707, %711 : vector<2x32xf32>
    %713 = vector.shape_cast %712 : vector<2x32xf32> to vector<2x1x32xf32>
    %c0_178 = arith.constant 0 : index
    %c5_179 = arith.constant 5 : index
    %c0_180 = arith.constant 0 : index
    %714 = vector.load %arg13[%c0_178, %c5_179, %c0_180] : memref<2x8x32xf32, #tpu.memory_space<vmem>>, vector<2x1x32xf32>
    tpu.vector_store %arg13[%c0_178, %c5_179, %c0_180], %713 {strides = array<i32>} : memref<2x8x32xf32, #tpu.memory_space<vmem>>, vector<2x1x32xf32>,
    %715 = vector.extract_strided_slice %525 {offsets = [0, 6, 0], sizes = [2, 1, 128], strides = [1, 1, 1]} : vector<2x8x128xf32> to vector<2x1x128xf32>
    %716 = vector.shape_cast %715 : vector<2x1x128xf32> to vector<2x128xf32>
    %cst_181 = arith.constant dense<0.000000e+00> : vector<2x128xf32>
    %717 = tpu.matmul %712, %526, %cst_181 {dimension_numbers = #tpu.dot_dimension_numbers<[1], [0], [0], [1], [0, 0, 1, 1], [], []>} : vector<2x32xf32>, vector<32x128xf32>, vector<2x128xf32> -> vector<2x128xf32>
    %718 = arith.addf %716, %717 : vector<2x128xf32>
    %719 = vector.extract_strided_slice %718 {offsets = [0, 0], sizes = [2, 32], strides = [1, 1]} : vector<2x128xf32> to vector<2x32xf32>
    %720 = arith.negf %719 : vector<2x32xf32>
    %721 = math.exp %720 : vector<2x32xf32>
    %cst_182 = arith.constant 1.000000e+00 : f32
    %722 = vector.broadcast %cst_182 : f32 to vector<2x32xf32>
    %723 = arith.addf %722, %721 : vector<2x32xf32>
    %724 = arith.divf %722, %723 : vector<2x32xf32>
    %725 = vector.extract_strided_slice %718 {offsets = [0, 32], sizes = [2, 32], strides = [1, 1]} : vector<2x128xf32> to vector<2x32xf32>
    %726 = arith.negf %725 : vector<2x32xf32>
    %727 = math.exp %726 : vector<2x32xf32>
    %cst_183 = arith.constant 1.000000e+00 : f32
    %728 = vector.broadcast %cst_183 : f32 to vector<2x32xf32>
    %729 = arith.addf %728, %727 : vector<2x32xf32>
    %730 = arith.divf %728, %729 : vector<2x32xf32>
    %731 = vector.extract_strided_slice %718 {offsets = [0, 64], sizes = [2, 32], strides = [1, 1]} : vector<2x128xf32> to vector<2x32xf32>
    %732 = math.tanh %731 : vector<2x32xf32>
    %733 = vector.extract_strided_slice %718 {offsets = [0, 96], sizes = [2, 32], strides = [1, 1]} : vector<2x128xf32> to vector<2x32xf32>
    %734 = arith.negf %733 : vector<2x32xf32>
    %735 = math.exp %734 : vector<2x32xf32>
    %cst_184 = arith.constant 1.000000e+00 : f32
    %736 = vector.broadcast %cst_184 : f32 to vector<2x32xf32>
    %737 = arith.addf %736, %735 : vector<2x32xf32>
    %738 = arith.divf %736, %737 : vector<2x32xf32>
    %739 = arith.mulf %730, %710 : vector<2x32xf32>
    %740 = arith.mulf %724, %732 : vector<2x32xf32>
    %741 = arith.addf %739, %740 : vector<2x32xf32>
    %742 = math.tanh %741 : vector<2x32xf32>
    %743 = arith.mulf %738, %742 : vector<2x32xf32>
    %744 = vector.shape_cast %743 : vector<2x32xf32> to vector<2x1x32xf32>
    %c0_185 = arith.constant 0 : index
    %c6_186 = arith.constant 6 : index
    %c0_187 = arith.constant 0 : index
    %745 = vector.load %arg13[%c0_185, %c6_186, %c0_187] : memref<2x8x32xf32, #tpu.memory_space<vmem>>, vector<2x1x32xf32>
    tpu.vector_store %arg13[%c0_185, %c6_186, %c0_187], %744 {strides = array<i32>} : memref<2x8x32xf32, #tpu.memory_space<vmem>>, vector<2x1x32xf32>,
    %746 = vector.extract_strided_slice %525 {offsets = [0, 7, 0], sizes = [2, 1, 128], strides = [1, 1, 1]} : vector<2x8x128xf32> to vector<2x1x128xf32>
    %747 = vector.shape_cast %746 : vector<2x1x128xf32> to vector<2x128xf32>
    %cst_188 = arith.constant dense<0.000000e+00> : vector<2x128xf32>
    %748 = tpu.matmul %743, %526, %cst_188 {dimension_numbers = #tpu.dot_dimension_numbers<[1], [0], [0], [1], [0, 0, 1, 1], [], []>} : vector<2x32xf32>, vector<32x128xf32>, vector<2x128xf32> -> vector<2x128xf32>
    %749 = arith.addf %747, %748 : vector<2x128xf32>
    %750 = vector.extract_strided_slice %749 {offsets = [0, 0], sizes = [2, 32], strides = [1, 1]} : vector<2x128xf32> to vector<2x32xf32>
    %751 = arith.negf %750 : vector<2x32xf32>
    %752 = math.exp %751 : vector<2x32xf32>
    %cst_189 = arith.constant 1.000000e+00 : f32
    %753 = vector.broadcast %cst_189 : f32 to vector<2x32xf32>
    %754 = arith.addf %753, %752 : vector<2x32xf32>
    %755 = arith.divf %753, %754 : vector<2x32xf32>
    %756 = vector.extract_strided_slice %749 {offsets = [0, 32], sizes = [2, 32], strides = [1, 1]} : vector<2x128xf32> to vector<2x32xf32>
    %757 = arith.negf %756 : vector<2x32xf32>
    %758 = math.exp %757 : vector<2x32xf32>
    %cst_190 = arith.constant 1.000000e+00 : f32
    %759 = vector.broadcast %cst_190 : f32 to vector<2x32xf32>
    %760 = arith.addf %759, %758 : vector<2x32xf32>
    %761 = arith.divf %759, %760 : vector<2x32xf32>
    %762 = vector.extract_strided_slice %749 {offsets = [0, 64], sizes = [2, 32], strides = [1, 1]} : vector<2x128xf32> to vector<2x32xf32>
    %763 = math.tanh %762 : vector<2x32xf32>
    %764 = vector.extract_strided_slice %749 {offsets = [0, 96], sizes = [2, 32], strides = [1, 1]} : vector<2x128xf32> to vector<2x32xf32>
    %765 = arith.negf %764 : vector<2x32xf32>
    %766 = math.exp %765 : vector<2x32xf32>
    %cst_191 = arith.constant 1.000000e+00 : f32
    %767 = vector.broadcast %cst_191 : f32 to vector<2x32xf32>
    %768 = arith.addf %767, %766 : vector<2x32xf32>
    %769 = arith.divf %767, %768 : vector<2x32xf32>
    %770 = arith.mulf %761, %741 : vector<2x32xf32>
    %771 = arith.mulf %755, %763 : vector<2x32xf32>
    %772 = arith.addf %770, %771 : vector<2x32xf32>
    %773 = math.tanh %772 : vector<2x32xf32>
    %774 = arith.mulf %769, %773 : vector<2x32xf32>
    %775 = vector.shape_cast %774 : vector<2x32xf32> to vector<2x1x32xf32>
    %c0_192 = arith.constant 0 : index
    %c7_193 = arith.constant 7 : index
    %c0_194 = arith.constant 0 : index
    %776 = vector.load %arg13[%c0_192, %c7_193, %c0_194] : memref<2x8x32xf32, #tpu.memory_space<vmem>>, vector<2x1x32xf32>
    tpu.vector_store %arg13[%c0_192, %c7_193, %c0_194], %775 {strides = array<i32>} : memref<2x8x32xf32, #tpu.memory_space<vmem>>, vector<2x1x32xf32>,
    %c0_195 = arith.constant 0 : index
    %c0_196 = arith.constant 0 : index
    %c0_197 = arith.constant 0 : index
    %777 = vector.load %arg13[%c0_195, %c0_196, %c0_197] : memref<2x8x32xf32, #tpu.memory_space<vmem>>, vector<2x8x32xf32>
    %778 = vector.shape_cast %777 : vector<2x8x32xf32> to vector<16x32xf32>
    %c0_198 = arith.constant 0 : index
    %c0_199 = arith.constant 0 : index
    %779 = vector.load %arg10[%c0_198, %c0_199] : memref<32x2xf32, #tpu.memory_space<vmem>>, vector<32x2xf32>
    %cst_200 = arith.constant dense<0.000000e+00> : vector<16x2xf32>
    %780 = tpu.matmul %778, %779, %cst_200 {dimension_numbers = #tpu.dot_dimension_numbers<[1], [0], [0], [1], [0, 0, 1, 1], [], []>} : vector<16x32xf32>, vector<32x2xf32>, vector<16x2xf32> -> vector<16x2xf32>
    %c0_201 = arith.constant 0 : index
    %c0_202 = arith.constant 0 : index
    %781 = vector.load %arg11[%c0_201, %c0_202] : memref<1x2xf32, #tpu.memory_space<vmem>>, vector<1x2xf32>
    %782 = vector.broadcast %781 : vector<1x2xf32> to vector<16x2xf32>
    %783 = arith.addf %780, %782 : vector<16x2xf32>
    %c0_203 = arith.constant 0 : index
    %c0_204 = arith.constant 0 : index
    %784 = vector.load %arg12[%c0_203, %c0_204] : memref<16x2xf32, #tpu.memory_space<vmem>>, vector<16x2xf32>
    tpu.vector_store %arg12[%c0_203, %c0_204], %783 {strides = array<i32>} : memref<16x2xf32, #tpu.memory_space<vmem>>, vector<16x2xf32>,
    return
  }
}

</mosaic_0001>

<llo_original>
// kernel: net_forward.1
$region0: #{net_forward.1}
  #allocation0 [shape = 'u32[]', space=smem, size = 0x4, offset = 0x4, fixed_abs, tag = 'smem constant byte address 0x4 - core index']
  #allocation1 [shape = 'u32[144,128]{1,0:T(1,128)}', space=vmem, size = 0x12000, scoped, tag = 'internal scratch']
  #allocation2 [shape = 'f32[2,8,32]{2,1,0:T(8,128)}', space=vmem, size = 0x2000, scoped, tag = 'scratch operand']
  %s0 = inlined_call_operand.vmem [shape: f32[2,8,8], index: 0, kind: input, shape index: {}]
  %s1 = inlined_call_operand.hbm [shape: f32[8,128], index: 1, kind: input, shape index: {}]
  %s2 = inlined_call_operand.vmem [shape: f32[32,128], index: 2, kind: input, shape index: {}]
  %s3 = inlined_call_operand.hbm [shape: f32[1,128], index: 3, kind: input, shape index: {}]
  %s4 = inlined_call_operand.hbm [shape: f32[32,128], index: 4, kind: input, shape index: {}]
  %s5 = inlined_call_operand.hbm [shape: f32[32,128], index: 5, kind: input, shape index: {}]
  %s6 = inlined_call_operand.hbm [shape: f32[1,128], index: 6, kind: input, shape index: {}]
  %s7 = inlined_call_operand.hbm [shape: f32[32,128], index: 7, kind: input, shape index: {}]
  %s8 = inlined_call_operand.hbm [shape: f32[32,128], index: 8, kind: input, shape index: {}]
  %s9 = inlined_call_operand.vmem [shape: f32[1,128], index: 9, kind: input, shape index: {}]
  %s10 = inlined_call_operand.vmem [shape: f32[32,2], index: 10, kind: input, shape index: {}]
  %s11 = inlined_call_operand.hbm [shape: f32[1,2], index: 11, kind: input, shape index: {}]
  %s12 = inlined_call_operand.vmem [shape: f32[16,2], index: 12, kind: output, shape index: {}]
  %s13 = sld [smem:[#allocation0]]
  $region90: #{net_forward.1} parent=0
    _
  %s15 = ssub.s32 1, %s13
  %s16 = scalar_select 0, %s15, %s13
  $region1: #{net_forward.1} parent=0
    #allocation3 [shape = 'u8[4096]{0}', space=vmem, size = 0x1000, scoped, tag = 'input window, operand 1, single buffered']
    #allocation4 [shape = 's32[1]{0}', space=sflag, size = 0x4, scoped, tag = 'scoped memory for net_forward.1']
    #allocation5 [shape = 'u8[512]{0}', space=vmem, size = 0x400, scoped, tag = 'input window, operand 3, single buffered']
    #allocation6 [shape = 's32[1]{0}', space=sflag, size = 0x4, scoped, tag = 'scoped memory for net_forward.1']
    #allocation7 [shape = 'u8[16384]{0}', space=vmem, size = 0x4000, scoped, tag = 'input window, operand 4, single buffered']
    #allocation8 [shape = 'u8[16384]{0}', space=vmem, size = 0x4000, scoped, tag = 'input window, operand 5, single buffered']
    #allocation9 [shape = 's32[1]{0}', space=sflag, size = 0x4, scoped, tag = 'scoped memory for net_forward.1']
    #allocation10 [shape = 'u8[512]{0}', space=vmem, size = 0x400, scoped, tag = 'input window, operand 6, single buffered']
    #allocation11 [shape = 'u8[16384]{0}', space=vmem, size = 0x4000, scoped, tag = 'input window, operand 7, single buffered']
    #allocation12 [shape = 's32[1]{0}', space=sflag, size = 0x4, scoped, tag = 'scoped memory for net_forward.1']
    #allocation13 [shape = 'u8[16384]{0}', space=vmem, size = 0x4000, scoped, tag = 'input window, operand 8, single buffered']
    #allocation14 [shape = 'u8[512]{0}', space=vmem, size = 0x400, scoped, tag = 'input window, operand 11, single buffered']
    #allocation15 [shape = 's32[1]{0}', space=sflag, size = 0x4, scoped, tag = 'scoped memory for net_forward.1']
    %17 = vsyncpa [#allocation4], 0
    %18 = vsyncpa [#allocation6], 0
    %19 = vsyncpa [#allocation9], 0
    %20 = vsyncpa [#allocation12], 0
    %21 = vsyncpa [#allocation15], 0
    // Predicated region
    $region2: #{net_forward.1} parent=1 // pred_check
      _
    $region3: #{net_forward.1} parent=1 // pred_check_branch
      %23 = sbr.rel (0) target = $region5
    $region4: #{net_forward.1} parent=1 // pred_region
      _
    $region5: #{net_forward.1} parent=1 // pred_fallthru
      _
    // Predicated region
    $region6: #{net_forward.1} parent=1 // pred_check
      _
    $region7: #{net_forward.1} parent=1 // pred_check_branch
      %25 = sbr.rel (0) target = $region9
    $region8: #{net_forward.1} parent=1 // pred_region
      %s27 = ssub.s32 128, 128
      %28 = vsyncadd [#allocation4], %s27
      %s30 = sshll.u32 [#allocation3], 4
      %s31 = int_to_ptr.vmem [resolvable:$true] %s30
      %33 = dma.hbm_to_vmem [thread:$0]  %s1, 128, %s31, [#allocation4]
    $region9: #{net_forward.1} parent=1 // pred_fallthru
      _
    // Predicated region
    $region10: #{net_forward.1} parent=1 // pred_check
      _
    $region11: #{net_forward.1} parent=1 // pred_check_branch
      %35 = sbr.rel (0) target = $region13
    $region12: #{net_forward.1} parent=1 // pred_region
      _
    $region13: #{net_forward.1} parent=1 // pred_fallthru
      _
    // Predicated region
    $region14: #{net_forward.1} parent=1 // pred_check
      _
    $region15: #{net_forward.1} parent=1 // pred_check_branch
      %37 = sbr.rel (0) target = $region17
    $region16: #{net_forward.1} parent=1 // pred_region
      %s39 = ssub.s32 16, 16
      %40 = vsyncadd [#allocation6], %s39
      %s42 = sshll.u32 [#allocation5], 4
      %s43 = int_to_ptr.vmem [resolvable:$true] %s42
      %45 = dma.hbm_to_vmem [thread:$0]  %s3, 16, %s43, [#allocation6]
    $region17: #{net_forward.1} parent=1 // pred_fallthru
      _
    // Predicated region
    $region18: #{net_forward.1} parent=1 // pred_check
      _
    $region19: #{net_forward.1} parent=1 // pred_check_branch
      %47 = sbr.rel (0) target = $region21
    $region20: #{net_forward.1} parent=1 // pred_region
      %s49 = ssub.s32 512, 512
      %50 = vsyncadd [#allocation6], %s49
      %s51 = sshll.u32 [#allocation7], 4
      %s52 = int_to_ptr.vmem [resolvable:$true] %s51
      %57 = dma.hbm_to_vmem [thread:$0]  %s4, 512, %s52, [#allocation6], 128, 128, 8
    $region21: #{net_forward.1} parent=1 // pred_fallthru
      _
    // Predicated region
    $region22: #{net_forward.1} parent=1 // pred_check
      _
    $region23: #{net_forward.1} parent=1 // pred_check_branch
      %59 = sbr.rel (0) target = $region25
    $region24: #{net_forward.1} parent=1 // pred_region
      %s61 = ssub.s32 512, 512
      %62 = vsyncadd [#allocation9], %s61
      %s63 = sshll.u32 [#allocation8], 4
      %s64 = int_to_ptr.vmem [resolvable:$true] %s63
      %69 = dma.hbm_to_vmem [thread:$0]  %s5, 512, %s64, [#allocation9], 128, 128, 8
    $region25: #{net_forward.1} parent=1 // pred_fallthru
      _
    // Predicated region
    $region26: #{net_forward.1} parent=1 // pred_check
      _
    $region27: #{net_forward.1} parent=1 // pred_check_branch
      %71 = sbr.rel (0) target = $region29
    $region28: #{net_forward.1} parent=1 // pred_region
      %s73 = ssub.s32 16, 16
      %74 = vsyncadd [#allocation9], %s73
      %s76 = sshll.u32 [#allocation10], 4
      %s77 = int_to_ptr.vmem [resolvable:$true] %s76
      %79 = dma.hbm_to_vmem [thread:$0]  %s6, 16, %s77, [#allocation9]
    $region29: #{net_forward.1} parent=1 // pred_fallthru
      _
    // Predicated region
    $region30: #{net_forward.1} parent=1 // pred_check
      _
    $region31: #{net_forward.1} parent=1 // pred_check_branch
      %81 = sbr.rel (0) target = $region33
    $region32: #{net_forward.1} parent=1 // pred_region
      %s83 = ssub.s32 512, 512
      %84 = vsyncadd [#allocation12], %s83
      %s85 = sshll.u32 [#allocation11], 4
      %s86 = int_to_ptr.vmem [resolvable:$true] %s85
      %91 = dma.hbm_to_vmem [thread:$0]  %s7, 512, %s86, [#allocation12], 128, 128, 8
    $region33: #{net_forward.1} parent=1 // pred_fallthru
      _
    // Predicated region
    $region34: #{net_forward.1} parent=1 // pred_check
      _
    $region35: #{net_forward.1} parent=1 // pred_check_branch
      %93 = sbr.rel (0) target = $region37
    $region36: #{net_forward.1} parent=1 // pred_region
      %s95 = ssub.s32 512, 512
      %96 = vsyncadd [#allocation12], %s95
      %s97 = sshll.u32 [#allocation13], 4
      %s98 = int_to_ptr.vmem [resolvable:$true] %s97
      %103 = dma.hbm_to_vmem [thread:$0]  %s8, 512, %s98, [#allocation12], 128, 128, 8
    $region37: #{net_forward.1} parent=1 // pred_fallthru
      _
    // Predicated region
    $region38: #{net_forward.1} parent=1 // pred_check
      _
    $region39: #{net_forward.1} parent=1 // pred_check_branch
      %105 = sbr.rel (0) target = $region41
    $region40: #{net_forward.1} parent=1 // pred_region
      _
    $region41: #{net_forward.1} parent=1 // pred_fallthru
      _
    // Predicated region
    $region42: #{net_forward.1} parent=1 // pred_check
      _
    $region43: #{net_forward.1} parent=1 // pred_check_branch
      %107 = sbr.rel (0) target = $region45
    $region44: #{net_forward.1} parent=1 // pred_region
      _
    $region45: #{net_forward.1} parent=1 // pred_fallthru
      _
    // Predicated region
    $region46: #{net_forward.1} parent=1 // pred_check
      _
    $region47: #{net_forward.1} parent=1 // pred_check_branch
      %109 = sbr.rel (0) target = $region49
    $region48: #{net_forward.1} parent=1 // pred_region
      %s111 = ssub.s32 16, 16
      %112 = vsyncadd [#allocation15], %s111
      %s114 = sshll.u32 [#allocation14], 4
      %s115 = int_to_ptr.vmem [resolvable:$true] %s114
      %117 = dma.hbm_to_vmem [thread:$0]  %s11, 16, %s115, [#allocation15]
    $region49: #{net_forward.1} parent=1 // pred_fallthru
      _
    // Predicated region
    $region50: #{net_forward.1} parent=1 // pred_check
      _
    $region51: #{net_forward.1} parent=1 // pred_check_branch
      %119 = sbr.rel (0) target = $region53
    $region52: #{net_forward.1} parent=1 // pred_region
      %120 = dma.done [#allocation4], 128
    $region53: #{net_forward.1} parent=1 // pred_fallthru
      _
    // Predicated region
    $region54: #{net_forward.1} parent=1 // pred_check
      _
    $region55: #{net_forward.1} parent=1 // pred_check_branch
      %122 = sbr.rel (0) target = $region57
    $region56: #{net_forward.1} parent=1 // pred_region
      %123 = dma.done [#allocation6], 16
    $region57: #{net_forward.1} parent=1 // pred_fallthru
      _
    // Predicated region
    $region58: #{net_forward.1} parent=1 // pred_check
      _
    $region59: #{net_forward.1} parent=1 // pred_check_branch
      %125 = sbr.rel (0) target = $region61
    $region60: #{net_forward.1} parent=1 // pred_region
      %126 = dma.done [#allocation6], 512
    $region61: #{net_forward.1} parent=1 // pred_fallthru
      _
    // Predicated region
    $region62: #{net_forward.1} parent=1 // pred_check
      _
    $region63: #{net_forward.1} parent=1 // pred_check_branch
      %128 = sbr.rel (0) target = $region65
    $region64: #{net_forward.1} parent=1 // pred_region
      %129 = dma.done [#allocation9], 512
    $region65: #{net_forward.1} parent=1 // pred_fallthru
      _
    // Predicated region
    $region66: #{net_forward.1} parent=1 // pred_check
      _
    $region67: #{net_forward.1} parent=1 // pred_check_branch
      %131 = sbr.rel (0) target = $region69
    $region68: #{net_forward.1} parent=1 // pred_region
      %132 = dma.done [#allocation9], 16
    $region69: #{net_forward.1} parent=1 // pred_fallthru
      _
    // Predicated region
    $region70: #{net_forward.1} parent=1 // pred_check
      _
    $region71: #{net_forward.1} parent=1 // pred_check_branch
      %134 = sbr.rel (0) target = $region73
    $region72: #{net_forward.1} parent=1 // pred_region
      %135 = dma.done [#allocation12], 512
    $region73: #{net_forward.1} parent=1 // pred_fallthru
      _
    // Predicated region
    $region74: #{net_forward.1} parent=1 // pred_check
      _
    $region75: #{net_forward.1} parent=1 // pred_check_branch
      %137 = sbr.rel (0) target = $region77
    $region76: #{net_forward.1} parent=1 // pred_region
      %138 = dma.done [#allocation12], 512
    $region77: #{net_forward.1} parent=1 // pred_fallthru
      _
    // Predicated region
    $region78: #{net_forward.1} parent=1 // pred_check
      _
    $region79: #{net_forward.1} parent=1 // pred_check_branch
      %140 = sbr.rel (0) target = $region81
    $region80: #{net_forward.1} parent=1 // pred_region
      %141 = dma.done [#allocation15], 16
    $region81: #{net_forward.1} parent=1 // pred_fallthru
      _
    %v142 = vld [vmem:[%s0] sm:$0xff]
    %v143 = vld [vmem:[%s0 + $0x8] sm:$0xff]
    %v144 = vld [vmem:[#allocation3] sm:$0xff]
    %v145 = vld [vmem:[#allocation5] sm:$0x1]
    %v147 = vlaneseq
    %v148 = vshrl.u32 %v147, 7
    %v149 = vsub.s32 0, %v148
    %v150 = vrot.slane %v145, %v149
    %vm152 = vcmask 64512
    %v154 = vsel %vm152, %v142, 0
    %v157 = vsel %vm152, %v143, 0
    %159 = vmatprep.subr.mxu0 0.0
    %160 = vmatpush1.msra.mxu0 0.0
    %161 = vmatprep.subr.mxu0 0.0
    %162 = vmatpush1.msra.mxu0 0.0
    %163 = vmatprep.subr.mxu0 0.0
    %164 = vmatpush1.msra.mxu0 0.0
    %165 = vmatprep.subr.mxu0 0.0
    %166 = vmatpush1.msra.mxu0 0.0
    %167 = vmatprep.subr.mxu0 0.0
    %168 = vmatpush1.msra.mxu0 0.0
    %169 = vmatprep.subr.mxu0 0.0
    %170 = vmatpush1.msra.mxu0 0.0
    %171 = vmatprep.subr.mxu0 0.0
    %172 = vmatpush1.msra.mxu0 0.0
    %173 = vmatprep.subr.mxu0 0.0
    %174 = vmatpush1.msra.mxu0 0.0
    %175 = vmatprep.subr.mxu0 0.0
    %176 = vmatpush1.msra.mxu0 0.0
    %177 = vmatprep.subr.mxu0 0.0
    %178 = vmatpush1.msra.mxu0 0.0
    %179 = vmatprep.subr.mxu0 0.0
    %180 = vmatpush1.msra.mxu0 0.0
    %181 = vmatprep.subr.mxu0 0.0
    %182 = vmatpush1.msra.mxu0 0.0
    %183 = vmatprep.subr.mxu0 0.0
    %184 = vmatpush1.msra.mxu0 0.0
    %185 = vmatprep.subr.mxu0 0.0
    %186 = vmatpush1.msra.mxu0 0.0
    %187 = vmatprep.subr.mxu0 0.0
    %188 = vmatpush1.msra.mxu0 0.0
    %189 = vmatprep.subr.mxu0 0.0
    %190 = vmatpush1.msra.mxu0 %v144
    %191 = vmatprep.subr.mxu0 0.0
    %192 = vmatpush2.msra.mxu0 0.0
    %193 = vmatprep.subr.mxu0 0.0
    %194 = vmatpush2.msra.mxu0 0.0
    %195 = vmatprep.subr.mxu0 0.0
    %196 = vmatpush2.msra.mxu0 0.0
    %197 = vmatprep.subr.mxu0 0.0
    %198 = vmatpush2.msra.mxu0 0.0
    %199 = vmatprep.subr.mxu0 0.0
    %200 = vmatpush2.msra.mxu0 0.0
    %201 = vmatprep.subr.mxu0 0.0
    %202 = vmatpush2.msra.mxu0 0.0
    %203 = vmatprep.subr.mxu0 0.0
    %204 = vmatpush2.msra.mxu0 0.0
    %205 = vmatprep.subr.mxu0 0.0
    %206 = vmatpush2.msra.mxu0 0.0
    %207 = vmatprep.subr.mxu0 0.0
    %208 = vmatpush2.msra.mxu0 0.0
    %209 = vmatprep.subr.mxu0 0.0
    %210 = vmatpush2.msra.mxu0 0.0
    %211 = vmatprep.subr.mxu0 0.0
    %212 = vmatpush2.msra.mxu0 0.0
    %213 = vmatprep.subr.mxu0 0.0
    %214 = vmatpush2.msra.mxu0 0.0
    %215 = vmatprep.subr.mxu0 0.0
    %216 = vmatpush2.msra.mxu0 0.0
    %217 = vmatprep.subr.mxu0 0.0
    %218 = vmatpush2.msra.mxu0 0.0
    %219 = vmatprep.subr.mxu0 0.0
    %220 = vmatpush2.msra.mxu0 0.0
    %221 = vmatprep.subr.mxu0 0.0
    %222 = vmatpush2.msra.mxu0 0.0
    %223 = vmatprep.mubr.f32.mxu0 0.0
    %224 = vmatmul.mubr.f32.gmra.mxu0 %v154
    %v225 = vpop.f32.mrf.mxu0
    %v226 = vadd.f32 %v150, %v225
    %v227 = vpop.f32.mrf.mxu0
    %228 = vmatprep.mubr.f32.mxu0 0.0
    %229 = vmatmul.mubr.f32.gmra.mxu0 %v157
    %v230 = vpop.f32.mrf.mxu0
    %v231 = vadd.f32 %v150, %v230
    %v232 = vpop.f32.mrf.mxu0
    %233 = vdwg.mxu0
    %v234 = vld [vmem:[%s2] sm:$0xff]
    %v235 = vld [vmem:[%s2 + $0x8] sm:$0xff]
    %v236 = vld [vmem:[%s2 + $0x10] sm:$0xff]
    %v237 = vld [vmem:[%s2 + $0x18] sm:$0xff]
    %vm238 = vcmask 261120
    %v240 = vsel %vm238, 0.0, 0
    %242 = vmatprep.subr.mxu0 0.0
    %243 = vmatpush1.msra.mxu0 0.0
    %244 = vmatprep.subr.mxu0 0.0
    %245 = vmatpush1.msra.mxu0 0.0
    %246 = vmatprep.subr.mxu0 0.0
    %247 = vmatpush1.msra.mxu0 0.0
    %248 = vmatprep.subr.mxu0 0.0
    %249 = vmatpush1.msra.mxu0 0.0
    %250 = vmatprep.subr.mxu0 0.0
    %251 = vmatpush1.msra.mxu0 0.0
    %252 = vmatprep.subr.mxu0 0.0
    %253 = vmatpush1.msra.mxu0 0.0
    %254 = vmatprep.subr.mxu0 0.0
    %255 = vmatpush1.msra.mxu0 0.0
    %256 = vmatprep.subr.mxu0 0.0
    %257 = vmatpush1.msra.mxu0 0.0
    %258 = vmatprep.subr.mxu0 0.0
    %259 = vmatpush1.msra.mxu0 0.0
    %260 = vmatprep.subr.mxu0 0.0
    %261 = vmatpush1.msra.mxu0 0.0
    %262 = vmatprep.subr.mxu0 0.0
    %263 = vmatpush1.msra.mxu0 0.0
    %264 = vmatprep.subr.mxu0 0.0
    %265 = vmatpush1.msra.mxu0 0.0
    %266 = vmatprep.subr.mxu0 0.0
    %267 = vmatpush1.msra.mxu0 %v237
    %268 = vmatprep.subr.mxu0 0.0
    %269 = vmatpush1.msra.mxu0 %v236
    %270 = vmatprep.subr.mxu0 0.0
    %271 = vmatpush1.msra.mxu0 %v235
    %272 = vmatprep.subr.mxu0 0.0
    %273 = vmatpush1.msra.mxu0 %v234
    %274 = vmatprep.subr.mxu0 0.0
    %275 = vmatpush2.msra.mxu0 0.0
    %276 = vmatprep.subr.mxu0 0.0
    %277 = vmatpush2.msra.mxu0 0.0
    %278 = vmatprep.subr.mxu0 0.0
    %279 = vmatpush2.msra.mxu0 0.0
    %280 = vmatprep.subr.mxu0 0.0
    %281 = vmatpush2.msra.mxu0 0.0
    %282 = vmatprep.subr.mxu0 0.0
    %283 = vmatpush2.msra.mxu0 0.0
    %284 = vmatprep.subr.mxu0 0.0
    %285 = vmatpush2.msra.mxu0 0.0
    %286 = vmatprep.subr.mxu0 0.0
    %287 = vmatpush2.msra.mxu0 0.0
    %288 = vmatprep.subr.mxu0 0.0
    %289 = vmatpush2.msra.mxu0 0.0
    %290 = vmatprep.subr.mxu0 0.0
    %291 = vmatpush2.msra.mxu0 0.0
    %292 = vmatprep.subr.mxu0 0.0
    %293 = vmatpush2.msra.mxu0 0.0
    %294 = vmatprep.subr.mxu0 0.0
    %295 = vmatpush2.msra.mxu0 0.0
    %296 = vmatprep.subr.mxu0 0.0
    %297 = vmatpush2.msra.mxu0 0.0
    %298 = vmatprep.subr.mxu0 0.0
    %299 = vmatpush2.msra.mxu0 0.0
    %300 = vmatprep.subr.mxu0 0.0
    %301 = vmatpush2.msra.mxu0 0.0
    %302 = vmatprep.subr.mxu0 0.0
    %303 = vmatpush2.msra.mxu0 0.0
    %304 = vmatprep.subr.mxu0 0.0
    %305 = vmatpush2.msra.mxu0 0.0
    %306 = vmatprep.mubr.f32.mxu0 0.0
    %307 = vmatmul.mubr.f32.gmra.mxu0 %v240
    %v308 = vpop.f32.mrf.mxu0
    %v309 = vadd.f32 0.0, %v308
    %v310 = vpop.f32.mrf.mxu0
    %311 = vdwg.mxu0
    %v313 = vrot.slane %v309, 1
    %v316 = vadd.f32 %v226, %v309
    %v317 = vadd.f32 %v231, %v313
    %v318 = vxor.u32 %v316, 2147483648
    %v319 = vxor.u32 %v317, 2147483648
    %v320 = vmul.f32 %v318, 1.442695
    %v321 = vpow.pop %v320
    %v322 = vmul.f32 %v319, 1.442695
    %v323 = vpow.pop %v322
    %v324 = vadd.f32 %v321, 1.0
    %v325 = vadd.f32 %v323, 1.0
    %v326 = vrcp.pop %v324
    %v327 = vmul.f32 1.0, %v326
    %v328 = vrcp.pop %v325
    %v329 = vmul.f32 1.0, %v328
    %v330 = vtanh.pop %v316
    %v331 = vtanh.pop %v317
    %v332 = vmul.f32 %v327, 0.0
    %v333 = vmul.f32 %v329, 0.0
    %336 = vrot.lane.b32.xlu0 %v330, 64
    %v337 = vpop.permute.xlu0 %336
    %338 = vrot.lane.b32.xlu0 %v331, 64
    %v339 = vpop.permute.xlu0 %338
    %v342 = vmul.f32 %v327, %v337
    %v343 = vmul.f32 %v329, %v339
    %346 = vrot.lane.b32.xlu0 %v342, 32
    %v347 = vpop.permute.xlu0 %346
    %348 = vrot.lane.b32.xlu0 %v343, 32
    %v349 = vpop.permute.xlu0 %348
    %v352 = vadd.f32 %v332, %v347
    %v353 = vadd.f32 %v333, %v349
    %v354 = vtanh.pop %v352
    %v355 = vtanh.pop %v353
    %358 = vrot.lane.b32.xlu0 %v354, 64
    %v359 = vpop.permute.xlu0 %358
    %360 = vrot.lane.b32.xlu0 %v355, 64
    %v361 = vpop.permute.xlu0 %360
    %v364 = vmul.f32 %v327, %v359
    %v365 = vmul.f32 %v329, %v361
    %368 = vrot.lane.b32.xlu0 %v364, 32
    %v369 = vpop.permute.xlu0 %368
    %370 = vrot.lane.b32.xlu0 %v365, 32
    %v371 = vpop.permute.xlu0 %370
    %vm374 = vcmask 253952
    %375 = vst.msk [vmem:[#allocation2] sm:$0x1] %vm374, %v369
    %376 = vst.msk [vmem:[#allocation2 + $0x8] sm:$0x1] %vm374, %v371
    %v377 = vrot.slane %v365, 7
    %vm378 = vcmask 1041409
    %v379 = vsel %vm378, %v377, %v364
    %380 = vrot.lane.b32.xlu0 %v379, 32
    %v381 = vpop.permute.xlu0 %380
    %v382 = vsel %vm238, %v381, 0
    %384 = vmatprep.subr.mxu0 0.0
    %385 = vmatpush1.msra.mxu0 0.0
    %386 = vmatprep.subr.mxu0 0.0
    %387 = vmatpush1.msra.mxu0 0.0
    %388 = vmatprep.subr.mxu0 0.0
    %389 = vmatpush1.msra.mxu0 0.0
    %390 = vmatprep.subr.mxu0 0.0
    %391 = vmatpush1.msra.mxu0 0.0
    %392 = vmatprep.subr.mxu0 0.0
    %393 = vmatpush1.msra.mxu0 0.0
    %394 = vmatprep.subr.mxu0 0.0
    %395 = vmatpush1.msra.mxu0 0.0
    %396 = vmatprep.subr.mxu0 0.0
    %397 = vmatpush1.msra.mxu0 0.0
    %398 = vmatprep.subr.mxu0 0.0
    %399 = vmatpush1.msra.mxu0 0.0
    %400 = vmatprep.subr.mxu0 0.0
    %401 = vmatpush1.msra.mxu0 0.0
    %402 = vmatprep.subr.mxu0 0.0
    %403 = vmatpush1.msra.mxu0 0.0
    %404 = vmatprep.subr.mxu0 0.0
    %405 = vmatpush1.msra.mxu0 0.0
    %406 = vmatprep.subr.mxu0 0.0
    %407 = vmatpush1.msra.mxu0 0.0
    %408 = vmatprep.subr.mxu0 0.0
    %409 = vmatpush1.msra.mxu0 %v237
    %410 = vmatprep.subr.mxu0 0.0
    %411 = vmatpush1.msra.mxu0 %v236
    %412 = vmatprep.subr.mxu0 0.0
    %413 = vmatpush1.msra.mxu0 %v235
    %414 = vmatprep.subr.mxu0 0.0
    %415 = vmatpush1.msra.mxu0 %v234
    %416 = vmatprep.subr.mxu0 0.0
    %417 = vmatpush2.msra.mxu0 0.0
    %418 = vmatprep.subr.mxu0 0.0
    %419 = vmatpush2.msra.mxu0 0.0
    %420 = vmatprep.subr.mxu0 0.0
    %421 = vmatpush2.msra.mxu0 0.0
    %422 = vmatprep.subr.mxu0 0.0
    %423 = vmatpush2.msra.mxu0 0.0
    %424 = vmatprep.subr.mxu0 0.0
    %425 = vmatpush2.msra.mxu0 0.0
    %426 = vmatprep.subr.mxu0 0.0
    %427 = vmatpush2.msra.mxu0 0.0
    %428 = vmatprep.subr.mxu0 0.0
    %429 = vmatpush2.msra.mxu0 0.0
    %430 = vmatprep.subr.mxu0 0.0
    %431 = vmatpush2.msra.mxu0 0.0
    %432 = vmatprep.subr.mxu0 0.0
    %433 = vmatpush2.msra.mxu0 0.0
    %434 = vmatprep.subr.mxu0 0.0
    %435 = vmatpush2.msra.mxu0 0.0
    %436 = vmatprep.subr.mxu0 0.0
    %437 = vmatpush2.msra.mxu0 0.0
    %438 = vmatprep.subr.mxu0 0.0
    %439 = vmatpush2.msra.mxu0 0.0
    %440 = vmatprep.subr.mxu0 0.0
    %441 = vmatpush2.msra.mxu0 0.0
    %442 = vmatprep.subr.mxu0 0.0
    %443 = vmatpush2.msra.mxu0 0.0
    %444 = vmatprep.subr.mxu0 0.0
    %445 = vmatpush2.msra.mxu0 0.0
    %446 = vmatprep.subr.mxu0 0.0
    %447 = vmatpush2.msra.mxu0 0.0
    %448 = vmatprep.mubr.f32.mxu0 0.0
    %449 = vmatmul.mubr.f32.gmra.mxu0 %v382
    %v450 = vpop.f32.mrf.mxu0
    %v451 = vadd.f32 0.0, %v450
    %v452 = vpop.f32.mrf.mxu0
    %453 = vdwg.mxu0
    %v455 = vrot.slane %v451, 7
    %v458 = vadd.f32 %v226, %v455
    %v459 = vadd.f32 %v231, %v451
    %v460 = vxor.u32 %v458, 2147483648
    %v461 = vxor.u32 %v459, 2147483648
    %v462 = vmul.f32 %v460, 1.442695
    %v463 = vpow.pop %v462
    %v464 = vmul.f32 %v461, 1.442695
    %v465 = vpow.pop %v464
    %v466 = vadd.f32 %v463, 1.0
    %v467 = vadd.f32 %v465, 1.0
    %v468 = vrcp.pop %v466
    %v469 = vmul.f32 1.0, %v468
    %v470 = vrcp.pop %v467
    %v471 = vmul.f32 1.0, %v470
    %v472 = vtanh.pop %v458
    %v473 = vtanh.pop %v459
    %v476 = vrot.slane %v352, 7
    %v477 = vrot.slane %v353, 7
    %v480 = vmul.f32 %v469, %v476
    %v481 = vmul.f32 %v471, %v477
    %484 = vrot.lane.b32.xlu0 %v472, 64
    %v485 = vpop.permute.xlu0 %484
    %486 = vrot.lane.b32.xlu0 %v473, 64
    %v487 = vpop.permute.xlu0 %486
    %v490 = vmul.f32 %v469, %v485
    %v491 = vmul.f32 %v471, %v487
    %494 = vrot.lane.b32.xlu0 %v490, 32
    %v495 = vpop.permute.xlu0 %494
    %496 = vrot.lane.b32.xlu0 %v491, 32
    %v497 = vpop.permute.xlu0 %496
    %v500 = vadd.f32 %v480, %v495
    %v501 = vadd.f32 %v481, %v497
    %v502 = vtanh.pop %v500
    %v503 = vtanh.pop %v501
    %506 = vrot.lane.b32.xlu0 %v502, 64
    %v507 = vpop.permute.xlu0 %506
    %508 = vrot.lane.b32.xlu0 %v503, 64
    %v509 = vpop.permute.xlu0 %508
    %v512 = vmul.f32 %v469, %v507
    %v513 = vmul.f32 %v471, %v509
    %516 = vrot.lane.b32.xlu0 %v512, 32
    %v517 = vpop.permute.xlu0 %516
    %518 = vrot.lane.b32.xlu0 %v513, 32
    %v519 = vpop.permute.xlu0 %518
    %vm522 = vcmask 254977
    %523 = vst.msk [vmem:[#allocation2] sm:$0x2] %vm522, %v517
    %524 = vst.msk [vmem:[#allocation2 + $0x8] sm:$0x2] %vm522, %v519
    %v525 = vrot.slane %v512, 1
    %v526 = vsel %vm378, %v513, %v525
    %527 = vrot.lane.b32.xlu0 %v526, 32
    %v528 = vpop.permute.xlu0 %527
    %v529 = vsel %vm238, %v528, 0
    %531 = vmatprep.subr.mxu0 0.0
    %532 = vmatpush1.msra.mxu0 0.0
    %533 = vmatprep.subr.mxu0 0.0
    %534 = vmatpush1.msra.mxu0 0.0
    %535 = vmatprep.subr.mxu0 0.0
    %536 = vmatpush1.msra.mxu0 0.0
    %537 = vmatprep.subr.mxu0 0.0
    %538 = vmatpush1.msra.mxu0 0.0
    %539 = vmatprep.subr.mxu0 0.0
    %540 = vmatpush1.msra.mxu0 0.0
    %541 = vmatprep.subr.mxu0 0.0
    %542 = vmatpush1.msra.mxu0 0.0
    %543 = vmatprep.subr.mxu0 0.0
    %544 = vmatpush1.msra.mxu0 0.0
    %545 = vmatprep.subr.mxu0 0.0
    %546 = vmatpush1.msra.mxu0 0.0
    %547 = vmatprep.subr.mxu0 0.0
    %548 = vmatpush1.msra.mxu0 0.0
    %549 = vmatprep.subr.mxu0 0.0
    %550 = vmatpush1.msra.mxu0 0.0
    %551 = vmatprep.subr.mxu0 0.0
    %552 = vmatpush1.msra.mxu0 0.0
    %553 = vmatprep.subr.mxu0 0.0
    %554 = vmatpush1.msra.mxu0 0.0
    %555 = vmatprep.subr.mxu0 0.0
    %556 = vmatpush1.msra.mxu0 %v237
    %557 = vmatprep.subr.mxu0 0.0
    %558 = vmatpush1.msra.mxu0 %v236
    %559 = vmatprep.subr.mxu0 0.0
    %560 = vmatpush1.msra.mxu0 %v235
    %561 = vmatprep.subr.mxu0 0.0
    %562 = vmatpush1.msra.mxu0 %v234
    %563 = vmatprep.subr.mxu0 0.0
    %564 = vmatpush2.msra.mxu0 0.0
    %565 = vmatprep.subr.mxu0 0.0
    %566 = vmatpush2.msra.mxu0 0.0
    %567 = vmatprep.subr.mxu0 0.0
    %568 = vmatpush2.msra.mxu0 0.0
    %569 = vmatprep.subr.mxu0 0.0
    %570 = vmatpush2.msra.mxu0 0.0
    %571 = vmatprep.subr.mxu0 0.0
    %572 = vmatpush2.msra.mxu0 0.0
    %573 = vmatprep.subr.mxu0 0.0
    %574 = vmatpush2.msra.mxu0 0.0
    %575 = vmatprep.subr.mxu0 0.0
    %576 = vmatpush2.msra.mxu0 0.0
    %577 = vmatprep.subr.mxu0 0.0
    %578 = vmatpush2.msra.mxu0 0.0
    %579 = vmatprep.subr.mxu0 0.0
    %580 = vmatpush2.msra.mxu0 0.0
    %581 = vmatprep.subr.mxu0 0.0
    %582 = vmatpush2.msra.mxu0 0.0
    %583 = vmatprep.subr.mxu0 0.0
    %584 = vmatpush2.msra.mxu0 0.0
    %585 = vmatprep.subr.mxu0 0.0
    %586 = vmatpush2.msra.mxu0 0.0
    %587 = vmatprep.subr.mxu0 0.0
    %588 = vmatpush2.msra.mxu0 0.0
    %589 = vmatprep.subr.mxu0 0.0
    %590 = vmatpush2.msra.mxu0 0.0
    %591 = vmatprep.subr.mxu0 0.0
    %592 = vmatpush2.msra.mxu0 0.0
    %593 = vmatprep.subr.mxu0 0.0
    %594 = vmatpush2.msra.mxu0 0.0
    %595 = vmatprep.mubr.f32.mxu0 0.0
    %596 = vmatmul.mubr.f32.gmra.mxu0 %v529
    %v597 = vpop.f32.mrf.mxu0
    %v598 = vadd.f32 0.0, %v597
    %v599 = vpop.f32.mrf.mxu0
    %600 = vdwg.mxu0
    %v602 = vrot.slane %v598, 6
    %v603 = vrot.slane %v598, 7
    %v606 = vadd.f32 %v226, %v602
    %v607 = vadd.f32 %v231, %v603
    %v608 = vxor.u32 %v606, 2147483648
    %v609 = vxor.u32 %v607, 2147483648
    %v610 = vmul.f32 %v608, 1.442695
    %v611 = vpow.pop %v610
    %v612 = vmul.f32 %v609, 1.442695
    %v613 = vpow.pop %v612
    %v614 = vadd.f32 %v611, 1.0
    %v615 = vadd.f32 %v613, 1.0
    %v616 = vrcp.pop %v614
    %v617 = vmul.f32 1.0, %v616
    %v618 = vrcp.pop %v615
    %v619 = vmul.f32 1.0, %v618
    %v620 = vtanh.pop %v606
    %v621 = vtanh.pop %v607
    %v624 = vrot.slane %v500, 7
    %v625 = vrot.slane %v501, 7
    %v628 = vmul.f32 %v617, %v624
    %v629 = vmul.f32 %v619, %v625
    %632 = vrot.lane.b32.xlu0 %v620, 64
    %v633 = vpop.permute.xlu0 %632
    %634 = vrot.lane.b32.xlu0 %v621, 64
    %v635 = vpop.permute.xlu0 %634
    %v638 = vmul.f32 %v617, %v633
    %v639 = vmul.f32 %v619, %v635
    %642 = vrot.lane.b32.xlu0 %v638, 32
    %v643 = vpop.permute.xlu0 %642
    %644 = vrot.lane.b32.xlu0 %v639, 32
    %v645 = vpop.permute.xlu0 %644
    %v648 = vadd.f32 %v628, %v643
    %v649 = vadd.f32 %v629, %v645
    %v650 = vtanh.pop %v648
    %v651 = vtanh.pop %v649
    %654 = vrot.lane.b32.xlu0 %v650, 64
    %v655 = vpop.permute.xlu0 %654
    %656 = vrot.lane.b32.xlu0 %v651, 64
    %v657 = vpop.permute.xlu0 %656
    %v660 = vmul.f32 %v617, %v655
    %v661 = vmul.f32 %v619, %v657
    %664 = vrot.lane.b32.xlu0 %v660, 32
    %v665 = vpop.permute.xlu0 %664
    %666 = vrot.lane.b32.xlu0 %v661, 32
    %v667 = vpop.permute.xlu0 %666
    %vm670 = vcmask 256002
    %671 = vst.msk [vmem:[#allocation2] sm:$0x4] %vm670, %v665
    %672 = vst.msk [vmem:[#allocation2 + $0x8] sm:$0x4] %vm670, %v667
    %v673 = vrot.slane %v660, 2
    %v674 = vrot.slane %v661, 1
    %v675 = vsel %vm378, %v674, %v673
    %676 = vrot.lane.b32.xlu0 %v675, 32
    %v677 = vpop.permute.xlu0 %676
    %v678 = vsel %vm238, %v677, 0
    %680 = vmatprep.subr.mxu0 0.0
    %681 = vmatpush1.msra.mxu0 0.0
    %682 = vmatprep.subr.mxu0 0.0
    %683 = vmatpush1.msra.mxu0 0.0
    %684 = vmatprep.subr.mxu0 0.0
    %685 = vmatpush1.msra.mxu0 0.0
    %686 = vmatprep.subr.mxu0 0.0
    %687 = vmatpush1.msra.mxu0 0.0
    %688 = vmatprep.subr.mxu0 0.0
    %689 = vmatpush1.msra.mxu0 0.0
    %690 = vmatprep.subr.mxu0 0.0
    %691 = vmatpush1.msra.mxu0 0.0
    %692 = vmatprep.subr.mxu0 0.0
    %693 = vmatpush1.msra.mxu0 0.0
    %694 = vmatprep.subr.mxu0 0.0
    %695 = vmatpush1.msra.mxu0 0.0
    %696 = vmatprep.subr.mxu0 0.0
    %697 = vmatpush1.msra.mxu0 0.0
    %698 = vmatprep.subr.mxu0 0.0
    %699 = vmatpush1.msra.mxu0 0.0
    %700 = vmatprep.subr.mxu0 0.0
    %701 = vmatpush1.msra.mxu0 0.0
    %702 = vmatprep.subr.mxu0 0.0
    %703 = vmatpush1.msra.mxu0 0.0
    %704 = vmatprep.subr.mxu0 0.0
    %705 = vmatpush1.msra.mxu0 %v237
    %706 = vmatprep.subr.mxu0 0.0
    %707 = vmatpush1.msra.mxu0 %v236
    %708 = vmatprep.subr.mxu0 0.0
    %709 = vmatpush1.msra.mxu0 %v235
    %710 = vmatprep.subr.mxu0 0.0
    %711 = vmatpush1.msra.mxu0 %v234
    %712 = vmatprep.subr.mxu0 0.0
    %713 = vmatpush2.msra.mxu0 0.0
    %714 = vmatprep.subr.mxu0 0.0
    %715 = vmatpush2.msra.mxu0 0.0
    %716 = vmatprep.subr.mxu0 0.0
    %717 = vmatpush2.msra.mxu0 0.0
    %718 = vmatprep.subr.mxu0 0.0
    %719 = vmatpush2.msra.mxu0 0.0
    %720 = vmatprep.subr.mxu0 0.0
    %721 = vmatpush2.msra.mxu0 0.0
    %722 = vmatprep.subr.mxu0 0.0
    %723 = vmatpush2.msra.mxu0 0.0
    %724 = vmatprep.subr.mxu0 0.0
    %725 = vmatpush2.msra.mxu0 0.0
    %726 = vmatprep.subr.mxu0 0.0
    %727 = vmatpush2.msra.mxu0 0.0
    %728 = vmatprep.subr.mxu0 0.0
    %729 = vmatpush2.msra.mxu0 0.0
    %730 = vmatprep.subr.mxu0 0.0
    %731 = vmatpush2.msra.mxu0 0.0
    %732 = vmatprep.subr.mxu0 0.0
    %733 = vmatpush2.msra.mxu0 0.0
    %734 = vmatprep.subr.mxu0 0.0
    %735 = vmatpush2.msra.mxu0 0.0
    %736 = vmatprep.subr.mxu0 0.0
    %737 = vmatpush2.msra.mxu0 0.0
    %738 = vmatprep.subr.mxu0 0.0
    %739 = vmatpush2.msra.mxu0 0.0
    %740 = vmatprep.subr.mxu0 0.0
    %741 = vmatpush2.msra.mxu0 0.0
    %742 = vmatprep.subr.mxu0 0.0
    %743 = vmatpush2.msra.mxu0 0.0
    %744 = vmatprep.mubr.f32.mxu0 0.0
    %745 = vmatmul.mubr.f32.gmra.mxu0 %v678
    %v746 = vpop.f32.mrf.mxu0
    %v747 = vadd.f32 0.0, %v746
    %v748 = vpop.f32.mrf.mxu0
    %749 = vdwg.mxu0
    %v751 = vrot.slane %v747, 5
    %v752 = vrot.slane %v747, 6
    %v755 = vadd.f32 %v226, %v751
    %v756 = vadd.f32 %v231, %v752
    %v757 = vxor.u32 %v755, 2147483648
    %v758 = vxor.u32 %v756, 2147483648
    %v759 = vmul.f32 %v757, 1.442695
    %v760 = vpow.pop %v759
    %v761 = vmul.f32 %v758, 1.442695
    %v762 = vpow.pop %v761
    %v763 = vadd.f32 %v760, 1.0
    %v764 = vadd.f32 %v762, 1.0
    %v765 = vrcp.pop %v763
    %v766 = vmul.f32 1.0, %v765
    %v767 = vrcp.pop %v764
    %v768 = vmul.f32 1.0, %v767
    %v769 = vtanh.pop %v755
    %v770 = vtanh.pop %v756
    %v773 = vrot.slane %v648, 7
    %v774 = vrot.slane %v649, 7
    %v777 = vmul.f32 %v766, %v773
    %v778 = vmul.f32 %v768, %v774
    %781 = vrot.lane.b32.xlu0 %v769, 64
    %v782 = vpop.permute.xlu0 %781
    %783 = vrot.lane.b32.xlu0 %v770, 64
    %v784 = vpop.permute.xlu0 %783
    %v787 = vmul.f32 %v766, %v782
    %v788 = vmul.f32 %v768, %v784
    %791 = vrot.lane.b32.xlu0 %v787, 32
    %v792 = vpop.permute.xlu0 %791
    %793 = vrot.lane.b32.xlu0 %v788, 32
    %v794 = vpop.permute.xlu0 %793
    %v797 = vadd.f32 %v777, %v792
    %v798 = vadd.f32 %v778, %v794
    %v799 = vtanh.pop %v797
    %v800 = vtanh.pop %v798
    %803 = vrot.lane.b32.xlu0 %v799, 64
    %v804 = vpop.permute.xlu0 %803
    %805 = vrot.lane.b32.xlu0 %v800, 64
    %v806 = vpop.permute.xlu0 %805
    %v809 = vmul.f32 %v766, %v804
    %v810 = vmul.f32 %v768, %v806
    %813 = vrot.lane.b32.xlu0 %v809, 32
    %v814 = vpop.permute.xlu0 %813
    %815 = vrot.lane.b32.xlu0 %v810, 32
    %v816 = vpop.permute.xlu0 %815
    %vm819 = vcmask 257027
    %820 = vst.msk [vmem:[#allocation2] sm:$0x8] %vm819, %v814
    %821 = vst.msk [vmem:[#allocation2 + $0x8] sm:$0x8] %vm819, %v816
    %v822 = vrot.slane %v809, 3
    %v823 = vrot.slane %v810, 2
    %v824 = vsel %vm378, %v823, %v822
    %825 = vrot.lane.b32.xlu0 %v824, 32
    %v826 = vpop.permute.xlu0 %825
    %v827 = vsel %vm238, %v826, 0
    %829 = vmatprep.subr.mxu0 0.0
    %830 = vmatpush1.msra.mxu0 0.0
    %831 = vmatprep.subr.mxu0 0.0
    %832 = vmatpush1.msra.mxu0 0.0
    %833 = vmatprep.subr.mxu0 0.0
    %834 = vmatpush1.msra.mxu0 0.0
    %835 = vmatprep.subr.mxu0 0.0
    %836 = vmatpush1.msra.mxu0 0.0
    %837 = vmatprep.subr.mxu0 0.0
    %838 = vmatpush1.msra.mxu0 0.0
    %839 = vmatprep.subr.mxu0 0.0
    %840 = vmatpush1.msra.mxu0 0.0
    %841 = vmatprep.subr.mxu0 0.0
    %842 = vmatpush1.msra.mxu0 0.0
    %843 = vmatprep.subr.mxu0 0.0
    %844 = vmatpush1.msra.mxu0 0.0
    %845 = vmatprep.subr.mxu0 0.0
    %846 = vmatpush1.msra.mxu0 0.0
    %847 = vmatprep.subr.mxu0 0.0
    %848 = vmatpush1.msra.mxu0 0.0
    %849 = vmatprep.subr.mxu0 0.0
    %850 = vmatpush1.msra.mxu0 0.0
    %851 = vmatprep.subr.mxu0 0.0
    %852 = vmatpush1.msra.mxu0 0.0
    %853 = vmatprep.subr.mxu0 0.0
    %854 = vmatpush1.msra.mxu0 %v237
    %855 = vmatprep.subr.mxu0 0.0
    %856 = vmatpush1.msra.mxu0 %v236
    %857 = vmatprep.subr.mxu0 0.0
    %858 = vmatpush1.msra.mxu0 %v235
    %859 = vmatprep.subr.mxu0 0.0
    %860 = vmatpush1.msra.mxu0 %v234
    %861 = vmatprep.subr.mxu0 0.0
    %862 = vmatpush2.msra.mxu0 0.0
    %863 = vmatprep.subr.mxu0 0.0
    %864 = vmatpush2.msra.mxu0 0.0
    %865 = vmatprep.subr.mxu0 0.0
    %866 = vmatpush2.msra.mxu0 0.0
    %867 = vmatprep.subr.mxu0 0.0
    %868 = vmatpush2.msra.mxu0 0.0
    %869 = vmatprep.subr.mxu0 0.0
    %870 = vmatpush2.msra.mxu0 0.0
    %871 = vmatprep.subr.mxu0 0.0
    %872 = vmatpush2.msra.mxu0 0.0
    %873 = vmatprep.subr.mxu0 0.0
    %874 = vmatpush2.msra.mxu0 0.0
    %875 = vmatprep.subr.mxu0 0.0
    %876 = vmatpush2.msra.mxu0 0.0
    %877 = vmatprep.subr.mxu0 0.0
    %878 = vmatpush2.msra.mxu0 0.0
    %879 = vmatprep.subr.mxu0 0.0
    %880 = vmatpush2.msra.mxu0 0.0
    %881 = vmatprep.subr.mxu0 0.0
    %882 = vmatpush2.msra.mxu0 0.0
    %883 = vmatprep.subr.mxu0 0.0
    %884 = vmatpush2.msra.mxu0 0.0
    %885 = vmatprep.subr.mxu0 0.0
    %886 = vmatpush2.msra.mxu0 0.0
    %887 = vmatprep.subr.mxu0 0.0
    %888 = vmatpush2.msra.mxu0 0.0
    %889 = vmatprep.subr.mxu0 0.0
    %890 = vmatpush2.msra.mxu0 0.0
    %891 = vmatprep.subr.mxu0 0.0
    %892 = vmatpush2.msra.mxu0 0.0
    %893 = vmatprep.mubr.f32.mxu0 0.0
    %894 = vmatmul.mubr.f32.gmra.mxu0 %v827
    %v895 = vpop.f32.mrf.mxu0
    %v896 = vadd.f32 0.0, %v895
    %v897 = vpop.f32.mrf.mxu0
    %898 = vdwg.mxu0
    %v900 = vrot.slane %v896, 4
    %v901 = vrot.slane %v896, 5
    %v904 = vadd.f32 %v226, %v900
    %v905 = vadd.f32 %v231, %v901
    %v906 = vxor.u32 %v904, 2147483648
    %v907 = vxor.u32 %v905, 2147483648
    %v908 = vmul.f32 %v906, 1.442695
    %v909 = vpow.pop %v908
    %v910 = vmul.f32 %v907, 1.442695
    %v911 = vpow.pop %v910
    %v912 = vadd.f32 %v909, 1.0
    %v913 = vadd.f32 %v911, 1.0
    %v914 = vrcp.pop %v912
    %v915 = vmul.f32 1.0, %v914
    %v916 = vrcp.pop %v913
    %v917 = vmul.f32 1.0, %v916
    %v918 = vtanh.pop %v904
    %v919 = vtanh.pop %v905
    %v922 = vrot.slane %v797, 7
    %v923 = vrot.slane %v798, 7
    %v926 = vmul.f32 %v915, %v922
    %v927 = vmul.f32 %v917, %v923
    %930 = vrot.lane.b32.xlu0 %v918, 64
    %v931 = vpop.permute.xlu0 %930
    %932 = vrot.lane.b32.xlu0 %v919, 64
    %v933 = vpop.permute.xlu0 %932
    %v936 = vmul.f32 %v915, %v931
    %v937 = vmul.f32 %v917, %v933
    %940 = vrot.lane.b32.xlu0 %v936, 32
    %v941 = vpop.permute.xlu0 %940
    %942 = vrot.lane.b32.xlu0 %v937, 32
    %v943 = vpop.permute.xlu0 %942
    %v946 = vadd.f32 %v926, %v941
    %v947 = vadd.f32 %v927, %v943
    %v948 = vtanh.pop %v946
    %v949 = vtanh.pop %v947
    %952 = vrot.lane.b32.xlu0 %v948, 64
    %v953 = vpop.permute.xlu0 %952
    %954 = vrot.lane.b32.xlu0 %v949, 64
    %v955 = vpop.permute.xlu0 %954
    %v958 = vmul.f32 %v915, %v953
    %v959 = vmul.f32 %v917, %v955
    %962 = vrot.lane.b32.xlu0 %v958, 32
    %v963 = vpop.permute.xlu0 %962
    %964 = vrot.lane.b32.xlu0 %v959, 32
    %v965 = vpop.permute.xlu0 %964
    %vm968 = vcmask 258052
    %969 = vst.msk [vmem:[#allocation2] sm:$0x10] %vm968, %v963
    %970 = vst.msk [vmem:[#allocation2 + $0x8] sm:$0x10] %vm968, %v965
    %v971 = vrot.slane %v958, 4
    %v972 = vrot.slane %v959, 3
    %v973 = vsel %vm378, %v972, %v971
    %974 = vrot.lane.b32.xlu0 %v973, 32
    %v975 = vpop.permute.xlu0 %974
    %v976 = vsel %vm238, %v975, 0
    %978 = vmatprep.subr.mxu0 0.0
    %979 = vmatpush1.msra.mxu0 0.0
    %980 = vmatprep.subr.mxu0 0.0
    %981 = vmatpush1.msra.mxu0 0.0
    %982 = vmatprep.subr.mxu0 0.0
    %983 = vmatpush1.msra.mxu0 0.0
    %984 = vmatprep.subr.mxu0 0.0
    %985 = vmatpush1.msra.mxu0 0.0
    %986 = vmatprep.subr.mxu0 0.0
    %987 = vmatpush1.msra.mxu0 0.0
    %988 = vmatprep.subr.mxu0 0.0
    %989 = vmatpush1.msra.mxu0 0.0
    %990 = vmatprep.subr.mxu0 0.0
    %991 = vmatpush1.msra.mxu0 0.0
    %992 = vmatprep.subr.mxu0 0.0
    %993 = vmatpush1.msra.mxu0 0.0
    %994 = vmatprep.subr.mxu0 0.0
    %995 = vmatpush1.msra.mxu0 0.0
    %996 = vmatprep.subr.mxu0 0.0
    %997 = vmatpush1.msra.mxu0 0.0
    %998 = vmatprep.subr.mxu0 0.0
    %999 = vmatpush1.msra.mxu0 0.0
    %1000 = vmatprep.subr.mxu0 0.0
    %1001 = vmatpush1.msra.mxu0 0.0
    %1002 = vmatprep.subr.mxu0 0.0
    %1003 = vmatpush1.msra.mxu0 %v237
    %1004 = vmatprep.subr.mxu0 0.0
    %1005 = vmatpush1.msra.mxu0 %v236
    %1006 = vmatprep.subr.mxu0 0.0
    %1007 = vmatpush1.msra.mxu0 %v235
    %1008 = vmatprep.subr.mxu0 0.0
    %1009 = vmatpush1.msra.mxu0 %v234
    %1010 = vmatprep.subr.mxu0 0.0
    %1011 = vmatpush2.msra.mxu0 0.0
    %1012 = vmatprep.subr.mxu0 0.0
    %1013 = vmatpush2.msra.mxu0 0.0
    %1014 = vmatprep.subr.mxu0 0.0
    %1015 = vmatpush2.msra.mxu0 0.0
    %1016 = vmatprep.subr.mxu0 0.0
    %1017 = vmatpush2.msra.mxu0 0.0
    %1018 = vmatprep.subr.mxu0 0.0
    %1019 = vmatpush2.msra.mxu0 0.0
    %1020 = vmatprep.subr.mxu0 0.0
    %1021 = vmatpush2.msra.mxu0 0.0
    %1022 = vmatprep.subr.mxu0 0.0
    %1023 = vmatpush2.msra.mxu0 0.0
    %1024 = vmatprep.subr.mxu0 0.0
    %1025 = vmatpush2.msra.mxu0 0.0
    %1026 = vmatprep.subr.mxu0 0.0
    %1027 = vmatpush2.msra.mxu0 0.0
    %1028 = vmatprep.subr.mxu0 0.0
    %1029 = vmatpush2.msra.mxu0 0.0
    %1030 = vmatprep.subr.mxu0 0.0
    %1031 = vmatpush2.msra.mxu0 0.0
    %1032 = vmatprep.subr.mxu0 0.0
    %1033 = vmatpush2.msra.mxu0 0.0
    %1034 = vmatprep.subr.mxu0 0.0
    %1035 = vmatpush2.msra.mxu0 0.0
    %1036 = vmatprep.subr.mxu0 0.0
    %1037 = vmatpush2.msra.mxu0 0.0
    %1038 = vmatprep.subr.mxu0 0.0
    %1039 = vmatpush2.msra.mxu0 0.0
    %1040 = vmatprep.subr.mxu0 0.0
    %1041 = vmatpush2.msra.mxu0 0.0
    %1042 = vmatprep.mubr.f32.mxu0 0.0
    %1043 = vmatmul.mubr.f32.gmra.mxu0 %v976
    %v1044 = vpop.f32.mrf.mxu0
    %v1045 = vadd.f32 0.0, %v1044
    %v1046 = vpop.f32.mrf.mxu0
    %1047 = vdwg.mxu0
    %v1049 = vrot.slane %v1045, 3
    %v1050 = vrot.slane %v1045, 4
    %v1053 = vadd.f32 %v226, %v1049
    %v1054 = vadd.f32 %v231, %v1050
    %v1055 = vxor.u32 %v1053, 2147483648
    %v1056 = vxor.u32 %v1054, 2147483648
    %v1057 = vmul.f32 %v1055, 1.442695
    %v1058 = vpow.pop %v1057
    %v1059 = vmul.f32 %v1056, 1.442695
    %v1060 = vpow.pop %v1059
    %v1061 = vadd.f32 %v1058, 1.0
    %v1062 = vadd.f32 %v1060, 1.0
    %v1063 = vrcp.pop %v1061
    %v1064 = vmul.f32 1.0, %v1063
    %v1065 = vrcp.pop %v1062
    %v1066 = vmul.f32 1.0, %v1065
    %v1067 = vtanh.pop %v1053
    %v1068 = vtanh.pop %v1054
    %v1071 = vrot.slane %v946, 7
    %v1072 = vrot.slane %v947, 7
    %v1075 = vmul.f32 %v1064, %v1071
    %v1076 = vmul.f32 %v1066, %v1072
    %1079 = vrot.lane.b32.xlu0 %v1067, 64
    %v1080 = vpop.permute.xlu0 %1079
    %1081 = vrot.lane.b32.xlu0 %v1068, 64
    %v1082 = vpop.permute.xlu0 %1081
    %v1085 = vmul.f32 %v1064, %v1080
    %v1086 = vmul.f32 %v1066, %v1082
    %1089 = vrot.lane.b32.xlu0 %v1085, 32
    %v1090 = vpop.permute.xlu0 %1089
    %1091 = vrot.lane.b32.xlu0 %v1086, 32
    %v1092 = vpop.permute.xlu0 %1091
    %v1095 = vadd.f32 %v1075, %v1090
    %v1096 = vadd.f32 %v1076, %v1092
    %v1097 = vtanh.pop %v1095
    %v1098 = vtanh.pop %v1096
    %1101 = vrot.lane.b32.xlu0 %v1097, 64
    %v1102 = vpop.permute.xlu0 %1101
    %1103 = vrot.lane.b32.xlu0 %v1098, 64
    %v1104 = vpop.permute.xlu0 %1103
    %v1107 = vmul.f32 %v1064, %v1102
    %v1108 = vmul.f32 %v1066, %v1104
    %1111 = vrot.lane.b32.xlu0 %v1107, 32
    %v1112 = vpop.permute.xlu0 %1111
    %1113 = vrot.lane.b32.xlu0 %v1108, 32
    %v1114 = vpop.permute.xlu0 %1113
    %vm1117 = vcmask 259077
    %1118 = vst.msk [vmem:[#allocation2] sm:$0x20] %vm1117, %v1112
    %1119 = vst.msk [vmem:[#allocation2 + $0x8] sm:$0x20] %vm1117, %v1114
    %v1120 = vrot.slane %v1107, 5
    %v1121 = vrot.slane %v1108, 4
    %v1122 = vsel %vm378, %v1121, %v1120
    %1123 = vrot.lane.b32.xlu0 %v1122, 32
    %v1124 = vpop.permute.xlu0 %1123
    %v1125 = vsel %vm238, %v1124, 0
    %1127 = vmatprep.subr.mxu0 0.0
    %1128 = vmatpush1.msra.mxu0 0.0
    %1129 = vmatprep.subr.mxu0 0.0
    %1130 = vmatpush1.msra.mxu0 0.0
    %1131 = vmatprep.subr.mxu0 0.0
    %1132 = vmatpush1.msra.mxu0 0.0
    %1133 = vmatprep.subr.mxu0 0.0
    %1134 = vmatpush1.msra.mxu0 0.0
    %1135 = vmatprep.subr.mxu0 0.0
    %1136 = vmatpush1.msra.mxu0 0.0
    %1137 = vmatprep.subr.mxu0 0.0
    %1138 = vmatpush1.msra.mxu0 0.0
    %1139 = vmatprep.subr.mxu0 0.0
    %1140 = vmatpush1.msra.mxu0 0.0
    %1141 = vmatprep.subr.mxu0 0.0
    %1142 = vmatpush1.msra.mxu0 0.0
    %1143 = vmatprep.subr.mxu0 0.0
    %1144 = vmatpush1.msra.mxu0 0.0
    %1145 = vmatprep.subr.mxu0 0.0
    %1146 = vmatpush1.msra.mxu0 0.0
    %1147 = vmatprep.subr.mxu0 0.0
    %1148 = vmatpush1.msra.mxu0 0.0
    %1149 = vmatprep.subr.mxu0 0.0
    %1150 = vmatpush1.msra.mxu0 0.0
    %1151 = vmatprep.subr.mxu0 0.0
    %1152 = vmatpush1.msra.mxu0 %v237
    %1153 = vmatprep.subr.mxu0 0.0
    %1154 = vmatpush1.msra.mxu0 %v236
    %1155 = vmatprep.subr.mxu0 0.0
    %1156 = vmatpush1.msra.mxu0 %v235
    %1157 = vmatprep.subr.mxu0 0.0
    %1158 = vmatpush1.msra.mxu0 %v234
    %1159 = vmatprep.subr.mxu0 0.0
    %1160 = vmatpush2.msra.mxu0 0.0
    %1161 = vmatprep.subr.mxu0 0.0
    %1162 = vmatpush2.msra.mxu0 0.0
    %1163 = vmatprep.subr.mxu0 0.0
    %1164 = vmatpush2.msra.mxu0 0.0
    %1165 = vmatprep.subr.mxu0 0.0
    %1166 = vmatpush2.msra.mxu0 0.0
    %1167 = vmatprep.subr.mxu0 0.0
    %1168 = vmatpush2.msra.mxu0 0.0
    %1169 = vmatprep.subr.mxu0 0.0
    %1170 = vmatpush2.msra.mxu0 0.0
    %1171 = vmatprep.subr.mxu0 0.0
    %1172 = vmatpush2.msra.mxu0 0.0
    %1173 = vmatprep.subr.mxu0 0.0
    %1174 = vmatpush2.msra.mxu0 0.0
    %1175 = vmatprep.subr.mxu0 0.0
    %1176 = vmatpush2.msra.mxu0 0.0
    %1177 = vmatprep.subr.mxu0 0.0
    %1178 = vmatpush2.msra.mxu0 0.0
    %1179 = vmatprep.subr.mxu0 0.0
    %1180 = vmatpush2.msra.mxu0 0.0
    %1181 = vmatprep.subr.mxu0 0.0
    %1182 = vmatpush2.msra.mxu0 0.0
    %1183 = vmatprep.subr.mxu0 0.0
    %1184 = vmatpush2.msra.mxu0 0.0
    %1185 = vmatprep.subr.mxu0 0.0
    %1186 = vmatpush2.msra.mxu0 0.0
    %1187 = vmatprep.subr.mxu0 0.0
    %1188 = vmatpush2.msra.mxu0 0.0
    %1189 = vmatprep.subr.mxu0 0.0
    %1190 = vmatpush2.msra.mxu0 0.0
    %1191 = vmatprep.mubr.f32.mxu0 0.0
    %1192 = vmatmul.mubr.f32.gmra.mxu0 %v1125
    %v1193 = vpop.f32.mrf.mxu0
    %v1194 = vadd.f32 0.0, %v1193
    %v1195 = vpop.f32.mrf.mxu0
    %1196 = vdwg.mxu0
    %v1198 = vrot.slane %v1194, 2
    %v1199 = vrot.slane %v1194, 3
    %v1202 = vadd.f32 %v226, %v1198
    %v1203 = vadd.f32 %v231, %v1199
    %v1204 = vxor.u32 %v1202, 2147483648
    %v1205 = vxor.u32 %v1203, 2147483648
    %v1206 = vmul.f32 %v1204, 1.442695
    %v1207 = vpow.pop %v1206
    %v1208 = vmul.f32 %v1205, 1.442695
    %v1209 = vpow.pop %v1208
    %v1210 = vadd.f32 %v1207, 1.0
    %v1211 = vadd.f32 %v1209, 1.0
    %v1212 = vrcp.pop %v1210
    %v1213 = vmul.f32 1.0, %v1212
    %v1214 = vrcp.pop %v1211
    %v1215 = vmul.f32 1.0, %v1214
    %v1216 = vtanh.pop %v1202
    %v1217 = vtanh.pop %v1203
    %v1220 = vrot.slane %v1095, 7
    %v1221 = vrot.slane %v1096, 7
    %v1224 = vmul.f32 %v1213, %v1220
    %v1225 = vmul.f32 %v1215, %v1221
    %1228 = vrot.lane.b32.xlu0 %v1216, 64
    %v1229 = vpop.permute.xlu0 %1228
    %1230 = vrot.lane.b32.xlu0 %v1217, 64
    %v1231 = vpop.permute.xlu0 %1230
    %v1234 = vmul.f32 %v1213, %v1229
    %v1235 = vmul.f32 %v1215, %v1231
    %1238 = vrot.lane.b32.xlu0 %v1234, 32
    %v1239 = vpop.permute.xlu0 %1238
    %1240 = vrot.lane.b32.xlu0 %v1235, 32
    %v1241 = vpop.permute.xlu0 %1240
    %v1244 = vadd.f32 %v1224, %v1239
    %v1245 = vadd.f32 %v1225, %v1241
    %v1246 = vtanh.pop %v1244
    %v1247 = vtanh.pop %v1245
    %1250 = vrot.lane.b32.xlu0 %v1246, 64
    %v1251 = vpop.permute.xlu0 %1250
    %1252 = vrot.lane.b32.xlu0 %v1247, 64
    %v1253 = vpop.permute.xlu0 %1252
    %v1256 = vmul.f32 %v1213, %v1251
    %v1257 = vmul.f32 %v1215, %v1253
    %1260 = vrot.lane.b32.xlu0 %v1256, 32
    %v1261 = vpop.permute.xlu0 %1260
    %1262 = vrot.lane.b32.xlu0 %v1257, 32
    %v1263 = vpop.permute.xlu0 %1262
    %vm1266 = vcmask 260102
    %1267 = vst.msk [vmem:[#allocation2] sm:$0x40] %vm1266, %v1261
    %1268 = vst.msk [vmem:[#allocation2 + $0x8] sm:$0x40] %vm1266, %v1263
    %v1269 = vrot.slane %v1256, 6
    %v1270 = vrot.slane %v1257, 5
    %v1271 = vsel %vm378, %v1270, %v1269
    %1272 = vrot.lane.b32.xlu0 %v1271, 32
    %v1273 = vpop.permute.xlu0 %1272
    %v1274 = vsel %vm238, %v1273, 0
    %1276 = vmatprep.subr.mxu0 0.0
    %1277 = vmatpush1.msra.mxu0 0.0
    %1278 = vmatprep.subr.mxu0 0.0
    %1279 = vmatpush1.msra.mxu0 0.0
    %1280 = vmatprep.subr.mxu0 0.0
    %1281 = vmatpush1.msra.mxu0 0.0
    %1282 = vmatprep.subr.mxu0 0.0
    %1283 = vmatpush1.msra.mxu0 0.0
    %1284 = vmatprep.subr.mxu0 0.0
    %1285 = vmatpush1.msra.mxu0 0.0
    %1286 = vmatprep.subr.mxu0 0.0
    %1287 = vmatpush1.msra.mxu0 0.0
    %1288 = vmatprep.subr.mxu0 0.0
    %1289 = vmatpush1.msra.mxu0 0.0
    %1290 = vmatprep.subr.mxu0 0.0
    %1291 = vmatpush1.msra.mxu0 0.0
    %1292 = vmatprep.subr.mxu0 0.0
    %1293 = vmatpush1.msra.mxu0 0.0
    %1294 = vmatprep.subr.mxu0 0.0
    %1295 = vmatpush1.msra.mxu0 0.0
    %1296 = vmatprep.subr.mxu0 0.0
    %1297 = vmatpush1.msra.mxu0 0.0
    %1298 = vmatprep.subr.mxu0 0.0
    %1299 = vmatpush1.msra.mxu0 0.0
    %1300 = vmatprep.subr.mxu0 0.0
    %1301 = vmatpush1.msra.mxu0 %v237
    %1302 = vmatprep.subr.mxu0 0.0
    %1303 = vmatpush1.msra.mxu0 %v236
    %1304 = vmatprep.subr.mxu0 0.0
    %1305 = vmatpush1.msra.mxu0 %v235
    %1306 = vmatprep.subr.mxu0 0.0
    %1307 = vmatpush1.msra.mxu0 %v234
    %1308 = vmatprep.subr.mxu0 0.0
    %1309 = vmatpush2.msra.mxu0 0.0
    %1310 = vmatprep.subr.mxu0 0.0
    %1311 = vmatpush2.msra.mxu0 0.0
    %1312 = vmatprep.subr.mxu0 0.0
    %1313 = vmatpush2.msra.mxu0 0.0
    %1314 = vmatprep.subr.mxu0 0.0
    %1315 = vmatpush2.msra.mxu0 0.0
    %1316 = vmatprep.subr.mxu0 0.0
    %1317 = vmatpush2.msra.mxu0 0.0
    %1318 = vmatprep.subr.mxu0 0.0
    %1319 = vmatpush2.msra.mxu0 0.0
    %1320 = vmatprep.subr.mxu0 0.0
    %1321 = vmatpush2.msra.mxu0 0.0
    %1322 = vmatprep.subr.mxu0 0.0
    %1323 = vmatpush2.msra.mxu0 0.0
    %1324 = vmatprep.subr.mxu0 0.0
    %1325 = vmatpush2.msra.mxu0 0.0
    %1326 = vmatprep.subr.mxu0 0.0
    %1327 = vmatpush2.msra.mxu0 0.0
    %1328 = vmatprep.subr.mxu0 0.0
    %1329 = vmatpush2.msra.mxu0 0.0
    %1330 = vmatprep.subr.mxu0 0.0
    %1331 = vmatpush2.msra.mxu0 0.0
    %1332 = vmatprep.subr.mxu0 0.0
    %1333 = vmatpush2.msra.mxu0 0.0
    %1334 = vmatprep.subr.mxu0 0.0
    %1335 = vmatpush2.msra.mxu0 0.0
    %1336 = vmatprep.subr.mxu0 0.0
    %1337 = vmatpush2.msra.mxu0 0.0
    %1338 = vmatprep.subr.mxu0 0.0
    %1339 = vmatpush2.msra.mxu0 0.0
    %1340 = vmatprep.mubr.f32.mxu0 0.0
    %1341 = vmatmul.mubr.f32.gmra.mxu0 %v1274
    %v1342 = vpop.f32.mrf.mxu0
    %v1343 = vadd.f32 0.0, %v1342
    %v1344 = vpop.f32.mrf.mxu0
    %1345 = vdwg.mxu0
    %v1347 = vrot.slane %v1343, 1
    %v1348 = vrot.slane %v1343, 2
    %v1351 = vadd.f32 %v226, %v1347
    %v1352 = vadd.f32 %v231, %v1348
    %v1353 = vxor.u32 %v1351, 2147483648
    %v1354 = vxor.u32 %v1352, 2147483648
    %v1355 = vmul.f32 %v1353, 1.442695
    %v1356 = vpow.pop %v1355
    %v1357 = vmul.f32 %v1354, 1.442695
    %v1358 = vpow.pop %v1357
    %v1359 = vadd.f32 %v1356, 1.0
    %v1360 = vadd.f32 %v1358, 1.0
    %v1361 = vrcp.pop %v1359
    %v1362 = vmul.f32 1.0, %v1361
    %v1363 = vrcp.pop %v1360
    %v1364 = vmul.f32 1.0, %v1363
    %v1365 = vtanh.pop %v1351
    %v1366 = vtanh.pop %v1352
    %v1369 = vrot.slane %v1244, 7
    %v1370 = vrot.slane %v1245, 7
    %v1373 = vmul.f32 %v1362, %v1369
    %v1374 = vmul.f32 %v1364, %v1370
    %1377 = vrot.lane.b32.xlu0 %v1365, 64
    %v1378 = vpop.permute.xlu0 %1377
    %1379 = vrot.lane.b32.xlu0 %v1366, 64
    %v1380 = vpop.permute.xlu0 %1379
    %v1383 = vmul.f32 %v1362, %v1378
    %v1384 = vmul.f32 %v1364, %v1380
    %1387 = vrot.lane.b32.xlu0 %v1383, 32
    %v1388 = vpop.permute.xlu0 %1387
    %1389 = vrot.lane.b32.xlu0 %v1384, 32
    %v1390 = vpop.permute.xlu0 %1389
    %v1393 = vadd.f32 %v1373, %v1388
    %v1394 = vadd.f32 %v1374, %v1390
    %v1395 = vtanh.pop %v1393
    %v1396 = vtanh.pop %v1394
    %1399 = vrot.lane.b32.xlu0 %v1395, 64
    %v1400 = vpop.permute.xlu0 %1399
    %1401 = vrot.lane.b32.xlu0 %v1396, 64
    %v1402 = vpop.permute.xlu0 %1401
    %v1405 = vmul.f32 %v1362, %v1400
    %v1406 = vmul.f32 %v1364, %v1402
    %1409 = vrot.lane.b32.xlu0 %v1405, 32
    %v1410 = vpop.permute.xlu0 %1409
    %1411 = vrot.lane.b32.xlu0 %v1406, 32
    %v1412 = vpop.permute.xlu0 %1411
    %vm1415 = vcmask 261127
    %1416 = vst.msk [vmem:[#allocation2] sm:$0x80] %vm1415, %v1410
    %1417 = vst.msk [vmem:[#allocation2 + $0x8] sm:$0x80] %vm1415, %v1412
    %v1418 = vld [vmem:[#allocation2] sm:$0xff]
    %v1419 = vld [vmem:[#allocation2 + $0x8] sm:$0xff]
    %v1420 = vld [vmem:[#allocation7] sm:$0xff]
    %v1421 = vld [vmem:[#allocation7 + $0x8] sm:$0xff]
    %v1422 = vld [vmem:[#allocation7 + $0x10] sm:$0xff]
    %v1423 = vld [vmem:[#allocation7 + $0x18] sm:$0xff]
    %v1424 = vld [vmem:[#allocation10] sm:$0x1]
    %v1426 = vlaneseq
    %v1427 = vshrl.u32 %v1426, 7
    %v1428 = vsub.s32 0, %v1427
    %v1429 = vrot.slane %v1424, %v1428
    %v1432 = vsel %vm238, %v1418, 0
    %v1435 = vsel %vm238, %v1419, 0
    %1437 = vmatprep.subr.mxu0 0.0
    %1438 = vmatpush1.msra.mxu0 0.0
    %1439 = vmatprep.subr.mxu0 0.0
    %1440 = vmatpush1.msra.mxu0 0.0
    %1441 = vmatprep.subr.mxu0 0.0
    %1442 = vmatpush1.msra.mxu0 0.0
    %1443 = vmatprep.subr.mxu0 0.0
    %1444 = vmatpush1.msra.mxu0 0.0
    %1445 = vmatprep.subr.mxu0 0.0
    %1446 = vmatpush1.msra.mxu0 0.0
    %1447 = vmatprep.subr.mxu0 0.0
    %1448 = vmatpush1.msra.mxu0 0.0
    %1449 = vmatprep.subr.mxu0 0.0
    %1450 = vmatpush1.msra.mxu0 0.0
    %1451 = vmatprep.subr.mxu0 0.0
    %1452 = vmatpush1.msra.mxu0 0.0
    %1453 = vmatprep.subr.mxu0 0.0
    %1454 = vmatpush1.msra.mxu0 0.0
    %1455 = vmatprep.subr.mxu0 0.0
    %1456 = vmatpush1.msra.mxu0 0.0
    %1457 = vmatprep.subr.mxu0 0.0
    %1458 = vmatpush1.msra.mxu0 0.0
    %1459 = vmatprep.subr.mxu0 0.0
    %1460 = vmatpush1.msra.mxu0 0.0
    %1461 = vmatprep.subr.mxu0 0.0
    %1462 = vmatpush1.msra.mxu0 %v1423
    %1463 = vmatprep.subr.mxu0 0.0
    %1464 = vmatpush1.msra.mxu0 %v1422
    %1465 = vmatprep.subr.mxu0 0.0
    %1466 = vmatpush1.msra.mxu0 %v1421
    %1467 = vmatprep.subr.mxu0 0.0
    %1468 = vmatpush1.msra.mxu0 %v1420
    %1469 = vmatprep.subr.mxu0 0.0
    %1470 = vmatpush2.msra.mxu0 0.0
    %1471 = vmatprep.subr.mxu0 0.0
    %1472 = vmatpush2.msra.mxu0 0.0
    %1473 = vmatprep.subr.mxu0 0.0
    %1474 = vmatpush2.msra.mxu0 0.0
    %1475 = vmatprep.subr.mxu0 0.0
    %1476 = vmatpush2.msra.mxu0 0.0
    %1477 = vmatprep.subr.mxu0 0.0
    %1478 = vmatpush2.msra.mxu0 0.0
    %1479 = vmatprep.subr.mxu0 0.0
    %1480 = vmatpush2.msra.mxu0 0.0
    %1481 = vmatprep.subr.mxu0 0.0
    %1482 = vmatpush2.msra.mxu0 0.0
    %1483 = vmatprep.subr.mxu0 0.0
    %1484 = vmatpush2.msra.mxu0 0.0
    %1485 = vmatprep.subr.mxu0 0.0
    %1486 = vmatpush2.msra.mxu0 0.0
    %1487 = vmatprep.subr.mxu0 0.0
    %1488 = vmatpush2.msra.mxu0 0.0
    %1489 = vmatprep.subr.mxu0 0.0
    %1490 = vmatpush2.msra.mxu0 0.0
    %1491 = vmatprep.subr.mxu0 0.0
    %1492 = vmatpush2.msra.mxu0 0.0
    %1493 = vmatprep.subr.mxu0 0.0
    %1494 = vmatpush2.msra.mxu0 0.0
    %1495 = vmatprep.subr.mxu0 0.0
    %1496 = vmatpush2.msra.mxu0 0.0
    %1497 = vmatprep.subr.mxu0 0.0
    %1498 = vmatpush2.msra.mxu0 0.0
    %1499 = vmatprep.subr.mxu0 0.0
    %1500 = vmatpush2.msra.mxu0 0.0
    %1501 = vmatprep.mubr.f32.mxu0 0.0
    %1502 = vmatmul.mubr.f32.gmra.mxu0 %v1432
    %v1503 = vpop.f32.mrf.mxu0
    %v1504 = vadd.f32 %v1429, %v1503
    %v1505 = vpop.f32.mrf.mxu0
    %1506 = vmatprep.mubr.f32.mxu0 0.0
    %1507 = vmatmul.mubr.f32.gmra.mxu0 %v1435
    %v1508 = vpop.f32.mrf.mxu0
    %v1509 = vadd.f32 %v1429, %v1508
    %v1510 = vpop.f32.mrf.mxu0
    %1511 = vdwg.mxu0
    %v1512 = vld [vmem:[#allocation8] sm:$0xff]
    %v1513 = vld [vmem:[#allocation8 + $0x8] sm:$0xff]
    %v1514 = vld [vmem:[#allocation8 + $0x10] sm:$0xff]
    %v1515 = vld [vmem:[#allocation8 + $0x18] sm:$0xff]
    %1516 = vmatprep.subr.mxu0 0.0
    %1517 = vmatpush1.msra.mxu0 0.0
    %1518 = vmatprep.subr.mxu0 0.0
    %1519 = vmatpush1.msra.mxu0 0.0
    %1520 = vmatprep.subr.mxu0 0.0
    %1521 = vmatpush1.msra.mxu0 0.0
    %1522 = vmatprep.subr.mxu0 0.0
    %1523 = vmatpush1.msra.mxu0 0.0
    %1524 = vmatprep.subr.mxu0 0.0
    %1525 = vmatpush1.msra.mxu0 0.0
    %1526 = vmatprep.subr.mxu0 0.0
    %1527 = vmatpush1.msra.mxu0 0.0
    %1528 = vmatprep.subr.mxu0 0.0
    %1529 = vmatpush1.msra.mxu0 0.0
    %1530 = vmatprep.subr.mxu0 0.0
    %1531 = vmatpush1.msra.mxu0 0.0
    %1532 = vmatprep.subr.mxu0 0.0
    %1533 = vmatpush1.msra.mxu0 0.0
    %1534 = vmatprep.subr.mxu0 0.0
    %1535 = vmatpush1.msra.mxu0 0.0
    %1536 = vmatprep.subr.mxu0 0.0
    %1537 = vmatpush1.msra.mxu0 0.0
    %1538 = vmatprep.subr.mxu0 0.0
    %1539 = vmatpush1.msra.mxu0 0.0
    %1540 = vmatprep.subr.mxu0 0.0
    %1541 = vmatpush1.msra.mxu0 %v1515
    %1542 = vmatprep.subr.mxu0 0.0
    %1543 = vmatpush1.msra.mxu0 %v1514
    %1544 = vmatprep.subr.mxu0 0.0
    %1545 = vmatpush1.msra.mxu0 %v1513
    %1546 = vmatprep.subr.mxu0 0.0
    %1547 = vmatpush1.msra.mxu0 %v1512
    %1548 = vmatprep.subr.mxu0 0.0
    %1549 = vmatpush2.msra.mxu0 0.0
    %1550 = vmatprep.subr.mxu0 0.0
    %1551 = vmatpush2.msra.mxu0 0.0
    %1552 = vmatprep.subr.mxu0 0.0
    %1553 = vmatpush2.msra.mxu0 0.0
    %1554 = vmatprep.subr.mxu0 0.0
    %1555 = vmatpush2.msra.mxu0 0.0
    %1556 = vmatprep.subr.mxu0 0.0
    %1557 = vmatpush2.msra.mxu0 0.0
    %1558 = vmatprep.subr.mxu0 0.0
    %1559 = vmatpush2.msra.mxu0 0.0
    %1560 = vmatprep.subr.mxu0 0.0
    %1561 = vmatpush2.msra.mxu0 0.0
    %1562 = vmatprep.subr.mxu0 0.0
    %1563 = vmatpush2.msra.mxu0 0.0
    %1564 = vmatprep.subr.mxu0 0.0
    %1565 = vmatpush2.msra.mxu0 0.0
    %1566 = vmatprep.subr.mxu0 0.0
    %1567 = vmatpush2.msra.mxu0 0.0
    %1568 = vmatprep.subr.mxu0 0.0
    %1569 = vmatpush2.msra.mxu0 0.0
    %1570 = vmatprep.subr.mxu0 0.0
    %1571 = vmatpush2.msra.mxu0 0.0
    %1572 = vmatprep.subr.mxu0 0.0
    %1573 = vmatpush2.msra.mxu0 0.0
    %1574 = vmatprep.subr.mxu0 0.0
    %1575 = vmatpush2.msra.mxu0 0.0
    %1576 = vmatprep.subr.mxu0 0.0
    %1577 = vmatpush2.msra.mxu0 0.0
    %1578 = vmatprep.subr.mxu0 0.0
    %1579 = vmatpush2.msra.mxu0 0.0
    %1580 = vmatprep.mubr.f32.mxu0 0.0
    %1581 = vmatmul.mubr.f32.gmra.mxu0 %v240
    %v1582 = vpop.f32.mrf.mxu0
    %v1583 = vadd.f32 0.0, %v1582
    %v1584 = vpop.f32.mrf.mxu0
    %1585 = vdwg.mxu0
    %v1587 = vrot.slane %v1583, 1
    %v1590 = vadd.f32 %v1504, %v1583
    %v1591 = vadd.f32 %v1509, %v1587
    %v1592 = vxor.u32 %v1590, 2147483648
    %v1593 = vxor.u32 %v1591, 2147483648
    %v1594 = vmul.f32 %v1592, 1.442695
    %v1595 = vpow.pop %v1594
    %v1596 = vmul.f32 %v1593, 1.442695
    %v1597 = vpow.pop %v1596
    %v1598 = vadd.f32 %v1595, 1.0
    %v1599 = vadd.f32 %v1597, 1.0
    %v1600 = vrcp.pop %v1598
    %v1601 = vmul.f32 1.0, %v1600
    %v1602 = vrcp.pop %v1599
    %v1603 = vmul.f32 1.0, %v1602
    %v1604 = vtanh.pop %v1590
    %v1605 = vtanh.pop %v1591
    %v1606 = vmul.f32 %v1601, 0.0
    %v1607 = vmul.f32 %v1603, 0.0
    %1610 = vrot.lane.b32.xlu0 %v1604, 64
    %v1611 = vpop.permute.xlu0 %1610
    %1612 = vrot.lane.b32.xlu0 %v1605, 64
    %v1613 = vpop.permute.xlu0 %1612
    %v1616 = vmul.f32 %v1601, %v1611
    %v1617 = vmul.f32 %v1603, %v1613
    %1620 = vrot.lane.b32.xlu0 %v1616, 32
    %v1621 = vpop.permute.xlu0 %1620
    %1622 = vrot.lane.b32.xlu0 %v1617, 32
    %v1623 = vpop.permute.xlu0 %1622
    %v1626 = vadd.f32 %v1606, %v1621
    %v1627 = vadd.f32 %v1607, %v1623
    %v1628 = vtanh.pop %v1626
    %v1629 = vtanh.pop %v1627
    %1632 = vrot.lane.b32.xlu0 %v1628, 64
    %v1633 = vpop.permute.xlu0 %1632
    %1634 = vrot.lane.b32.xlu0 %v1629, 64
    %v1635 = vpop.permute.xlu0 %1634
    %v1638 = vmul.f32 %v1601, %v1633
    %v1639 = vmul.f32 %v1603, %v1635
    %1642 = vrot.lane.b32.xlu0 %v1638, 32
    %v1643 = vpop.permute.xlu0 %1642
    %1644 = vrot.lane.b32.xlu0 %v1639, 32
    %v1645 = vpop.permute.xlu0 %1644
    %1648 = vst.msk [vmem:[#allocation2] sm:$0x1] %vm374, %v1643
    %1649 = vst.msk [vmem:[#allocation2 + $0x8] sm:$0x1] %vm374, %v1645
    %v1650 = vrot.slane %v1639, 7
    %v1651 = vsel %vm378, %v1650, %v1638
    %1652 = vrot.lane.b32.xlu0 %v1651, 32
    %v1653 = vpop.permute.xlu0 %1652
    %v1654 = vsel %vm238, %v1653, 0
    %1656 = vmatprep.subr.mxu0 0.0
    %1657 = vmatpush1.msra.mxu0 0.0
    %1658 = vmatprep.subr.mxu0 0.0
    %1659 = vmatpush1.msra.mxu0 0.0
    %1660 = vmatprep.subr.mxu0 0.0
    %1661 = vmatpush1.msra.mxu0 0.0
    %1662 = vmatprep.subr.mxu0 0.0
    %1663 = vmatpush1.msra.mxu0 0.0
    %1664 = vmatprep.subr.mxu0 0.0
    %1665 = vmatpush1.msra.mxu0 0.0
    %1666 = vmatprep.subr.mxu0 0.0
    %1667 = vmatpush1.msra.mxu0 0.0
    %1668 = vmatprep.subr.mxu0 0.0
    %1669 = vmatpush1.msra.mxu0 0.0
    %1670 = vmatprep.subr.mxu0 0.0
    %1671 = vmatpush1.msra.mxu0 0.0
    %1672 = vmatprep.subr.mxu0 0.0
    %1673 = vmatpush1.msra.mxu0 0.0
    %1674 = vmatprep.subr.mxu0 0.0
    %1675 = vmatpush1.msra.mxu0 0.0
    %1676 = vmatprep.subr.mxu0 0.0
    %1677 = vmatpush1.msra.mxu0 0.0
    %1678 = vmatprep.subr.mxu0 0.0
    %1679 = vmatpush1.msra.mxu0 0.0
    %1680 = vmatprep.subr.mxu0 0.0
    %1681 = vmatpush1.msra.mxu0 %v1515
    %1682 = vmatprep.subr.mxu0 0.0
    %1683 = vmatpush1.msra.mxu0 %v1514
    %1684 = vmatprep.subr.mxu0 0.0
    %1685 = vmatpush1.msra.mxu0 %v1513
    %1686 = vmatprep.subr.mxu0 0.0
    %1687 = vmatpush1.msra.mxu0 %v1512
    %1688 = vmatprep.subr.mxu0 0.0
    %1689 = vmatpush2.msra.mxu0 0.0
    %1690 = vmatprep.subr.mxu0 0.0
    %1691 = vmatpush2.msra.mxu0 0.0
    %1692 = vmatprep.subr.mxu0 0.0
    %1693 = vmatpush2.msra.mxu0 0.0
    %1694 = vmatprep.subr.mxu0 0.0
    %1695 = vmatpush2.msra.mxu0 0.0
    %1696 = vmatprep.subr.mxu0 0.0
    %1697 = vmatpush2.msra.mxu0 0.0
    %1698 = vmatprep.subr.mxu0 0.0
    %1699 = vmatpush2.msra.mxu0 0.0
    %1700 = vmatprep.subr.mxu0 0.0
    %1701 = vmatpush2.msra.mxu0 0.0
    %1702 = vmatprep.subr.mxu0 0.0
    %1703 = vmatpush2.msra.mxu0 0.0
    %1704 = vmatprep.subr.mxu0 0.0
    %1705 = vmatpush2.msra.mxu0 0.0
    %1706 = vmatprep.subr.mxu0 0.0
    %1707 = vmatpush2.msra.mxu0 0.0
    %1708 = vmatprep.subr.mxu0 0.0
    %1709 = vmatpush2.msra.mxu0 0.0
    %1710 = vmatprep.subr.mxu0 0.0
    %1711 = vmatpush2.msra.mxu0 0.0
    %1712 = vmatprep.subr.mxu0 0.0
    %1713 = vmatpush2.msra.mxu0 0.0
    %1714 = vmatprep.subr.mxu0 0.0
    %1715 = vmatpush2.msra.mxu0 0.0
    %1716 = vmatprep.subr.mxu0 0.0
    %1717 = vmatpush2.msra.mxu0 0.0
    %1718 = vmatprep.subr.mxu0 0.0
    %1719 = vmatpush2.msra.mxu0 0.0
    %1720 = vmatprep.mubr.f32.mxu0 0.0
    %1721 = vmatmul.mubr.f32.gmra.mxu0 %v1654
    %v1722 = vpop.f32.mrf.mxu0
    %v1723 = vadd.f32 0.0, %v1722
    %v1724 = vpop.f32.mrf.mxu0
    %1725 = vdwg.mxu0
    %v1727 = vrot.slane %v1723, 7
    %v1730 = vadd.f32 %v1504, %v1727
    %v1731 = vadd.f32 %v1509, %v1723
    %v1732 = vxor.u32 %v1730, 2147483648
    %v1733 = vxor.u32 %v1731, 2147483648
    %v1734 = vmul.f32 %v1732, 1.442695
    %v1735 = vpow.pop %v1734
    %v1736 = vmul.f32 %v1733, 1.442695
    %v1737 = vpow.pop %v1736
    %v1738 = vadd.f32 %v1735, 1.0
    %v1739 = vadd.f32 %v1737, 1.0
    %v1740 = vrcp.pop %v1738
    %v1741 = vmul.f32 1.0, %v1740
    %v1742 = vrcp.pop %v1739
    %v1743 = vmul.f32 1.0, %v1742
    %v1744 = vtanh.pop %v1730
    %v1745 = vtanh.pop %v1731
    %v1748 = vrot.slane %v1626, 7
    %v1749 = vrot.slane %v1627, 7
    %v1752 = vmul.f32 %v1741, %v1748
    %v1753 = vmul.f32 %v1743, %v1749
    %1756 = vrot.lane.b32.xlu0 %v1744, 64
    %v1757 = vpop.permute.xlu0 %1756
    %1758 = vrot.lane.b32.xlu0 %v1745, 64
    %v1759 = vpop.permute.xlu0 %1758
    %v1762 = vmul.f32 %v1741, %v1757
    %v1763 = vmul.f32 %v1743, %v1759
    %1766 = vrot.lane.b32.xlu0 %v1762, 32
    %v1767 = vpop.permute.xlu0 %1766
    %1768 = vrot.lane.b32.xlu0 %v1763, 32
    %v1769 = vpop.permute.xlu0 %1768
    %v1772 = vadd.f32 %v1752, %v1767
    %v1773 = vadd.f32 %v1753, %v1769
    %v1774 = vtanh.pop %v1772
    %v1775 = vtanh.pop %v1773
    %1778 = vrot.lane.b32.xlu0 %v1774, 64
    %v1779 = vpop.permute.xlu0 %1778
    %1780 = vrot.lane.b32.xlu0 %v1775, 64
    %v1781 = vpop.permute.xlu0 %1780
    %v1784 = vmul.f32 %v1741, %v1779
    %v1785 = vmul.f32 %v1743, %v1781
    %1788 = vrot.lane.b32.xlu0 %v1784, 32
    %v1789 = vpop.permute.xlu0 %1788
    %1790 = vrot.lane.b32.xlu0 %v1785, 32
    %v1791 = vpop.permute.xlu0 %1790
    %1794 = vst.msk [vmem:[#allocation2] sm:$0x2] %vm522, %v1789
    %1795 = vst.msk [vmem:[#allocation2 + $0x8] sm:$0x2] %vm522, %v1791
    %v1796 = vrot.slane %v1784, 1
    %v1797 = vsel %vm378, %v1785, %v1796
    %1798 = vrot.lane.b32.xlu0 %v1797, 32
    %v1799 = vpop.permute.xlu0 %1798
    %v1800 = vsel %vm238, %v1799, 0
    %1802 = vmatprep.subr.mxu0 0.0
    %1803 = vmatpush1.msra.mxu0 0.0
    %1804 = vmatprep.subr.mxu0 0.0
    %1805 = vmatpush1.msra.mxu0 0.0
    %1806 = vmatprep.subr.mxu0 0.0
    %1807 = vmatpush1.msra.mxu0 0.0
    %1808 = vmatprep.subr.mxu0 0.0
    %1809 = vmatpush1.msra.mxu0 0.0
    %1810 = vmatprep.subr.mxu0 0.0
    %1811 = vmatpush1.msra.mxu0 0.0
    %1812 = vmatprep.subr.mxu0 0.0
    %1813 = vmatpush1.msra.mxu0 0.0
    %1814 = vmatprep.subr.mxu0 0.0
    %1815 = vmatpush1.msra.mxu0 0.0
    %1816 = vmatprep.subr.mxu0 0.0
    %1817 = vmatpush1.msra.mxu0 0.0
    %1818 = vmatprep.subr.mxu0 0.0
    %1819 = vmatpush1.msra.mxu0 0.0
    %1820 = vmatprep.subr.mxu0 0.0
    %1821 = vmatpush1.msra.mxu0 0.0
    %1822 = vmatprep.subr.mxu0 0.0
    %1823 = vmatpush1.msra.mxu0 0.0
    %1824 = vmatprep.subr.mxu0 0.0
    %1825 = vmatpush1.msra.mxu0 0.0
    %1826 = vmatprep.subr.mxu0 0.0
    %1827 = vmatpush1.msra.mxu0 %v1515
    %1828 = vmatprep.subr.mxu0 0.0
    %1829 = vmatpush1.msra.mxu0 %v1514
    %1830 = vmatprep.subr.mxu0 0.0
    %1831 = vmatpush1.msra.mxu0 %v1513
    %1832 = vmatprep.subr.mxu0 0.0
    %1833 = vmatpush1.msra.mxu0 %v1512
    %1834 = vmatprep.subr.mxu0 0.0
    %1835 = vmatpush2.msra.mxu0 0.0
    %1836 = vmatprep.subr.mxu0 0.0
    %1837 = vmatpush2.msra.mxu0 0.0
    %1838 = vmatprep.subr.mxu0 0.0
    %1839 = vmatpush2.msra.mxu0 0.0
    %1840 = vmatprep.subr.mxu0 0.0
    %1841 = vmatpush2.msra.mxu0 0.0
    %1842 = vmatprep.subr.mxu0 0.0
    %1843 = vmatpush2.msra.mxu0 0.0
    %1844 = vmatprep.subr.mxu0 0.0
    %1845 = vmatpush2.msra.mxu0 0.0
    %1846 = vmatprep.subr.mxu0 0.0
    %1847 = vmatpush2.msra.mxu0 0.0
    %1848 = vmatprep.subr.mxu0 0.0
    %1849 = vmatpush2.msra.mxu0 0.0
    %1850 = vmatprep.subr.mxu0 0.0
    %1851 = vmatpush2.msra.mxu0 0.0
    %1852 = vmatprep.subr.mxu0 0.0
    %1853 = vmatpush2.msra.mxu0 0.0
    %1854 = vmatprep.subr.mxu0 0.0
    %1855 = vmatpush2.msra.mxu0 0.0
    %1856 = vmatprep.subr.mxu0 0.0
    %1857 = vmatpush2.msra.mxu0 0.0
    %1858 = vmatprep.subr.mxu0 0.0
    %1859 = vmatpush2.msra.mxu0 0.0
    %1860 = vmatprep.subr.mxu0 0.0
    %1861 = vmatpush2.msra.mxu0 0.0
    %1862 = vmatprep.subr.mxu0 0.0
    %1863 = vmatpush2.msra.mxu0 0.0
    %1864 = vmatprep.subr.mxu0 0.0
    %1865 = vmatpush2.msra.mxu0 0.0
    %1866 = vmatprep.mubr.f32.mxu0 0.0
    %1867 = vmatmul.mubr.f32.gmra.mxu0 %v1800
    %v1868 = vpop.f32.mrf.mxu0
    %v1869 = vadd.f32 0.0, %v1868
    %v1870 = vpop.f32.mrf.mxu0
    %1871 = vdwg.mxu0
    %v1873 = vrot.slane %v1869, 6
    %v1874 = vrot.slane %v1869, 7
    %v1877 = vadd.f32 %v1504, %v1873
    %v1878 = vadd.f32 %v1509, %v1874
    %v1879 = vxor.u32 %v1877, 2147483648
    %v1880 = vxor.u32 %v1878, 2147483648
    %v1881 = vmul.f32 %v1879, 1.442695
    %v1882 = vpow.pop %v1881
    %v1883 = vmul.f32 %v1880, 1.442695
    %v1884 = vpow.pop %v1883
    %v1885 = vadd.f32 %v1882, 1.0
    %v1886 = vadd.f32 %v1884, 1.0
    %v1887 = vrcp.pop %v1885
    %v1888 = vmul.f32 1.0, %v1887
    %v1889 = vrcp.pop %v1886
    %v1890 = vmul.f32 1.0, %v1889
    %v1891 = vtanh.pop %v1877
    %v1892 = vtanh.pop %v1878
    %v1895 = vrot.slane %v1772, 7
    %v1896 = vrot.slane %v1773, 7
    %v1899 = vmul.f32 %v1888, %v1895
    %v1900 = vmul.f32 %v1890, %v1896
    %1903 = vrot.lane.b32.xlu0 %v1891, 64
    %v1904 = vpop.permute.xlu0 %1903
    %1905 = vrot.lane.b32.xlu0 %v1892, 64
    %v1906 = vpop.permute.xlu0 %1905
    %v1909 = vmul.f32 %v1888, %v1904
    %v1910 = vmul.f32 %v1890, %v1906
    %1913 = vrot.lane.b32.xlu0 %v1909, 32
    %v1914 = vpop.permute.xlu0 %1913
    %1915 = vrot.lane.b32.xlu0 %v1910, 32
    %v1916 = vpop.permute.xlu0 %1915
    %v1919 = vadd.f32 %v1899, %v1914
    %v1920 = vadd.f32 %v1900, %v1916
    %v1921 = vtanh.pop %v1919
    %v1922 = vtanh.pop %v1920
    %1925 = vrot.lane.b32.xlu0 %v1921, 64
    %v1926 = vpop.permute.xlu0 %1925
    %1927 = vrot.lane.b32.xlu0 %v1922, 64
    %v1928 = vpop.permute.xlu0 %1927
    %v1931 = vmul.f32 %v1888, %v1926
    %v1932 = vmul.f32 %v1890, %v1928
    %1935 = vrot.lane.b32.xlu0 %v1931, 32
    %v1936 = vpop.permute.xlu0 %1935
    %1937 = vrot.lane.b32.xlu0 %v1932, 32
    %v1938 = vpop.permute.xlu0 %1937
    %1941 = vst.msk [vmem:[#allocation2] sm:$0x4] %vm670, %v1936
    %1942 = vst.msk [vmem:[#allocation2 + $0x8] sm:$0x4] %vm670, %v1938
    %v1943 = vrot.slane %v1931, 2
    %v1944 = vrot.slane %v1932, 1
    %v1945 = vsel %vm378, %v1944, %v1943
    %1946 = vrot.lane.b32.xlu0 %v1945, 32
    %v1947 = vpop.permute.xlu0 %1946
    %v1948 = vsel %vm238, %v1947, 0
    %1950 = vmatprep.subr.mxu0 0.0
    %1951 = vmatpush1.msra.mxu0 0.0
    %1952 = vmatprep.subr.mxu0 0.0
    %1953 = vmatpush1.msra.mxu0 0.0
    %1954 = vmatprep.subr.mxu0 0.0
    %1955 = vmatpush1.msra.mxu0 0.0
    %1956 = vmatprep.subr.mxu0 0.0
    %1957 = vmatpush1.msra.mxu0 0.0
    %1958 = vmatprep.subr.mxu0 0.0
    %1959 = vmatpush1.msra.mxu0 0.0
    %1960 = vmatprep.subr.mxu0 0.0
    %1961 = vmatpush1.msra.mxu0 0.0
    %1962 = vmatprep.subr.mxu0 0.0
    %1963 = vmatpush1.msra.mxu0 0.0
    %1964 = vmatprep.subr.mxu0 0.0
    %1965 = vmatpush1.msra.mxu0 0.0
    %1966 = vmatprep.subr.mxu0 0.0
    %1967 = vmatpush1.msra.mxu0 0.0
    %1968 = vmatprep.subr.mxu0 0.0
    %1969 = vmatpush1.msra.mxu0 0.0
    %1970 = vmatprep.subr.mxu0 0.0
    %1971 = vmatpush1.msra.mxu0 0.0
    %1972 = vmatprep.subr.mxu0 0.0
    %1973 = vmatpush1.msra.mxu0 0.0
    %1974 = vmatprep.subr.mxu0 0.0
    %1975 = vmatpush1.msra.mxu0 %v1515
    %1976 = vmatprep.subr.mxu0 0.0
    %1977 = vmatpush1.msra.mxu0 %v1514
    %1978 = vmatprep.subr.mxu0 0.0
    %1979 = vmatpush1.msra.mxu0 %v1513
    %1980 = vmatprep.subr.mxu0 0.0
    %1981 = vmatpush1.msra.mxu0 %v1512
    %1982 = vmatprep.subr.mxu0 0.0
    %1983 = vmatpush2.msra.mxu0 0.0
    %1984 = vmatprep.subr.mxu0 0.0
    %1985 = vmatpush2.msra.mxu0 0.0
    %1986 = vmatprep.subr.mxu0 0.0
    %1987 = vmatpush2.msra.mxu0 0.0
    %1988 = vmatprep.subr.mxu0 0.0
    %1989 = vmatpush2.msra.mxu0 0.0
    %1990 = vmatprep.subr.mxu0 0.0
    %1991 = vmatpush2.msra.mxu0 0.0
    %1992 = vmatprep.subr.mxu0 0.0
    %1993 = vmatpush2.msra.mxu0 0.0
    %1994 = vmatprep.subr.mxu0 0.0
    %1995 = vmatpush2.msra.mxu0 0.0
    %1996 = vmatprep.subr.mxu0 0.0
    %1997 = vmatpush2.msra.mxu0 0.0
    %1998 = vmatprep.subr.mxu0 0.0
    %1999 = vmatpush2.msra.mxu0 0.0
    %2000 = vmatprep.subr.mxu0 0.0
    %2001 = vmatpush2.msra.mxu0 0.0
    %2002 = vmatprep.subr.mxu0 0.0
    %2003 = vmatpush2.msra.mxu0 0.0
    %2004 = vmatprep.subr.mxu0 0.0
    %2005 = vmatpush2.msra.mxu0 0.0
    %2006 = vmatprep.subr.mxu0 0.0
    %2007 = vmatpush2.msra.mxu0 0.0
    %2008 = vmatprep.subr.mxu0 0.0
    %2009 = vmatpush2.msra.mxu0 0.0
    %2010 = vmatprep.subr.mxu0 0.0
    %2011 = vmatpush2.msra.mxu0 0.0
    %2012 = vmatprep.subr.mxu0 0.0
    %2013 = vmatpush2.msra.mxu0 0.0
    %2014 = vmatprep.mubr.f32.mxu0 0.0
    %2015 = vmatmul.mubr.f32.gmra.mxu0 %v1948
    %v2016 = vpop.f32.mrf.mxu0
    %v2017 = vadd.f32 0.0, %v2016
    %v2018 = vpop.f32.mrf.mxu0
    %2019 = vdwg.mxu0
    %v2021 = vrot.slane %v2017, 5
    %v2022 = vrot.slane %v2017, 6
    %v2025 = vadd.f32 %v1504, %v2021
    %v2026 = vadd.f32 %v1509, %v2022
    %v2027 = vxor.u32 %v2025, 2147483648
    %v2028 = vxor.u32 %v2026, 2147483648
    %v2029 = vmul.f32 %v2027, 1.442695
    %v2030 = vpow.pop %v2029
    %v2031 = vmul.f32 %v2028, 1.442695
    %v2032 = vpow.pop %v2031
    %v2033 = vadd.f32 %v2030, 1.0
    %v2034 = vadd.f32 %v2032, 1.0
    %v2035 = vrcp.pop %v2033
    %v2036 = vmul.f32 1.0, %v2035
    %v2037 = vrcp.pop %v2034
    %v2038 = vmul.f32 1.0, %v2037
    %v2039 = vtanh.pop %v2025
    %v2040 = vtanh.pop %v2026
    %v2043 = vrot.slane %v1919, 7
    %v2044 = vrot.slane %v1920, 7
    %v2047 = vmul.f32 %v2036, %v2043
    %v2048 = vmul.f32 %v2038, %v2044
    %2051 = vrot.lane.b32.xlu0 %v2039, 64
    %v2052 = vpop.permute.xlu0 %2051
    %2053 = vrot.lane.b32.xlu0 %v2040, 64
    %v2054 = vpop.permute.xlu0 %2053
    %v2057 = vmul.f32 %v2036, %v2052
    %v2058 = vmul.f32 %v2038, %v2054
    %2061 = vrot.lane.b32.xlu0 %v2057, 32
    %v2062 = vpop.permute.xlu0 %2061
    %2063 = vrot.lane.b32.xlu0 %v2058, 32
    %v2064 = vpop.permute.xlu0 %2063
    %v2067 = vadd.f32 %v2047, %v2062
    %v2068 = vadd.f32 %v2048, %v2064
    %v2069 = vtanh.pop %v2067
    %v2070 = vtanh.pop %v2068
    %2073 = vrot.lane.b32.xlu0 %v2069, 64
    %v2074 = vpop.permute.xlu0 %2073
    %2075 = vrot.lane.b32.xlu0 %v2070, 64
    %v2076 = vpop.permute.xlu0 %2075
    %v2079 = vmul.f32 %v2036, %v2074
    %v2080 = vmul.f32 %v2038, %v2076
    %2083 = vrot.lane.b32.xlu0 %v2079, 32
    %v2084 = vpop.permute.xlu0 %2083
    %2085 = vrot.lane.b32.xlu0 %v2080, 32
    %v2086 = vpop.permute.xlu0 %2085
    %2089 = vst.msk [vmem:[#allocation2] sm:$0x8] %vm819, %v2084
    %2090 = vst.msk [vmem:[#allocation2 + $0x8] sm:$0x8] %vm819, %v2086
    %v2091 = vrot.slane %v2079, 3
    %v2092 = vrot.slane %v2080, 2
    %v2093 = vsel %vm378, %v2092, %v2091
    %2094 = vrot.lane.b32.xlu0 %v2093, 32
    %v2095 = vpop.permute.xlu0 %2094
    %v2096 = vsel %vm238, %v2095, 0
    %2098 = vmatprep.subr.mxu0 0.0
    %2099 = vmatpush1.msra.mxu0 0.0
    %2100 = vmatprep.subr.mxu0 0.0
    %2101 = vmatpush1.msra.mxu0 0.0
    %2102 = vmatprep.subr.mxu0 0.0
    %2103 = vmatpush1.msra.mxu0 0.0
    %2104 = vmatprep.subr.mxu0 0.0
    %2105 = vmatpush1.msra.mxu0 0.0
    %2106 = vmatprep.subr.mxu0 0.0
    %2107 = vmatpush1.msra.mxu0 0.0
    %2108 = vmatprep.subr.mxu0 0.0
    %2109 = vmatpush1.msra.mxu0 0.0
    %2110 = vmatprep.subr.mxu0 0.0
    %2111 = vmatpush1.msra.mxu0 0.0
    %2112 = vmatprep.subr.mxu0 0.0
    %2113 = vmatpush1.msra.mxu0 0.0
    %2114 = vmatprep.subr.mxu0 0.0
    %2115 = vmatpush1.msra.mxu0 0.0
    %2116 = vmatprep.subr.mxu0 0.0
    %2117 = vmatpush1.msra.mxu0 0.0
    %2118 = vmatprep.subr.mxu0 0.0
    %2119 = vmatpush1.msra.mxu0 0.0
    %2120 = vmatprep.subr.mxu0 0.0
    %2121 = vmatpush1.msra.mxu0 0.0
    %2122 = vmatprep.subr.mxu0 0.0
    %2123 = vmatpush1.msra.mxu0 %v1515
    %2124 = vmatprep.subr.mxu0 0.0
    %2125 = vmatpush1.msra.mxu0 %v1514
    %2126 = vmatprep.subr.mxu0 0.0
    %2127 = vmatpush1.msra.mxu0 %v1513
    %2128 = vmatprep.subr.mxu0 0.0
    %2129 = vmatpush1.msra.mxu0 %v1512
    %2130 = vmatprep.subr.mxu0 0.0
    %2131 = vmatpush2.msra.mxu0 0.0
    %2132 = vmatprep.subr.mxu0 0.0
    %2133 = vmatpush2.msra.mxu0 0.0
    %2134 = vmatprep.subr.mxu0 0.0
    %2135 = vmatpush2.msra.mxu0 0.0
    %2136 = vmatprep.subr.mxu0 0.0
    %2137 = vmatpush2.msra.mxu0 0.0
    %2138 = vmatprep.subr.mxu0 0.0
    %2139 = vmatpush2.msra.mxu0 0.0
    %2140 = vmatprep.subr.mxu0 0.0
    %2141 = vmatpush2.msra.mxu0 0.0
    %2142 = vmatprep.subr.mxu0 0.0
    %2143 = vmatpush2.msra.mxu0 0.0
    %2144 = vmatprep.subr.mxu0 0.0
    %2145 = vmatpush2.msra.mxu0 0.0
    %2146 = vmatprep.subr.mxu0 0.0
    %2147 = vmatpush2.msra.mxu0 0.0
    %2148 = vmatprep.subr.mxu0 0.0
    %2149 = vmatpush2.msra.mxu0 0.0
    %2150 = vmatprep.subr.mxu0 0.0
    %2151 = vmatpush2.msra.mxu0 0.0
    %2152 = vmatprep.subr.mxu0 0.0
    %2153 = vmatpush2.msra.mxu0 0.0
    %2154 = vmatprep.subr.mxu0 0.0
    %2155 = vmatpush2.msra.mxu0 0.0
    %2156 = vmatprep.subr.mxu0 0.0
    %2157 = vmatpush2.msra.mxu0 0.0
    %2158 = vmatprep.subr.mxu0 0.0
    %2159 = vmatpush2.msra.mxu0 0.0
    %2160 = vmatprep.subr.mxu0 0.0
    %2161 = vmatpush2.msra.mxu0 0.0
    %2162 = vmatprep.mubr.f32.mxu0 0.0
    %2163 = vmatmul.mubr.f32.gmra.mxu0 %v2096
    %v2164 = vpop.f32.mrf.mxu0
    %v2165 = vadd.f32 0.0, %v2164
    %v2166 = vpop.f32.mrf.mxu0
    %2167 = vdwg.mxu0
    %v2169 = vrot.slane %v2165, 4
    %v2170 = vrot.slane %v2165, 5
    %v2173 = vadd.f32 %v1504, %v2169
    %v2174 = vadd.f32 %v1509, %v2170
    %v2175 = vxor.u32 %v2173, 2147483648
    %v2176 = vxor.u32 %v2174, 2147483648
    %v2177 = vmul.f32 %v2175, 1.442695
    %v2178 = vpow.pop %v2177
    %v2179 = vmul.f32 %v2176, 1.442695
    %v2180 = vpow.pop %v2179
    %v2181 = vadd.f32 %v2178, 1.0
    %v2182 = vadd.f32 %v2180, 1.0
    %v2183 = vrcp.pop %v2181
    %v2184 = vmul.f32 1.0, %v2183
    %v2185 = vrcp.pop %v2182
    %v2186 = vmul.f32 1.0, %v2185
    %v2187 = vtanh.pop %v2173
    %v2188 = vtanh.pop %v2174
    %v2191 = vrot.slane %v2067, 7
    %v2192 = vrot.slane %v2068, 7
    %v2195 = vmul.f32 %v2184, %v2191
    %v2196 = vmul.f32 %v2186, %v2192
    %2199 = vrot.lane.b32.xlu0 %v2187, 64
    %v2200 = vpop.permute.xlu0 %2199
    %2201 = vrot.lane.b32.xlu0 %v2188, 64
    %v2202 = vpop.permute.xlu0 %2201
    %v2205 = vmul.f32 %v2184, %v2200
    %v2206 = vmul.f32 %v2186, %v2202
    %2209 = vrot.lane.b32.xlu0 %v2205, 32
    %v2210 = vpop.permute.xlu0 %2209
    %2211 = vrot.lane.b32.xlu0 %v2206, 32
    %v2212 = vpop.permute.xlu0 %2211
    %v2215 = vadd.f32 %v2195, %v2210
    %v2216 = vadd.f32 %v2196, %v2212
    %v2217 = vtanh.pop %v2215
    %v2218 = vtanh.pop %v2216
    %2221 = vrot.lane.b32.xlu0 %v2217, 64
    %v2222 = vpop.permute.xlu0 %2221
    %2223 = vrot.lane.b32.xlu0 %v2218, 64
    %v2224 = vpop.permute.xlu0 %2223
    %v2227 = vmul.f32 %v2184, %v2222
    %v2228 = vmul.f32 %v2186, %v2224
    %2231 = vrot.lane.b32.xlu0 %v2227, 32
    %v2232 = vpop.permute.xlu0 %2231
    %2233 = vrot.lane.b32.xlu0 %v2228, 32
    %v2234 = vpop.permute.xlu0 %2233
    %2237 = vst.msk [vmem:[#allocation2] sm:$0x10] %vm968, %v2232
    %2238 = vst.msk [vmem:[#allocation2 + $0x8] sm:$0x10] %vm968, %v2234
    %v2239 = vrot.slane %v2227, 4
    %v2240 = vrot.slane %v2228, 3
    %v2241 = vsel %vm378, %v2240, %v2239
    %2242 = vrot.lane.b32.xlu0 %v2241, 32
    %v2243 = vpop.permute.xlu0 %2242
    %v2244 = vsel %vm238, %v2243, 0
    %2246 = vmatprep.subr.mxu0 0.0
    %2247 = vmatpush1.msra.mxu0 0.0
    %2248 = vmatprep.subr.mxu0 0.0
    %2249 = vmatpush1.msra.mxu0 0.0
    %2250 = vmatprep.subr.mxu0 0.0
    %2251 = vmatpush1.msra.mxu0 0.0
    %2252 = vmatprep.subr.mxu0 0.0
    %2253 = vmatpush1.msra.mxu0 0.0
    %2254 = vmatprep.subr.mxu0 0.0
    %2255 = vmatpush1.msra.mxu0 0.0
    %2256 = vmatprep.subr.mxu0 0.0
    %2257 = vmatpush1.msra.mxu0 0.0
    %2258 = vmatprep.subr.mxu0 0.0
    %2259 = vmatpush1.msra.mxu0 0.0
    %2260 = vmatprep.subr.mxu0 0.0
    %2261 = vmatpush1.msra.mxu0 0.0
    %2262 = vmatprep.subr.mxu0 0.0
    %2263 = vmatpush1.msra.mxu0 0.0
    %2264 = vmatprep.subr.mxu0 0.0
    %2265 = vmatpush1.msra.mxu0 0.0
    %2266 = vmatprep.subr.mxu0 0.0
    %2267 = vmatpush1.msra.mxu0 0.0
    %2268 = vmatprep.subr.mxu0 0.0
    %2269 = vmatpush1.msra.mxu0 0.0
    %2270 = vmatprep.subr.mxu0 0.0
    %2271 = vmatpush1.msra.mxu0 %v1515
    %2272 = vmatprep.subr.mxu0 0.0
    %2273 = vmatpush1.msra.mxu0 %v1514
    %2274 = vmatprep.subr.mxu0 0.0
    %2275 = vmatpush1.msra.mxu0 %v1513
    %2276 = vmatprep.subr.mxu0 0.0
    %2277 = vmatpush1.msra.mxu0 %v1512
    %2278 = vmatprep.subr.mxu0 0.0
    %2279 = vmatpush2.msra.mxu0 0.0
    %2280 = vmatprep.subr.mxu0 0.0
    %2281 = vmatpush2.msra.mxu0 0.0
    %2282 = vmatprep.subr.mxu0 0.0
    %2283 = vmatpush2.msra.mxu0 0.0
    %2284 = vmatprep.subr.mxu0 0.0
    %2285 = vmatpush2.msra.mxu0 0.0
    %2286 = vmatprep.subr.mxu0 0.0
    %2287 = vmatpush2.msra.mxu0 0.0
    %2288 = vmatprep.subr.mxu0 0.0
    %2289 = vmatpush2.msra.mxu0 0.0
    %2290 = vmatprep.subr.mxu0 0.0
    %2291 = vmatpush2.msra.mxu0 0.0
    %2292 = vmatprep.subr.mxu0 0.0
    %2293 = vmatpush2.msra.mxu0 0.0
    %2294 = vmatprep.subr.mxu0 0.0
    %2295 = vmatpush2.msra.mxu0 0.0
    %2296 = vmatprep.subr.mxu0 0.0
    %2297 = vmatpush2.msra.mxu0 0.0
    %2298 = vmatprep.subr.mxu0 0.0
    %2299 = vmatpush2.msra.mxu0 0.0
    %2300 = vmatprep.subr.mxu0 0.0
    %2301 = vmatpush2.msra.mxu0 0.0
    %2302 = vmatprep.subr.mxu0 0.0
    %2303 = vmatpush2.msra.mxu0 0.0
    %2304 = vmatprep.subr.mxu0 0.0
    %2305 = vmatpush2.msra.mxu0 0.0
    %2306 = vmatprep.subr.mxu0 0.0
    %2307 = vmatpush2.msra.mxu0 0.0
    %2308 = vmatprep.subr.mxu0 0.0
    %2309 = vmatpush2.msra.mxu0 0.0
    %2310 = vmatprep.mubr.f32.mxu0 0.0
    %2311 = vmatmul.mubr.f32.gmra.mxu0 %v2244
    %v2312 = vpop.f32.mrf.mxu0
    %v2313 = vadd.f32 0.0, %v2312
    %v2314 = vpop.f32.mrf.mxu0
    %2315 = vdwg.mxu0
    %v2317 = vrot.slane %v2313, 3
    %v2318 = vrot.slane %v2313, 4
    %v2321 = vadd.f32 %v1504, %v2317
    %v2322 = vadd.f32 %v1509, %v2318
    %v2323 = vxor.u32 %v2321, 2147483648
    %v2324 = vxor.u32 %v2322, 2147483648
    %v2325 = vmul.f32 %v2323, 1.442695
    %v2326 = vpow.pop %v2325
    %v2327 = vmul.f32 %v2324, 1.442695
    %v2328 = vpow.pop %v2327
    %v2329 = vadd.f32 %v2326, 1.0
    %v2330 = vadd.f32 %v2328, 1.0
    %v2331 = vrcp.pop %v2329
    %v2332 = vmul.f32 1.0, %v2331
    %v2333 = vrcp.pop %v2330
    %v2334 = vmul.f32 1.0, %v2333
    %v2335 = vtanh.pop %v2321
    %v2336 = vtanh.pop %v2322
    %v2339 = vrot.slane %v2215, 7
    %v2340 = vrot.slane %v2216, 7
    %v2343 = vmul.f32 %v2332, %v2339
    %v2344 = vmul.f32 %v2334, %v2340
    %2347 = vrot.lane.b32.xlu0 %v2335, 64
    %v2348 = vpop.permute.xlu0 %2347
    %2349 = vrot.lane.b32.xlu0 %v2336, 64
    %v2350 = vpop.permute.xlu0 %2349
    %v2353 = vmul.f32 %v2332, %v2348
    %v2354 = vmul.f32 %v2334, %v2350
    %2357 = vrot.lane.b32.xlu0 %v2353, 32
    %v2358 = vpop.permute.xlu0 %2357
    %2359 = vrot.lane.b32.xlu0 %v2354, 32
    %v2360 = vpop.permute.xlu0 %2359
    %v2363 = vadd.f32 %v2343, %v2358
    %v2364 = vadd.f32 %v2344, %v2360
    %v2365 = vtanh.pop %v2363
    %v2366 = vtanh.pop %v2364
    %2369 = vrot.lane.b32.xlu0 %v2365, 64
    %v2370 = vpop.permute.xlu0 %2369
    %2371 = vrot.lane.b32.xlu0 %v2366, 64
    %v2372 = vpop.permute.xlu0 %2371
    %v2375 = vmul.f32 %v2332, %v2370
    %v2376 = vmul.f32 %v2334, %v2372
    %2379 = vrot.lane.b32.xlu0 %v2375, 32
    %v2380 = vpop.permute.xlu0 %2379
    %2381 = vrot.lane.b32.xlu0 %v2376, 32
    %v2382 = vpop.permute.xlu0 %2381
    %2385 = vst.msk [vmem:[#allocation2] sm:$0x20] %vm1117, %v2380
    %2386 = vst.msk [vmem:[#allocation2 + $0x8] sm:$0x20] %vm1117, %v2382
    %v2387 = vrot.slane %v2375, 5
    %v2388 = vrot.slane %v2376, 4
    %v2389 = vsel %vm378, %v2388, %v2387
    %2390 = vrot.lane.b32.xlu0 %v2389, 32
    %v2391 = vpop.permute.xlu0 %2390
    %v2392 = vsel %vm238, %v2391, 0
    %2394 = vmatprep.subr.mxu0 0.0
    %2395 = vmatpush1.msra.mxu0 0.0
    %2396 = vmatprep.subr.mxu0 0.0
    %2397 = vmatpush1.msra.mxu0 0.0
    %2398 = vmatprep.subr.mxu0 0.0
    %2399 = vmatpush1.msra.mxu0 0.0
    %2400 = vmatprep.subr.mxu0 0.0
    %2401 = vmatpush1.msra.mxu0 0.0
    %2402 = vmatprep.subr.mxu0 0.0
    %2403 = vmatpush1.msra.mxu0 0.0
    %2404 = vmatprep.subr.mxu0 0.0
    %2405 = vmatpush1.msra.mxu0 0.0
    %2406 = vmatprep.subr.mxu0 0.0
    %2407 = vmatpush1.msra.mxu0 0.0
    %2408 = vmatprep.subr.mxu0 0.0
    %2409 = vmatpush1.msra.mxu0 0.0
    %2410 = vmatprep.subr.mxu0 0.0
    %2411 = vmatpush1.msra.mxu0 0.0
    %2412 = vmatprep.subr.mxu0 0.0
    %2413 = vmatpush1.msra.mxu0 0.0
    %2414 = vmatprep.subr.mxu0 0.0
    %2415 = vmatpush1.msra.mxu0 0.0
    %2416 = vmatprep.subr.mxu0 0.0
    %2417 = vmatpush1.msra.mxu0 0.0
    %2418 = vmatprep.subr.mxu0 0.0
    %2419 = vmatpush1.msra.mxu0 %v1515
    %2420 = vmatprep.subr.mxu0 0.0
    %2421 = vmatpush1.msra.mxu0 %v1514
    %2422 = vmatprep.subr.mxu0 0.0
    %2423 = vmatpush1.msra.mxu0 %v1513
    %2424 = vmatprep.subr.mxu0 0.0
    %2425 = vmatpush1.msra.mxu0 %v1512
    %2426 = vmatprep.subr.mxu0 0.0
    %2427 = vmatpush2.msra.mxu0 0.0
    %2428 = vmatprep.subr.mxu0 0.0
    %2429 = vmatpush2.msra.mxu0 0.0
    %2430 = vmatprep.subr.mxu0 0.0
    %2431 = vmatpush2.msra.mxu0 0.0
    %2432 = vmatprep.subr.mxu0 0.0
    %2433 = vmatpush2.msra.mxu0 0.0
    %2434 = vmatprep.subr.mxu0 0.0
    %2435 = vmatpush2.msra.mxu0 0.0
    %2436 = vmatprep.subr.mxu0 0.0
    %2437 = vmatpush2.msra.mxu0 0.0
    %2438 = vmatprep.subr.mxu0 0.0
    %2439 = vmatpush2.msra.mxu0 0.0
    %2440 = vmatprep.subr.mxu0 0.0
    %2441 = vmatpush2.msra.mxu0 0.0
    %2442 = vmatprep.subr.mxu0 0.0
    %2443 = vmatpush2.msra.mxu0 0.0
    %2444 = vmatprep.subr.mxu0 0.0
    %2445 = vmatpush2.msra.mxu0 0.0
    %2446 = vmatprep.subr.mxu0 0.0
    %2447 = vmatpush2.msra.mxu0 0.0
    %2448 = vmatprep.subr.mxu0 0.0
    %2449 = vmatpush2.msra.mxu0 0.0
    %2450 = vmatprep.subr.mxu0 0.0
    %2451 = vmatpush2.msra.mxu0 0.0
    %2452 = vmatprep.subr.mxu0 0.0
    %2453 = vmatpush2.msra.mxu0 0.0
    %2454 = vmatprep.subr.mxu0 0.0
    %2455 = vmatpush2.msra.mxu0 0.0
    %2456 = vmatprep.subr.mxu0 0.0
    %2457 = vmatpush2.msra.mxu0 0.0
    %2458 = vmatprep.mubr.f32.mxu0 0.0
    %2459 = vmatmul.mubr.f32.gmra.mxu0 %v2392
    %v2460 = vpop.f32.mrf.mxu0
    %v2461 = vadd.f32 0.0, %v2460
    %v2462 = vpop.f32.mrf.mxu0
    %2463 = vdwg.mxu0
    %v2465 = vrot.slane %v2461, 2
    %v2466 = vrot.slane %v2461, 3
    %v2469 = vadd.f32 %v1504, %v2465
    %v2470 = vadd.f32 %v1509, %v2466
    %v2471 = vxor.u32 %v2469, 2147483648
    %v2472 = vxor.u32 %v2470, 2147483648
    %v2473 = vmul.f32 %v2471, 1.442695
    %v2474 = vpow.pop %v2473
    %v2475 = vmul.f32 %v2472, 1.442695
    %v2476 = vpow.pop %v2475
    %v2477 = vadd.f32 %v2474, 1.0
    %v2478 = vadd.f32 %v2476, 1.0
    %v2479 = vrcp.pop %v2477
    %v2480 = vmul.f32 1.0, %v2479
    %v2481 = vrcp.pop %v2478
    %v2482 = vmul.f32 1.0, %v2481
    %v2483 = vtanh.pop %v2469
    %v2484 = vtanh.pop %v2470
    %v2487 = vrot.slane %v2363, 7
    %v2488 = vrot.slane %v2364, 7
    %v2491 = vmul.f32 %v2480, %v2487
    %v2492 = vmul.f32 %v2482, %v2488
    %2495 = vrot.lane.b32.xlu0 %v2483, 64
    %v2496 = vpop.permute.xlu0 %2495
    %2497 = vrot.lane.b32.xlu0 %v2484, 64
    %v2498 = vpop.permute.xlu0 %2497
    %v2501 = vmul.f32 %v2480, %v2496
    %v2502 = vmul.f32 %v2482, %v2498
    %2505 = vrot.lane.b32.xlu0 %v2501, 32
    %v2506 = vpop.permute.xlu0 %2505
    %2507 = vrot.lane.b32.xlu0 %v2502, 32
    %v2508 = vpop.permute.xlu0 %2507
    %v2511 = vadd.f32 %v2491, %v2506
    %v2512 = vadd.f32 %v2492, %v2508
    %v2513 = vtanh.pop %v2511
    %v2514 = vtanh.pop %v2512
    %2517 = vrot.lane.b32.xlu0 %v2513, 64
    %v2518 = vpop.permute.xlu0 %2517
    %2519 = vrot.lane.b32.xlu0 %v2514, 64
    %v2520 = vpop.permute.xlu0 %2519
    %v2523 = vmul.f32 %v2480, %v2518
    %v2524 = vmul.f32 %v2482, %v2520
    %2527 = vrot.lane.b32.xlu0 %v2523, 32
    %v2528 = vpop.permute.xlu0 %2527
    %2529 = vrot.lane.b32.xlu0 %v2524, 32
    %v2530 = vpop.permute.xlu0 %2529
    %2533 = vst.msk [vmem:[#allocation2] sm:$0x40] %vm1266, %v2528
    %2534 = vst.msk [vmem:[#allocation2 + $0x8] sm:$0x40] %vm1266, %v2530
    %v2535 = vrot.slane %v2523, 6
    %v2536 = vrot.slane %v2524, 5
    %v2537 = vsel %vm378, %v2536, %v2535
    %2538 = vrot.lane.b32.xlu0 %v2537, 32
    %v2539 = vpop.permute.xlu0 %2538
    %v2540 = vsel %vm238, %v2539, 0
    %2542 = vmatprep.subr.mxu0 0.0
    %2543 = vmatpush1.msra.mxu0 0.0
    %2544 = vmatprep.subr.mxu0 0.0
    %2545 = vmatpush1.msra.mxu0 0.0
    %2546 = vmatprep.subr.mxu0 0.0
    %2547 = vmatpush1.msra.mxu0 0.0
    %2548 = vmatprep.subr.mxu0 0.0
    %2549 = vmatpush1.msra.mxu0 0.0
    %2550 = vmatprep.subr.mxu0 0.0
    %2551 = vmatpush1.msra.mxu0 0.0
    %2552 = vmatprep.subr.mxu0 0.0
    %2553 = vmatpush1.msra.mxu0 0.0
    %2554 = vmatprep.subr.mxu0 0.0
    %2555 = vmatpush1.msra.mxu0 0.0
    %2556 = vmatprep.subr.mxu0 0.0
    %2557 = vmatpush1.msra.mxu0 0.0
    %2558 = vmatprep.subr.mxu0 0.0
    %2559 = vmatpush1.msra.mxu0 0.0
    %2560 = vmatprep.subr.mxu0 0.0
    %2561 = vmatpush1.msra.mxu0 0.0
    %2562 = vmatprep.subr.mxu0 0.0
    %2563 = vmatpush1.msra.mxu0 0.0
    %2564 = vmatprep.subr.mxu0 0.0
    %2565 = vmatpush1.msra.mxu0 0.0
    %2566 = vmatprep.subr.mxu0 0.0
    %2567 = vmatpush1.msra.mxu0 %v1515
    %2568 = vmatprep.subr.mxu0 0.0
    %2569 = vmatpush1.msra.mxu0 %v1514
    %2570 = vmatprep.subr.mxu0 0.0
    %2571 = vmatpush1.msra.mxu0 %v1513
    %2572 = vmatprep.subr.mxu0 0.0
    %2573 = vmatpush1.msra.mxu0 %v1512
    %2574 = vmatprep.subr.mxu0 0.0
    %2575 = vmatpush2.msra.mxu0 0.0
    %2576 = vmatprep.subr.mxu0 0.0
    %2577 = vmatpush2.msra.mxu0 0.0
    %2578 = vmatprep.subr.mxu0 0.0
    %2579 = vmatpush2.msra.mxu0 0.0
    %2580 = vmatprep.subr.mxu0 0.0
    %2581 = vmatpush2.msra.mxu0 0.0
    %2582 = vmatprep.subr.mxu0 0.0
    %2583 = vmatpush2.msra.mxu0 0.0
    %2584 = vmatprep.subr.mxu0 0.0
    %2585 = vmatpush2.msra.mxu0 0.0
    %2586 = vmatprep.subr.mxu0 0.0
    %2587 = vmatpush2.msra.mxu0 0.0
    %2588 = vmatprep.subr.mxu0 0.0
    %2589 = vmatpush2.msra.mxu0 0.0
    %2590 = vmatprep.subr.mxu0 0.0
    %2591 = vmatpush2.msra.mxu0 0.0
    %2592 = vmatprep.subr.mxu0 0.0
    %2593 = vmatpush2.msra.mxu0 0.0
    %2594 = vmatprep.subr.mxu0 0.0
    %2595 = vmatpush2.msra.mxu0 0.0
    %2596 = vmatprep.subr.mxu0 0.0
    %2597 = vmatpush2.msra.mxu0 0.0
    %2598 = vmatprep.subr.mxu0 0.0
    %2599 = vmatpush2.msra.mxu0 0.0
    %2600 = vmatprep.subr.mxu0 0.0
    %2601 = vmatpush2.msra.mxu0 0.0
    %2602 = vmatprep.subr.mxu0 0.0
    %2603 = vmatpush2.msra.mxu0 0.0
    %2604 = vmatprep.subr.mxu0 0.0
    %2605 = vmatpush2.msra.mxu0 0.0
    %2606 = vmatprep.mubr.f32.mxu0 0.0
    %2607 = vmatmul.mubr.f32.gmra.mxu0 %v2540
    %v2608 = vpop.f32.mrf.mxu0
    %v2609 = vadd.f32 0.0, %v2608
    %v2610 = vpop.f32.mrf.mxu0
    %2611 = vdwg.mxu0
    %v2613 = vrot.slane %v2609, 1
    %v2614 = vrot.slane %v2609, 2
    %v2617 = vadd.f32 %v1504, %v2613
    %v2618 = vadd.f32 %v1509, %v2614
    %v2619 = vxor.u32 %v2617, 2147483648
    %v2620 = vxor.u32 %v2618, 2147483648
    %v2621 = vmul.f32 %v2619, 1.442695
    %v2622 = vpow.pop %v2621
    %v2623 = vmul.f32 %v2620, 1.442695
    %v2624 = vpow.pop %v2623
    %v2625 = vadd.f32 %v2622, 1.0
    %v2626 = vadd.f32 %v2624, 1.0
    %v2627 = vrcp.pop %v2625
    %v2628 = vmul.f32 1.0, %v2627
    %v2629 = vrcp.pop %v2626
    %v2630 = vmul.f32 1.0, %v2629
    %v2631 = vtanh.pop %v2617
    %v2632 = vtanh.pop %v2618
    %v2635 = vrot.slane %v2511, 7
    %v2636 = vrot.slane %v2512, 7
    %v2639 = vmul.f32 %v2628, %v2635
    %v2640 = vmul.f32 %v2630, %v2636
    %2643 = vrot.lane.b32.xlu0 %v2631, 64
    %v2644 = vpop.permute.xlu0 %2643
    %2645 = vrot.lane.b32.xlu0 %v2632, 64
    %v2646 = vpop.permute.xlu0 %2645
    %v2649 = vmul.f32 %v2628, %v2644
    %v2650 = vmul.f32 %v2630, %v2646
    %2653 = vrot.lane.b32.xlu0 %v2649, 32
    %v2654 = vpop.permute.xlu0 %2653
    %2655 = vrot.lane.b32.xlu0 %v2650, 32
    %v2656 = vpop.permute.xlu0 %2655
    %v2659 = vadd.f32 %v2639, %v2654
    %v2660 = vadd.f32 %v2640, %v2656
    %v2661 = vtanh.pop %v2659
    %v2662 = vtanh.pop %v2660
    %2665 = vrot.lane.b32.xlu0 %v2661, 64
    %v2666 = vpop.permute.xlu0 %2665
    %2667 = vrot.lane.b32.xlu0 %v2662, 64
    %v2668 = vpop.permute.xlu0 %2667
    %v2671 = vmul.f32 %v2628, %v2666
    %v2672 = vmul.f32 %v2630, %v2668
    %2675 = vrot.lane.b32.xlu0 %v2671, 32
    %v2676 = vpop.permute.xlu0 %2675
    %2677 = vrot.lane.b32.xlu0 %v2672, 32
    %v2678 = vpop.permute.xlu0 %2677
    %2681 = vst.msk [vmem:[#allocation2] sm:$0x80] %vm1415, %v2676
    %2682 = vst.msk [vmem:[#allocation2 + $0x8] sm:$0x80] %vm1415, %v2678
    %v2683 = vld [vmem:[#allocation2] sm:$0xff]
    %v2684 = vld [vmem:[#allocation2 + $0x8] sm:$0xff]
    %v2685 = vld [vmem:[#allocation11] sm:$0xff]
    %v2686 = vld [vmem:[#allocation11 + $0x8] sm:$0xff]
    %v2687 = vld [vmem:[#allocation11 + $0x10] sm:$0xff]
    %v2688 = vld [vmem:[#allocation11 + $0x18] sm:$0xff]
    %v2689 = vld [vmem:[%s9] sm:$0x1]
    %v2691 = vlaneseq
    %v2692 = vshrl.u32 %v2691, 7
    %v2693 = vsub.s32 0, %v2692
    %v2694 = vrot.slane %v2689, %v2693
    %v2697 = vsel %vm238, %v2683, 0
    %v2700 = vsel %vm238, %v2684, 0
    %2702 = vmatprep.subr.mxu0 0.0
    %2703 = vmatpush1.msra.mxu0 0.0
    %2704 = vmatprep.subr.mxu0 0.0
    %2705 = vmatpush1.msra.mxu0 0.0
    %2706 = vmatprep.subr.mxu0 0.0
    %2707 = vmatpush1.msra.mxu0 0.0
    %2708 = vmatprep.subr.mxu0 0.0
    %2709 = vmatpush1.msra.mxu0 0.0
    %2710 = vmatprep.subr.mxu0 0.0
    %2711 = vmatpush1.msra.mxu0 0.0
    %2712 = vmatprep.subr.mxu0 0.0
    %2713 = vmatpush1.msra.mxu0 0.0
    %2714 = vmatprep.subr.mxu0 0.0
    %2715 = vmatpush1.msra.mxu0 0.0
    %2716 = vmatprep.subr.mxu0 0.0
    %2717 = vmatpush1.msra.mxu0 0.0
    %2718 = vmatprep.subr.mxu0 0.0
    %2719 = vmatpush1.msra.mxu0 0.0
    %2720 = vmatprep.subr.mxu0 0.0
    %2721 = vmatpush1.msra.mxu0 0.0
    %2722 = vmatprep.subr.mxu0 0.0
    %2723 = vmatpush1.msra.mxu0 0.0
    %2724 = vmatprep.subr.mxu0 0.0
    %2725 = vmatpush1.msra.mxu0 0.0
    %2726 = vmatprep.subr.mxu0 0.0
    %2727 = vmatpush1.msra.mxu0 %v2688
    %2728 = vmatprep.subr.mxu0 0.0
    %2729 = vmatpush1.msra.mxu0 %v2687
    %2730 = vmatprep.subr.mxu0 0.0
    %2731 = vmatpush1.msra.mxu0 %v2686
    %2732 = vmatprep.subr.mxu0 0.0
    %2733 = vmatpush1.msra.mxu0 %v2685
    %2734 = vmatprep.subr.mxu0 0.0
    %2735 = vmatpush2.msra.mxu0 0.0
    %2736 = vmatprep.subr.mxu0 0.0
    %2737 = vmatpush2.msra.mxu0 0.0
    %2738 = vmatprep.subr.mxu0 0.0
    %2739 = vmatpush2.msra.mxu0 0.0
    %2740 = vmatprep.subr.mxu0 0.0
    %2741 = vmatpush2.msra.mxu0 0.0
    %2742 = vmatprep.subr.mxu0 0.0
    %2743 = vmatpush2.msra.mxu0 0.0
    %2744 = vmatprep.subr.mxu0 0.0
    %2745 = vmatpush2.msra.mxu0 0.0
    %2746 = vmatprep.subr.mxu0 0.0
    %2747 = vmatpush2.msra.mxu0 0.0
    %2748 = vmatprep.subr.mxu0 0.0
    %2749 = vmatpush2.msra.mxu0 0.0
    %2750 = vmatprep.subr.mxu0 0.0
    %2751 = vmatpush2.msra.mxu0 0.0
    %2752 = vmatprep.subr.mxu0 0.0
    %2753 = vmatpush2.msra.mxu0 0.0
    %2754 = vmatprep.subr.mxu0 0.0
    %2755 = vmatpush2.msra.mxu0 0.0
    %2756 = vmatprep.subr.mxu0 0.0
    %2757 = vmatpush2.msra.mxu0 0.0
    %2758 = vmatprep.subr.mxu0 0.0
    %2759 = vmatpush2.msra.mxu0 0.0
    %2760 = vmatprep.subr.mxu0 0.0
    %2761 = vmatpush2.msra.mxu0 0.0
    %2762 = vmatprep.subr.mxu0 0.0
    %2763 = vmatpush2.msra.mxu0 0.0
    %2764 = vmatprep.subr.mxu0 0.0
    %2765 = vmatpush2.msra.mxu0 0.0
    %2766 = vmatprep.mubr.f32.mxu0 0.0
    %2767 = vmatmul.mubr.f32.gmra.mxu0 %v2697
    %v2768 = vpop.f32.mrf.mxu0
    %v2769 = vadd.f32 %v2694, %v2768
    %v2770 = vpop.f32.mrf.mxu0
    %2771 = vmatprep.mubr.f32.mxu0 0.0
    %2772 = vmatmul.mubr.f32.gmra.mxu0 %v2700
    %v2773 = vpop.f32.mrf.mxu0
    %v2774 = vadd.f32 %v2694, %v2773
    %v2775 = vpop.f32.mrf.mxu0
    %2776 = vdwg.mxu0
    %v2777 = vld [vmem:[#allocation13] sm:$0xff]
    %v2778 = vld [vmem:[#allocation13 + $0x8] sm:$0xff]
    %v2779 = vld [vmem:[#allocation13 + $0x10] sm:$0xff]
    %v2780 = vld [vmem:[#allocation13 + $0x18] sm:$0xff]
    %2781 = vmatprep.subr.mxu0 0.0
    %2782 = vmatpush1.msra.mxu0 0.0
    %2783 = vmatprep.subr.mxu0 0.0
    %2784 = vmatpush1.msra.mxu0 0.0
    %2785 = vmatprep.subr.mxu0 0.0
    %2786 = vmatpush1.msra.mxu0 0.0
    %2787 = vmatprep.subr.mxu0 0.0
    %2788 = vmatpush1.msra.mxu0 0.0
    %2789 = vmatprep.subr.mxu0 0.0
    %2790 = vmatpush1.msra.mxu0 0.0
    %2791 = vmatprep.subr.mxu0 0.0
    %2792 = vmatpush1.msra.mxu0 0.0
    %2793 = vmatprep.subr.mxu0 0.0
    %2794 = vmatpush1.msra.mxu0 0.0
    %2795 = vmatprep.subr.mxu0 0.0
    %2796 = vmatpush1.msra.mxu0 0.0
    %2797 = vmatprep.subr.mxu0 0.0
    %2798 = vmatpush1.msra.mxu0 0.0
    %2799 = vmatprep.subr.mxu0 0.0
    %2800 = vmatpush1.msra.mxu0 0.0
    %2801 = vmatprep.subr.mxu0 0.0
    %2802 = vmatpush1.msra.mxu0 0.0
    %2803 = vmatprep.subr.mxu0 0.0
    %2804 = vmatpush1.msra.mxu0 0.0
    %2805 = vmatprep.subr.mxu0 0.0
    %2806 = vmatpush1.msra.mxu0 %v2780
    %2807 = vmatprep.subr.mxu0 0.0
    %2808 = vmatpush1.msra.mxu0 %v2779
    %2809 = vmatprep.subr.mxu0 0.0
    %2810 = vmatpush1.msra.mxu0 %v2778
    %2811 = vmatprep.subr.mxu0 0.0
    %2812 = vmatpush1.msra.mxu0 %v2777
    %2813 = vmatprep.subr.mxu0 0.0
    %2814 = vmatpush2.msra.mxu0 0.0
    %2815 = vmatprep.subr.mxu0 0.0
    %2816 = vmatpush2.msra.mxu0 0.0
    %2817 = vmatprep.subr.mxu0 0.0
    %2818 = vmatpush2.msra.mxu0 0.0
    %2819 = vmatprep.subr.mxu0 0.0
    %2820 = vmatpush2.msra.mxu0 0.0
    %2821 = vmatprep.subr.mxu0 0.0
    %2822 = vmatpush2.msra.mxu0 0.0
    %2823 = vmatprep.subr.mxu0 0.0
    %2824 = vmatpush2.msra.mxu0 0.0
    %2825 = vmatprep.subr.mxu0 0.0
    %2826 = vmatpush2.msra.mxu0 0.0
    %2827 = vmatprep.subr.mxu0 0.0
    %2828 = vmatpush2.msra.mxu0 0.0
    %2829 = vmatprep.subr.mxu0 0.0
    %2830 = vmatpush2.msra.mxu0 0.0
    %2831 = vmatprep.subr.mxu0 0.0
    %2832 = vmatpush2.msra.mxu0 0.0
    %2833 = vmatprep.subr.mxu0 0.0
    %2834 = vmatpush2.msra.mxu0 0.0
    %2835 = vmatprep.subr.mxu0 0.0
    %2836 = vmatpush2.msra.mxu0 0.0
    %2837 = vmatprep.subr.mxu0 0.0
    %2838 = vmatpush2.msra.mxu0 0.0
    %2839 = vmatprep.subr.mxu0 0.0
    %2840 = vmatpush2.msra.mxu0 0.0
    %2841 = vmatprep.subr.mxu0 0.0
    %2842 = vmatpush2.msra.mxu0 0.0
    %2843 = vmatprep.subr.mxu0 0.0
    %2844 = vmatpush2.msra.mxu0 0.0
    %2845 = vmatprep.mubr.f32.mxu0 0.0
    %2846 = vmatmul.mubr.f32.gmra.mxu0 %v240
    %v2847 = vpop.f32.mrf.mxu0
    %v2848 = vadd.f32 0.0, %v2847
    %v2849 = vpop.f32.mrf.mxu0
    %2850 = vdwg.mxu0
    %v2852 = vrot.slane %v2848, 1
    %v2855 = vadd.f32 %v2769, %v2848
    %v2856 = vadd.f32 %v2774, %v2852
    %v2857 = vxor.u32 %v2855, 2147483648
    %v2858 = vxor.u32 %v2856, 2147483648
    %v2859 = vmul.f32 %v2857, 1.442695
    %v2860 = vpow.pop %v2859
    %v2861 = vmul.f32 %v2858, 1.442695
    %v2862 = vpow.pop %v2861
    %v2863 = vadd.f32 %v2860, 1.0
    %v2864 = vadd.f32 %v2862, 1.0
    %v2865 = vrcp.pop %v2863
    %v2866 = vmul.f32 1.0, %v2865
    %v2867 = vrcp.pop %v2864
    %v2868 = vmul.f32 1.0, %v2867
    %v2869 = vtanh.pop %v2855
    %v2870 = vtanh.pop %v2856
    %v2871 = vmul.f32 %v2866, 0.0
    %v2872 = vmul.f32 %v2868, 0.0
    %2875 = vrot.lane.b32.xlu0 %v2869, 64
    %v2876 = vpop.permute.xlu0 %2875
    %2877 = vrot.lane.b32.xlu0 %v2870, 64
    %v2878 = vpop.permute.xlu0 %2877
    %v2881 = vmul.f32 %v2866, %v2876
    %v2882 = vmul.f32 %v2868, %v2878
    %2885 = vrot.lane.b32.xlu0 %v2881, 32
    %v2886 = vpop.permute.xlu0 %2885
    %2887 = vrot.lane.b32.xlu0 %v2882, 32
    %v2888 = vpop.permute.xlu0 %2887
    %v2891 = vadd.f32 %v2871, %v2886
    %v2892 = vadd.f32 %v2872, %v2888
    %v2893 = vtanh.pop %v2891
    %v2894 = vtanh.pop %v2892
    %2897 = vrot.lane.b32.xlu0 %v2893, 64
    %v2898 = vpop.permute.xlu0 %2897
    %2899 = vrot.lane.b32.xlu0 %v2894, 64
    %v2900 = vpop.permute.xlu0 %2899
    %v2903 = vmul.f32 %v2866, %v2898
    %v2904 = vmul.f32 %v2868, %v2900
    %2907 = vrot.lane.b32.xlu0 %v2903, 32
    %v2908 = vpop.permute.xlu0 %2907
    %2909 = vrot.lane.b32.xlu0 %v2904, 32
    %v2910 = vpop.permute.xlu0 %2909
    %2913 = vst.msk [vmem:[#allocation2] sm:$0x1] %vm374, %v2908
    %2914 = vst.msk [vmem:[#allocation2 + $0x8] sm:$0x1] %vm374, %v2910
    %v2915 = vrot.slane %v2904, 7
    %v2916 = vsel %vm378, %v2915, %v2903
    %2917 = vrot.lane.b32.xlu0 %v2916, 32
    %v2918 = vpop.permute.xlu0 %2917
    %v2919 = vsel %vm238, %v2918, 0
    %2921 = vmatprep.subr.mxu0 0.0
    %2922 = vmatpush1.msra.mxu0 0.0
    %2923 = vmatprep.subr.mxu0 0.0
    %2924 = vmatpush1.msra.mxu0 0.0
    %2925 = vmatprep.subr.mxu0 0.0
    %2926 = vmatpush1.msra.mxu0 0.0
    %2927 = vmatprep.subr.mxu0 0.0
    %2928 = vmatpush1.msra.mxu0 0.0
    %2929 = vmatprep.subr.mxu0 0.0
    %2930 = vmatpush1.msra.mxu0 0.0
    %2931 = vmatprep.subr.mxu0 0.0
    %2932 = vmatpush1.msra.mxu0 0.0
    %2933 = vmatprep.subr.mxu0 0.0
    %2934 = vmatpush1.msra.mxu0 0.0
    %2935 = vmatprep.subr.mxu0 0.0
    %2936 = vmatpush1.msra.mxu0 0.0
    %2937 = vmatprep.subr.mxu0 0.0
    %2938 = vmatpush1.msra.mxu0 0.0
    %2939 = vmatprep.subr.mxu0 0.0
    %2940 = vmatpush1.msra.mxu0 0.0
    %2941 = vmatprep.subr.mxu0 0.0
    %2942 = vmatpush1.msra.mxu0 0.0
    %2943 = vmatprep.subr.mxu0 0.0
    %2944 = vmatpush1.msra.mxu0 0.0
    %2945 = vmatprep.subr.mxu0 0.0
    %2946 = vmatpush1.msra.mxu0 %v2780
    %2947 = vmatprep.subr.mxu0 0.0
    %2948 = vmatpush1.msra.mxu0 %v2779
    %2949 = vmatprep.subr.mxu0 0.0
    %2950 = vmatpush1.msra.mxu0 %v2778
    %2951 = vmatprep.subr.mxu0 0.0
    %2952 = vmatpush1.msra.mxu0 %v2777
    %2953 = vmatprep.subr.mxu0 0.0
    %2954 = vmatpush2.msra.mxu0 0.0
    %2955 = vmatprep.subr.mxu0 0.0
    %2956 = vmatpush2.msra.mxu0 0.0
    %2957 = vmatprep.subr.mxu0 0.0
    %2958 = vmatpush2.msra.mxu0 0.0
    %2959 = vmatprep.subr.mxu0 0.0
    %2960 = vmatpush2.msra.mxu0 0.0
    %2961 = vmatprep.subr.mxu0 0.0
    %2962 = vmatpush2.msra.mxu0 0.0
    %2963 = vmatprep.subr.mxu0 0.0
    %2964 = vmatpush2.msra.mxu0 0.0
    %2965 = vmatprep.subr.mxu0 0.0
    %2966 = vmatpush2.msra.mxu0 0.0
    %2967 = vmatprep.subr.mxu0 0.0
    %2968 = vmatpush2.msra.mxu0 0.0
    %2969 = vmatprep.subr.mxu0 0.0
    %2970 = vmatpush2.msra.mxu0 0.0
    %2971 = vmatprep.subr.mxu0 0.0
    %2972 = vmatpush2.msra.mxu0 0.0
    %2973 = vmatprep.subr.mxu0 0.0
    %2974 = vmatpush2.msra.mxu0 0.0
    %2975 = vmatprep.subr.mxu0 0.0
    %2976 = vmatpush2.msra.mxu0 0.0
    %2977 = vmatprep.subr.mxu0 0.0
    %2978 = vmatpush2.msra.mxu0 0.0
    %2979 = vmatprep.subr.mxu0 0.0
    %2980 = vmatpush2.msra.mxu0 0.0
    %2981 = vmatprep.subr.mxu0 0.0
    %2982 = vmatpush2.msra.mxu0 0.0
    %2983 = vmatprep.subr.mxu0 0.0
    %2984 = vmatpush2.msra.mxu0 0.0
    %2985 = vmatprep.mubr.f32.mxu0 0.0
    %2986 = vmatmul.mubr.f32.gmra.mxu0 %v2919
    %v2987 = vpop.f32.mrf.mxu0
    %v2988 = vadd.f32 0.0, %v2987
    %v2989 = vpop.f32.mrf.mxu0
    %2990 = vdwg.mxu0
    %v2992 = vrot.slane %v2988, 7
    %v2995 = vadd.f32 %v2769, %v2992
    %v2996 = vadd.f32 %v2774, %v2988
    %v2997 = vxor.u32 %v2995, 2147483648
    %v2998 = vxor.u32 %v2996, 2147483648
    %v2999 = vmul.f32 %v2997, 1.442695
    %v3000 = vpow.pop %v2999
    %v3001 = vmul.f32 %v2998, 1.442695
    %v3002 = vpow.pop %v3001
    %v3003 = vadd.f32 %v3000, 1.0
    %v3004 = vadd.f32 %v3002, 1.0
    %v3005 = vrcp.pop %v3003
    %v3006 = vmul.f32 1.0, %v3005
    %v3007 = vrcp.pop %v3004
    %v3008 = vmul.f32 1.0, %v3007
    %v3009 = vtanh.pop %v2995
    %v3010 = vtanh.pop %v2996
    %v3013 = vrot.slane %v2891, 7
    %v3014 = vrot.slane %v2892, 7
    %v3017 = vmul.f32 %v3006, %v3013
    %v3018 = vmul.f32 %v3008, %v3014
    %3021 = vrot.lane.b32.xlu0 %v3009, 64
    %v3022 = vpop.permute.xlu0 %3021
    %3023 = vrot.lane.b32.xlu0 %v3010, 64
    %v3024 = vpop.permute.xlu0 %3023
    %v3027 = vmul.f32 %v3006, %v3022
    %v3028 = vmul.f32 %v3008, %v3024
    %3031 = vrot.lane.b32.xlu0 %v3027, 32
    %v3032 = vpop.permute.xlu0 %3031
    %3033 = vrot.lane.b32.xlu0 %v3028, 32
    %v3034 = vpop.permute.xlu0 %3033
    %v3037 = vadd.f32 %v3017, %v3032
    %v3038 = vadd.f32 %v3018, %v3034
    %v3039 = vtanh.pop %v3037
    %v3040 = vtanh.pop %v3038
    %3043 = vrot.lane.b32.xlu0 %v3039, 64
    %v3044 = vpop.permute.xlu0 %3043
    %3045 = vrot.lane.b32.xlu0 %v3040, 64
    %v3046 = vpop.permute.xlu0 %3045
    %v3049 = vmul.f32 %v3006, %v3044
    %v3050 = vmul.f32 %v3008, %v3046
    %3053 = vrot.lane.b32.xlu0 %v3049, 32
    %v3054 = vpop.permute.xlu0 %3053
    %3055 = vrot.lane.b32.xlu0 %v3050, 32
    %v3056 = vpop.permute.xlu0 %3055
    %3059 = vst.msk [vmem:[#allocation2] sm:$0x2] %vm522, %v3054
    %3060 = vst.msk [vmem:[#allocation2 + $0x8] sm:$0x2] %vm522, %v3056
    %v3061 = vrot.slane %v3049, 1
    %v3062 = vsel %vm378, %v3050, %v3061
    %3063 = vrot.lane.b32.xlu0 %v3062, 32
    %v3064 = vpop.permute.xlu0 %3063
    %v3065 = vsel %vm238, %v3064, 0
    %3067 = vmatprep.subr.mxu0 0.0
    %3068 = vmatpush1.msra.mxu0 0.0
    %3069 = vmatprep.subr.mxu0 0.0
    %3070 = vmatpush1.msra.mxu0 0.0
    %3071 = vmatprep.subr.mxu0 0.0
    %3072 = vmatpush1.msra.mxu0 0.0
    %3073 = vmatprep.subr.mxu0 0.0
    %3074 = vmatpush1.msra.mxu0 0.0
    %3075 = vmatprep.subr.mxu0 0.0
    %3076 = vmatpush1.msra.mxu0 0.0
    %3077 = vmatprep.subr.mxu0 0.0
    %3078 = vmatpush1.msra.mxu0 0.0
    %3079 = vmatprep.subr.mxu0 0.0
    %3080 = vmatpush1.msra.mxu0 0.0
    %3081 = vmatprep.subr.mxu0 0.0
    %3082 = vmatpush1.msra.mxu0 0.0
    %3083 = vmatprep.subr.mxu0 0.0
    %3084 = vmatpush1.msra.mxu0 0.0
    %3085 = vmatprep.subr.mxu0 0.0
    %3086 = vmatpush1.msra.mxu0 0.0
    %3087 = vmatprep.subr.mxu0 0.0
    %3088 = vmatpush1.msra.mxu0 0.0
    %3089 = vmatprep.subr.mxu0 0.0
    %3090 = vmatpush1.msra.mxu0 0.0
    %3091 = vmatprep.subr.mxu0 0.0
    %3092 = vmatpush1.msra.mxu0 %v2780
    %3093 = vmatprep.subr.mxu0 0.0
    %3094 = vmatpush1.msra.mxu0 %v2779
    %3095 = vmatprep.subr.mxu0 0.0
    %3096 = vmatpush1.msra.mxu0 %v2778
    %3097 = vmatprep.subr.mxu0 0.0
    %3098 = vmatpush1.msra.mxu0 %v2777
    %3099 = vmatprep.subr.mxu0 0.0
    %3100 = vmatpush2.msra.mxu0 0.0
    %3101 = vmatprep.subr.mxu0 0.0
    %3102 = vmatpush2.msra.mxu0 0.0
    %3103 = vmatprep.subr.mxu0 0.0
    %3104 = vmatpush2.msra.mxu0 0.0
    %3105 = vmatprep.subr.mxu0 0.0
    %3106 = vmatpush2.msra.mxu0 0.0
    %3107 = vmatprep.subr.mxu0 0.0
    %3108 = vmatpush2.msra.mxu0 0.0
    %3109 = vmatprep.subr.mxu0 0.0
    %3110 = vmatpush2.msra.mxu0 0.0
    %3111 = vmatprep.subr.mxu0 0.0
    %3112 = vmatpush2.msra.mxu0 0.0
    %3113 = vmatprep.subr.mxu0 0.0
    %3114 = vmatpush2.msra.mxu0 0.0
    %3115 = vmatprep.subr.mxu0 0.0
    %3116 = vmatpush2.msra.mxu0 0.0
    %3117 = vmatprep.subr.mxu0 0.0
    %3118 = vmatpush2.msra.mxu0 0.0
    %3119 = vmatprep.subr.mxu0 0.0
    %3120 = vmatpush2.msra.mxu0 0.0
    %3121 = vmatprep.subr.mxu0 0.0
    %3122 = vmatpush2.msra.mxu0 0.0
    %3123 = vmatprep.subr.mxu0 0.0
    %3124 = vmatpush2.msra.mxu0 0.0
    %3125 = vmatprep.subr.mxu0 0.0
    %3126 = vmatpush2.msra.mxu0 0.0
    %3127 = vmatprep.subr.mxu0 0.0
    %3128 = vmatpush2.msra.mxu0 0.0
    %3129 = vmatprep.subr.mxu0 0.0
    %3130 = vmatpush2.msra.mxu0 0.0
    %3131 = vmatprep.mubr.f32.mxu0 0.0
    %3132 = vmatmul.mubr.f32.gmra.mxu0 %v3065
    %v3133 = vpop.f32.mrf.mxu0
    %v3134 = vadd.f32 0.0, %v3133
    %v3135 = vpop.f32.mrf.mxu0
    %3136 = vdwg.mxu0
    %v3138 = vrot.slane %v3134, 6
    %v3139 = vrot.slane %v3134, 7
    %v3142 = vadd.f32 %v2769, %v3138
    %v3143 = vadd.f32 %v2774, %v3139
    %v3144 = vxor.u32 %v3142, 2147483648
    %v3145 = vxor.u32 %v3143, 2147483648
    %v3146 = vmul.f32 %v3144, 1.442695
    %v3147 = vpow.pop %v3146
    %v3148 = vmul.f32 %v3145, 1.442695
    %v3149 = vpow.pop %v3148
    %v3150 = vadd.f32 %v3147, 1.0
    %v3151 = vadd.f32 %v3149, 1.0
    %v3152 = vrcp.pop %v3150
    %v3153 = vmul.f32 1.0, %v3152
    %v3154 = vrcp.pop %v3151
    %v3155 = vmul.f32 1.0, %v3154
    %v3156 = vtanh.pop %v3142
    %v3157 = vtanh.pop %v3143
    %v3160 = vrot.slane %v3037, 7
    %v3161 = vrot.slane %v3038, 7
    %v3164 = vmul.f32 %v3153, %v3160
    %v3165 = vmul.f32 %v3155, %v3161
    %3168 = vrot.lane.b32.xlu0 %v3156, 64
    %v3169 = vpop.permute.xlu0 %3168
    %3170 = vrot.lane.b32.xlu0 %v3157, 64
    %v3171 = vpop.permute.xlu0 %3170
    %v3174 = vmul.f32 %v3153, %v3169
    %v3175 = vmul.f32 %v3155, %v3171
    %3178 = vrot.lane.b32.xlu0 %v3174, 32
    %v3179 = vpop.permute.xlu0 %3178
    %3180 = vrot.lane.b32.xlu0 %v3175, 32
    %v3181 = vpop.permute.xlu0 %3180
    %v3184 = vadd.f32 %v3164, %v3179
    %v3185 = vadd.f32 %v3165, %v3181
    %v3186 = vtanh.pop %v3184
    %v3187 = vtanh.pop %v3185
    %3190 = vrot.lane.b32.xlu0 %v3186, 64
    %v3191 = vpop.permute.xlu0 %3190
    %3192 = vrot.lane.b32.xlu0 %v3187, 64
    %v3193 = vpop.permute.xlu0 %3192
    %v3196 = vmul.f32 %v3153, %v3191
    %v3197 = vmul.f32 %v3155, %v3193
    %3200 = vrot.lane.b32.xlu0 %v3196, 32
    %v3201 = vpop.permute.xlu0 %3200
    %3202 = vrot.lane.b32.xlu0 %v3197, 32
    %v3203 = vpop.permute.xlu0 %3202
    %3206 = vst.msk [vmem:[#allocation2] sm:$0x4] %vm670, %v3201
    %3207 = vst.msk [vmem:[#allocation2 + $0x8] sm:$0x4] %vm670, %v3203
    %v3208 = vrot.slane %v3196, 2
    %v3209 = vrot.slane %v3197, 1
    %v3210 = vsel %vm378, %v3209, %v3208
    %3211 = vrot.lane.b32.xlu0 %v3210, 32
    %v3212 = vpop.permute.xlu0 %3211
    %v3213 = vsel %vm238, %v3212, 0
    %3215 = vmatprep.subr.mxu0 0.0
    %3216 = vmatpush1.msra.mxu0 0.0
    %3217 = vmatprep.subr.mxu0 0.0
    %3218 = vmatpush1.msra.mxu0 0.0
    %3219 = vmatprep.subr.mxu0 0.0
    %3220 = vmatpush1.msra.mxu0 0.0
    %3221 = vmatprep.subr.mxu0 0.0
    %3222 = vmatpush1.msra.mxu0 0.0
    %3223 = vmatprep.subr.mxu0 0.0
    %3224 = vmatpush1.msra.mxu0 0.0
    %3225 = vmatprep.subr.mxu0 0.0
    %3226 = vmatpush1.msra.mxu0 0.0
    %3227 = vmatprep.subr.mxu0 0.0
    %3228 = vmatpush1.msra.mxu0 0.0
    %3229 = vmatprep.subr.mxu0 0.0
    %3230 = vmatpush1.msra.mxu0 0.0
    %3231 = vmatprep.subr.mxu0 0.0
    %3232 = vmatpush1.msra.mxu0 0.0
    %3233 = vmatprep.subr.mxu0 0.0
    %3234 = vmatpush1.msra.mxu0 0.0
    %3235 = vmatprep.subr.mxu0 0.0
    %3236 = vmatpush1.msra.mxu0 0.0
    %3237 = vmatprep.subr.mxu0 0.0
    %3238 = vmatpush1.msra.mxu0 0.0
    %3239 = vmatprep.subr.mxu0 0.0
    %3240 = vmatpush1.msra.mxu0 %v2780
    %3241 = vmatprep.subr.mxu0 0.0
    %3242 = vmatpush1.msra.mxu0 %v2779
    %3243 = vmatprep.subr.mxu0 0.0
    %3244 = vmatpush1.msra.mxu0 %v2778
    %3245 = vmatprep.subr.mxu0 0.0
    %3246 = vmatpush1.msra.mxu0 %v2777
    %3247 = vmatprep.subr.mxu0 0.0
    %3248 = vmatpush2.msra.mxu0 0.0
    %3249 = vmatprep.subr.mxu0 0.0
    %3250 = vmatpush2.msra.mxu0 0.0
    %3251 = vmatprep.subr.mxu0 0.0
    %3252 = vmatpush2.msra.mxu0 0.0
    %3253 = vmatprep.subr.mxu0 0.0
    %3254 = vmatpush2.msra.mxu0 0.0
    %3255 = vmatprep.subr.mxu0 0.0
    %3256 = vmatpush2.msra.mxu0 0.0
    %3257 = vmatprep.subr.mxu0 0.0
    %3258 = vmatpush2.msra.mxu0 0.0
    %3259 = vmatprep.subr.mxu0 0.0
    %3260 = vmatpush2.msra.mxu0 0.0
    %3261 = vmatprep.subr.mxu0 0.0
    %3262 = vmatpush2.msra.mxu0 0.0
    %3263 = vmatprep.subr.mxu0 0.0
    %3264 = vmatpush2.msra.mxu0 0.0
    %3265 = vmatprep.subr.mxu0 0.0
    %3266 = vmatpush2.msra.mxu0 0.0
    %3267 = vmatprep.subr.mxu0 0.0
    %3268 = vmatpush2.msra.mxu0 0.0
    %3269 = vmatprep.subr.mxu0 0.0
    %3270 = vmatpush2.msra.mxu0 0.0
    %3271 = vmatprep.subr.mxu0 0.0
    %3272 = vmatpush2.msra.mxu0 0.0
    %3273 = vmatprep.subr.mxu0 0.0
    %3274 = vmatpush2.msra.mxu0 0.0
    %3275 = vmatprep.subr.mxu0 0.0
    %3276 = vmatpush2.msra.mxu0 0.0
    %3277 = vmatprep.subr.mxu0 0.0
    %3278 = vmatpush2.msra.mxu0 0.0
    %3279 = vmatprep.mubr.f32.mxu0 0.0
    %3280 = vmatmul.mubr.f32.gmra.mxu0 %v3213
    %v3281 = vpop.f32.mrf.mxu0
    %v3282 = vadd.f32 0.0, %v3281
    %v3283 = vpop.f32.mrf.mxu0
    %3284 = vdwg.mxu0
    %v3286 = vrot.slane %v3282, 5
    %v3287 = vrot.slane %v3282, 6
    %v3290 = vadd.f32 %v2769, %v3286
    %v3291 = vadd.f32 %v2774, %v3287
    %v3292 = vxor.u32 %v3290, 2147483648
    %v3293 = vxor.u32 %v3291, 2147483648
    %v3294 = vmul.f32 %v3292, 1.442695
    %v3295 = vpow.pop %v3294
    %v3296 = vmul.f32 %v3293, 1.442695
    %v3297 = vpow.pop %v3296
    %v3298 = vadd.f32 %v3295, 1.0
    %v3299 = vadd.f32 %v3297, 1.0
    %v3300 = vrcp.pop %v3298
    %v3301 = vmul.f32 1.0, %v3300
    %v3302 = vrcp.pop %v3299
    %v3303 = vmul.f32 1.0, %v3302
    %v3304 = vtanh.pop %v3290
    %v3305 = vtanh.pop %v3291
    %v3308 = vrot.slane %v3184, 7
    %v3309 = vrot.slane %v3185, 7
    %v3312 = vmul.f32 %v3301, %v3308
    %v3313 = vmul.f32 %v3303, %v3309
    %3316 = vrot.lane.b32.xlu0 %v3304, 64
    %v3317 = vpop.permute.xlu0 %3316
    %3318 = vrot.lane.b32.xlu0 %v3305, 64
    %v3319 = vpop.permute.xlu0 %3318
    %v3322 = vmul.f32 %v3301, %v3317
    %v3323 = vmul.f32 %v3303, %v3319
    %3326 = vrot.lane.b32.xlu0 %v3322, 32
    %v3327 = vpop.permute.xlu0 %3326
    %3328 = vrot.lane.b32.xlu0 %v3323, 32
    %v3329 = vpop.permute.xlu0 %3328
    %v3332 = vadd.f32 %v3312, %v3327
    %v3333 = vadd.f32 %v3313, %v3329
    %v3334 = vtanh.pop %v3332
    %v3335 = vtanh.pop %v3333
    %3338 = vrot.lane.b32.xlu0 %v3334, 64
    %v3339 = vpop.permute.xlu0 %3338
    %3340 = vrot.lane.b32.xlu0 %v3335, 64
    %v3341 = vpop.permute.xlu0 %3340
    %v3344 = vmul.f32 %v3301, %v3339
    %v3345 = vmul.f32 %v3303, %v3341
    %3348 = vrot.lane.b32.xlu0 %v3344, 32
    %v3349 = vpop.permute.xlu0 %3348
    %3350 = vrot.lane.b32.xlu0 %v3345, 32
    %v3351 = vpop.permute.xlu0 %3350
    %3354 = vst.msk [vmem:[#allocation2] sm:$0x8] %vm819, %v3349
    %3355 = vst.msk [vmem:[#allocation2 + $0x8] sm:$0x8] %vm819, %v3351
    %v3356 = vrot.slane %v3344, 3
    %v3357 = vrot.slane %v3345, 2
    %v3358 = vsel %vm378, %v3357, %v3356
    %3359 = vrot.lane.b32.xlu0 %v3358, 32
    %v3360 = vpop.permute.xlu0 %3359
    %v3361 = vsel %vm238, %v3360, 0
    %3363 = vmatprep.subr.mxu0 0.0
    %3364 = vmatpush1.msra.mxu0 0.0
    %3365 = vmatprep.subr.mxu0 0.0
    %3366 = vmatpush1.msra.mxu0 0.0
    %3367 = vmatprep.subr.mxu0 0.0
    %3368 = vmatpush1.msra.mxu0 0.0
    %3369 = vmatprep.subr.mxu0 0.0
    %3370 = vmatpush1.msra.mxu0 0.0
    %3371 = vmatprep.subr.mxu0 0.0
    %3372 = vmatpush1.msra.mxu0 0.0
    %3373 = vmatprep.subr.mxu0 0.0
    %3374 = vmatpush1.msra.mxu0 0.0
    %3375 = vmatprep.subr.mxu0 0.0
    %3376 = vmatpush1.msra.mxu0 0.0
    %3377 = vmatprep.subr.mxu0 0.0
    %3378 = vmatpush1.msra.mxu0 0.0
    %3379 = vmatprep.subr.mxu0 0.0
    %3380 = vmatpush1.msra.mxu0 0.0
    %3381 = vmatprep.subr.mxu0 0.0
    %3382 = vmatpush1.msra.mxu0 0.0
    %3383 = vmatprep.subr.mxu0 0.0
    %3384 = vmatpush1.msra.mxu0 0.0
    %3385 = vmatprep.subr.mxu0 0.0
    %3386 = vmatpush1.msra.mxu0 0.0
    %3387 = vmatprep.subr.mxu0 0.0
    %3388 = vmatpush1.msra.mxu0 %v2780
    %3389 = vmatprep.subr.mxu0 0.0
    %3390 = vmatpush1.msra.mxu0 %v2779
    %3391 = vmatprep.subr.mxu0 0.0
    %3392 = vmatpush1.msra.mxu0 %v2778
    %3393 = vmatprep.subr.mxu0 0.0
    %3394 = vmatpush1.msra.mxu0 %v2777
    %3395 = vmatprep.subr.mxu0 0.0
    %3396 = vmatpush2.msra.mxu0 0.0
    %3397 = vmatprep.subr.mxu0 0.0
    %3398 = vmatpush2.msra.mxu0 0.0
    %3399 = vmatprep.subr.mxu0 0.0
    %3400 = vmatpush2.msra.mxu0 0.0
    %3401 = vmatprep.subr.mxu0 0.0
    %3402 = vmatpush2.msra.mxu0 0.0
    %3403 = vmatprep.subr.mxu0 0.0
    %3404 = vmatpush2.msra.mxu0 0.0
    %3405 = vmatprep.subr.mxu0 0.0
    %3406 = vmatpush2.msra.mxu0 0.0
    %3407 = vmatprep.subr.mxu0 0.0
    %3408 = vmatpush2.msra.mxu0 0.0
    %3409 = vmatprep.subr.mxu0 0.0
    %3410 = vmatpush2.msra.mxu0 0.0
    %3411 = vmatprep.subr.mxu0 0.0
    %3412 = vmatpush2.msra.mxu0 0.0
    %3413 = vmatprep.subr.mxu0 0.0
    %3414 = vmatpush2.msra.mxu0 0.0
    %3415 = vmatprep.subr.mxu0 0.0
    %3416 = vmatpush2.msra.mxu0 0.0
    %3417 = vmatprep.subr.mxu0 0.0
    %3418 = vmatpush2.msra.mxu0 0.0
    %3419 = vmatprep.subr.mxu0 0.0
    %3420 = vmatpush2.msra.mxu0 0.0
    %3421 = vmatprep.subr.mxu0 0.0
    %3422 = vmatpush2.msra.mxu0 0.0
    %3423 = vmatprep.subr.mxu0 0.0
    %3424 = vmatpush2.msra.mxu0 0.0
    %3425 = vmatprep.subr.mxu0 0.0
    %3426 = vmatpush2.msra.mxu0 0.0
    %3427 = vmatprep.mubr.f32.mxu0 0.0
    %3428 = vmatmul.mubr.f32.gmra.mxu0 %v3361
    %v3429 = vpop.f32.mrf.mxu0
    %v3430 = vadd.f32 0.0, %v3429
    %v3431 = vpop.f32.mrf.mxu0
    %3432 = vdwg.mxu0
    %v3434 = vrot.slane %v3430, 4
    %v3435 = vrot.slane %v3430, 5
    %v3438 = vadd.f32 %v2769, %v3434
    %v3439 = vadd.f32 %v2774, %v3435
    %v3440 = vxor.u32 %v3438, 2147483648
    %v3441 = vxor.u32 %v3439, 2147483648
    %v3442 = vmul.f32 %v3440, 1.442695
    %v3443 = vpow.pop %v3442
    %v3444 = vmul.f32 %v3441, 1.442695
    %v3445 = vpow.pop %v3444
    %v3446 = vadd.f32 %v3443, 1.0
    %v3447 = vadd.f32 %v3445, 1.0
    %v3448 = vrcp.pop %v3446
    %v3449 = vmul.f32 1.0, %v3448
    %v3450 = vrcp.pop %v3447
    %v3451 = vmul.f32 1.0, %v3450
    %v3452 = vtanh.pop %v3438
    %v3453 = vtanh.pop %v3439
    %v3456 = vrot.slane %v3332, 7
    %v3457 = vrot.slane %v3333, 7
    %v3460 = vmul.f32 %v3449, %v3456
    %v3461 = vmul.f32 %v3451, %v3457
    %3464 = vrot.lane.b32.xlu0 %v3452, 64
    %v3465 = vpop.permute.xlu0 %3464
    %3466 = vrot.lane.b32.xlu0 %v3453, 64
    %v3467 = vpop.permute.xlu0 %3466
    %v3470 = vmul.f32 %v3449, %v3465
    %v3471 = vmul.f32 %v3451, %v3467
    %3474 = vrot.lane.b32.xlu0 %v3470, 32
    %v3475 = vpop.permute.xlu0 %3474
    %3476 = vrot.lane.b32.xlu0 %v3471, 32
    %v3477 = vpop.permute.xlu0 %3476
    %v3480 = vadd.f32 %v3460, %v3475
    %v3481 = vadd.f32 %v3461, %v3477
    %v3482 = vtanh.pop %v3480
    %v3483 = vtanh.pop %v3481
    %3486 = vrot.lane.b32.xlu0 %v3482, 64
    %v3487 = vpop.permute.xlu0 %3486
    %3488 = vrot.lane.b32.xlu0 %v3483, 64
    %v3489 = vpop.permute.xlu0 %3488
    %v3492 = vmul.f32 %v3449, %v3487
    %v3493 = vmul.f32 %v3451, %v3489
    %3496 = vrot.lane.b32.xlu0 %v3492, 32
    %v3497 = vpop.permute.xlu0 %3496
    %3498 = vrot.lane.b32.xlu0 %v3493, 32
    %v3499 = vpop.permute.xlu0 %3498
    %3502 = vst.msk [vmem:[#allocation2] sm:$0x10] %vm968, %v3497
    %3503 = vst.msk [vmem:[#allocation2 + $0x8] sm:$0x10] %vm968, %v3499
    %v3504 = vrot.slane %v3492, 4
    %v3505 = vrot.slane %v3493, 3
    %v3506 = vsel %vm378, %v3505, %v3504
    %3507 = vrot.lane.b32.xlu0 %v3506, 32
    %v3508 = vpop.permute.xlu0 %3507
    %v3509 = vsel %vm238, %v3508, 0
    %3511 = vmatprep.subr.mxu0 0.0
    %3512 = vmatpush1.msra.mxu0 0.0
    %3513 = vmatprep.subr.mxu0 0.0
    %3514 = vmatpush1.msra.mxu0 0.0
    %3515 = vmatprep.subr.mxu0 0.0
    %3516 = vmatpush1.msra.mxu0 0.0
    %3517 = vmatprep.subr.mxu0 0.0
    %3518 = vmatpush1.msra.mxu0 0.0
    %3519 = vmatprep.subr.mxu0 0.0
    %3520 = vmatpush1.msra.mxu0 0.0
    %3521 = vmatprep.subr.mxu0 0.0
    %3522 = vmatpush1.msra.mxu0 0.0
    %3523 = vmatprep.subr.mxu0 0.0
    %3524 = vmatpush1.msra.mxu0 0.0
    %3525 = vmatprep.subr.mxu0 0.0
    %3526 = vmatpush1.msra.mxu0 0.0
    %3527 = vmatprep.subr.mxu0 0.0
    %3528 = vmatpush1.msra.mxu0 0.0
    %3529 = vmatprep.subr.mxu0 0.0
    %3530 = vmatpush1.msra.mxu0 0.0
    %3531 = vmatprep.subr.mxu0 0.0
    %3532 = vmatpush1.msra.mxu0 0.0
    %3533 = vmatprep.subr.mxu0 0.0
    %3534 = vmatpush1.msra.mxu0 0.0
    %3535 = vmatprep.subr.mxu0 0.0
    %3536 = vmatpush1.msra.mxu0 %v2780
    %3537 = vmatprep.subr.mxu0 0.0
    %3538 = vmatpush1.msra.mxu0 %v2779
    %3539 = vmatprep.subr.mxu0 0.0
    %3540 = vmatpush1.msra.mxu0 %v2778
    %3541 = vmatprep.subr.mxu0 0.0
    %3542 = vmatpush1.msra.mxu0 %v2777
    %3543 = vmatprep.subr.mxu0 0.0
    %3544 = vmatpush2.msra.mxu0 0.0
    %3545 = vmatprep.subr.mxu0 0.0
    %3546 = vmatpush2.msra.mxu0 0.0
    %3547 = vmatprep.subr.mxu0 0.0
    %3548 = vmatpush2.msra.mxu0 0.0
    %3549 = vmatprep.subr.mxu0 0.0
    %3550 = vmatpush2.msra.mxu0 0.0
    %3551 = vmatprep.subr.mxu0 0.0
    %3552 = vmatpush2.msra.mxu0 0.0
    %3553 = vmatprep.subr.mxu0 0.0
    %3554 = vmatpush2.msra.mxu0 0.0
    %3555 = vmatprep.subr.mxu0 0.0
    %3556 = vmatpush2.msra.mxu0 0.0
    %3557 = vmatprep.subr.mxu0 0.0
    %3558 = vmatpush2.msra.mxu0 0.0
    %3559 = vmatprep.subr.mxu0 0.0
    %3560 = vmatpush2.msra.mxu0 0.0
    %3561 = vmatprep.subr.mxu0 0.0
    %3562 = vmatpush2.msra.mxu0 0.0
    %3563 = vmatprep.subr.mxu0 0.0
    %3564 = vmatpush2.msra.mxu0 0.0
    %3565 = vmatprep.subr.mxu0 0.0
    %3566 = vmatpush2.msra.mxu0 0.0
    %3567 = vmatprep.subr.mxu0 0.0
    %3568 = vmatpush2.msra.mxu0 0.0
    %3569 = vmatprep.subr.mxu0 0.0
    %3570 = vmatpush2.msra.mxu0 0.0
    %3571 = vmatprep.subr.mxu0 0.0
    %3572 = vmatpush2.msra.mxu0 0.0
    %3573 = vmatprep.subr.mxu0 0.0
    %3574 = vmatpush2.msra.mxu0 0.0
    %3575 = vmatprep.mubr.f32.mxu0 0.0
    %3576 = vmatmul.mubr.f32.gmra.mxu0 %v3509
    %v3577 = vpop.f32.mrf.mxu0
    %v3578 = vadd.f32 0.0, %v3577
    %v3579 = vpop.f32.mrf.mxu0
    %3580 = vdwg.mxu0
    %v3582 = vrot.slane %v3578, 3
    %v3583 = vrot.slane %v3578, 4
    %v3586 = vadd.f32 %v2769, %v3582
    %v3587 = vadd.f32 %v2774, %v3583
    %v3588 = vxor.u32 %v3586, 2147483648
    %v3589 = vxor.u32 %v3587, 2147483648
    %v3590 = vmul.f32 %v3588, 1.442695
    %v3591 = vpow.pop %v3590
    %v3592 = vmul.f32 %v3589, 1.442695
    %v3593 = vpow.pop %v3592
    %v3594 = vadd.f32 %v3591, 1.0
    %v3595 = vadd.f32 %v3593, 1.0
    %v3596 = vrcp.pop %v3594
    %v3597 = vmul.f32 1.0, %v3596
    %v3598 = vrcp.pop %v3595
    %v3599 = vmul.f32 1.0, %v3598
    %v3600 = vtanh.pop %v3586
    %v3601 = vtanh.pop %v3587
    %v3604 = vrot.slane %v3480, 7
    %v3605 = vrot.slane %v3481, 7
    %v3608 = vmul.f32 %v3597, %v3604
    %v3609 = vmul.f32 %v3599, %v3605
    %3612 = vrot.lane.b32.xlu0 %v3600, 64
    %v3613 = vpop.permute.xlu0 %3612
    %3614 = vrot.lane.b32.xlu0 %v3601, 64
    %v3615 = vpop.permute.xlu0 %3614
    %v3618 = vmul.f32 %v3597, %v3613
    %v3619 = vmul.f32 %v3599, %v3615
    %3622 = vrot.lane.b32.xlu0 %v3618, 32
    %v3623 = vpop.permute.xlu0 %3622
    %3624 = vrot.lane.b32.xlu0 %v3619, 32
    %v3625 = vpop.permute.xlu0 %3624
    %v3628 = vadd.f32 %v3608, %v3623
    %v3629 = vadd.f32 %v3609, %v3625
    %v3630 = vtanh.pop %v3628
    %v3631 = vtanh.pop %v3629
    %3634 = vrot.lane.b32.xlu0 %v3630, 64
    %v3635 = vpop.permute.xlu0 %3634
    %3636 = vrot.lane.b32.xlu0 %v3631, 64
    %v3637 = vpop.permute.xlu0 %3636
    %v3640 = vmul.f32 %v3597, %v3635
    %v3641 = vmul.f32 %v3599, %v3637
    %3644 = vrot.lane.b32.xlu0 %v3640, 32
    %v3645 = vpop.permute.xlu0 %3644
    %3646 = vrot.lane.b32.xlu0 %v3641, 32
    %v3647 = vpop.permute.xlu0 %3646
    %3650 = vst.msk [vmem:[#allocation2] sm:$0x20] %vm1117, %v3645
    %3651 = vst.msk [vmem:[#allocation2 + $0x8] sm:$0x20] %vm1117, %v3647
    %v3652 = vrot.slane %v3640, 5
    %v3653 = vrot.slane %v3641, 4
    %v3654 = vsel %vm378, %v3653, %v3652
    %3655 = vrot.lane.b32.xlu0 %v3654, 32
    %v3656 = vpop.permute.xlu0 %3655
    %v3657 = vsel %vm238, %v3656, 0
    %3659 = vmatprep.subr.mxu0 0.0
    %3660 = vmatpush1.msra.mxu0 0.0
    %3661 = vmatprep.subr.mxu0 0.0
    %3662 = vmatpush1.msra.mxu0 0.0
    %3663 = vmatprep.subr.mxu0 0.0
    %3664 = vmatpush1.msra.mxu0 0.0
    %3665 = vmatprep.subr.mxu0 0.0
    %3666 = vmatpush1.msra.mxu0 0.0
    %3667 = vmatprep.subr.mxu0 0.0
    %3668 = vmatpush1.msra.mxu0 0.0
    %3669 = vmatprep.subr.mxu0 0.0
    %3670 = vmatpush1.msra.mxu0 0.0
    %3671 = vmatprep.subr.mxu0 0.0
    %3672 = vmatpush1.msra.mxu0 0.0
    %3673 = vmatprep.subr.mxu0 0.0
    %3674 = vmatpush1.msra.mxu0 0.0
    %3675 = vmatprep.subr.mxu0 0.0
    %3676 = vmatpush1.msra.mxu0 0.0
    %3677 = vmatprep.subr.mxu0 0.0
    %3678 = vmatpush1.msra.mxu0 0.0
    %3679 = vmatprep.subr.mxu0 0.0
    %3680 = vmatpush1.msra.mxu0 0.0
    %3681 = vmatprep.subr.mxu0 0.0
    %3682 = vmatpush1.msra.mxu0 0.0
    %3683 = vmatprep.subr.mxu0 0.0
    %3684 = vmatpush1.msra.mxu0 %v2780
    %3685 = vmatprep.subr.mxu0 0.0
    %3686 = vmatpush1.msra.mxu0 %v2779
    %3687 = vmatprep.subr.mxu0 0.0
    %3688 = vmatpush1.msra.mxu0 %v2778
    %3689 = vmatprep.subr.mxu0 0.0
    %3690 = vmatpush1.msra.mxu0 %v2777
    %3691 = vmatprep.subr.mxu0 0.0
    %3692 = vmatpush2.msra.mxu0 0.0
    %3693 = vmatprep.subr.mxu0 0.0
    %3694 = vmatpush2.msra.mxu0 0.0
    %3695 = vmatprep.subr.mxu0 0.0
    %3696 = vmatpush2.msra.mxu0 0.0
    %3697 = vmatprep.subr.mxu0 0.0
    %3698 = vmatpush2.msra.mxu0 0.0
    %3699 = vmatprep.subr.mxu0 0.0
    %3700 = vmatpush2.msra.mxu0 0.0
    %3701 = vmatprep.subr.mxu0 0.0
    %3702 = vmatpush2.msra.mxu0 0.0
    %3703 = vmatprep.subr.mxu0 0.0
    %3704 = vmatpush2.msra.mxu0 0.0
    %3705 = vmatprep.subr.mxu0 0.0
    %3706 = vmatpush2.msra.mxu0 0.0
    %3707 = vmatprep.subr.mxu0 0.0
    %3708 = vmatpush2.msra.mxu0 0.0
    %3709 = vmatprep.subr.mxu0 0.0
    %3710 = vmatpush2.msra.mxu0 0.0
    %3711 = vmatprep.subr.mxu0 0.0
    %3712 = vmatpush2.msra.mxu0 0.0
    %3713 = vmatprep.subr.mxu0 0.0
    %3714 = vmatpush2.msra.mxu0 0.0
    %3715 = vmatprep.subr.mxu0 0.0
    %3716 = vmatpush2.msra.mxu0 0.0
    %3717 = vmatprep.subr.mxu0 0.0
    %3718 = vmatpush2.msra.mxu0 0.0
    %3719 = vmatprep.subr.mxu0 0.0
    %3720 = vmatpush2.msra.mxu0 0.0
    %3721 = vmatprep.subr.mxu0 0.0
    %3722 = vmatpush2.msra.mxu0 0.0
    %3723 = vmatprep.mubr.f32.mxu0 0.0
    %3724 = vmatmul.mubr.f32.gmra.mxu0 %v3657
    %v3725 = vpop.f32.mrf.mxu0
    %v3726 = vadd.f32 0.0, %v3725
    %v3727 = vpop.f32.mrf.mxu0
    %3728 = vdwg.mxu0
    %v3730 = vrot.slane %v3726, 2
    %v3731 = vrot.slane %v3726, 3
    %v3734 = vadd.f32 %v2769, %v3730
    %v3735 = vadd.f32 %v2774, %v3731
    %v3736 = vxor.u32 %v3734, 2147483648
    %v3737 = vxor.u32 %v3735, 2147483648
    %v3738 = vmul.f32 %v3736, 1.442695
    %v3739 = vpow.pop %v3738
    %v3740 = vmul.f32 %v3737, 1.442695
    %v3741 = vpow.pop %v3740
    %v3742 = vadd.f32 %v3739, 1.0
    %v3743 = vadd.f32 %v3741, 1.0
    %v3744 = vrcp.pop %v3742
    %v3745 = vmul.f32 1.0, %v3744
    %v3746 = vrcp.pop %v3743
    %v3747 = vmul.f32 1.0, %v3746
    %v3748 = vtanh.pop %v3734
    %v3749 = vtanh.pop %v3735
    %v3752 = vrot.slane %v3628, 7
    %v3753 = vrot.slane %v3629, 7
    %v3756 = vmul.f32 %v3745, %v3752
    %v3757 = vmul.f32 %v3747, %v3753
    %3760 = vrot.lane.b32.xlu0 %v3748, 64
    %v3761 = vpop.permute.xlu0 %3760
    %3762 = vrot.lane.b32.xlu0 %v3749, 64
    %v3763 = vpop.permute.xlu0 %3762
    %v3766 = vmul.f32 %v3745, %v3761
    %v3767 = vmul.f32 %v3747, %v3763
    %3770 = vrot.lane.b32.xlu0 %v3766, 32
    %v3771 = vpop.permute.xlu0 %3770
    %3772 = vrot.lane.b32.xlu0 %v3767, 32
    %v3773 = vpop.permute.xlu0 %3772
    %v3776 = vadd.f32 %v3756, %v3771
    %v3777 = vadd.f32 %v3757, %v3773
    %v3778 = vtanh.pop %v3776
    %v3779 = vtanh.pop %v3777
    %3782 = vrot.lane.b32.xlu0 %v3778, 64
    %v3783 = vpop.permute.xlu0 %3782
    %3784 = vrot.lane.b32.xlu0 %v3779, 64
    %v3785 = vpop.permute.xlu0 %3784
    %v3788 = vmul.f32 %v3745, %v3783
    %v3789 = vmul.f32 %v3747, %v3785
    %3792 = vrot.lane.b32.xlu0 %v3788, 32
    %v3793 = vpop.permute.xlu0 %3792
    %3794 = vrot.lane.b32.xlu0 %v3789, 32
    %v3795 = vpop.permute.xlu0 %3794
    %3798 = vst.msk [vmem:[#allocation2] sm:$0x40] %vm1266, %v3793
    %3799 = vst.msk [vmem:[#allocation2 + $0x8] sm:$0x40] %vm1266, %v3795
    %v3800 = vrot.slane %v3788, 6
    %v3801 = vrot.slane %v3789, 5
    %v3802 = vsel %vm378, %v3801, %v3800
    %3803 = vrot.lane.b32.xlu0 %v3802, 32
    %v3804 = vpop.permute.xlu0 %3803
    %v3805 = vsel %vm238, %v3804, 0
    %3807 = vmatprep.subr.mxu0 0.0
    %3808 = vmatpush1.msra.mxu0 0.0
    %3809 = vmatprep.subr.mxu0 0.0
    %3810 = vmatpush1.msra.mxu0 0.0
    %3811 = vmatprep.subr.mxu0 0.0
    %3812 = vmatpush1.msra.mxu0 0.0
    %3813 = vmatprep.subr.mxu0 0.0
    %3814 = vmatpush1.msra.mxu0 0.0
    %3815 = vmatprep.subr.mxu0 0.0
    %3816 = vmatpush1.msra.mxu0 0.0
    %3817 = vmatprep.subr.mxu0 0.0
    %3818 = vmatpush1.msra.mxu0 0.0
    %3819 = vmatprep.subr.mxu0 0.0
    %3820 = vmatpush1.msra.mxu0 0.0
    %3821 = vmatprep.subr.mxu0 0.0
    %3822 = vmatpush1.msra.mxu0 0.0
    %3823 = vmatprep.subr.mxu0 0.0
    %3824 = vmatpush1.msra.mxu0 0.0
    %3825 = vmatprep.subr.mxu0 0.0
    %3826 = vmatpush1.msra.mxu0 0.0
    %3827 = vmatprep.subr.mxu0 0.0
    %3828 = vmatpush1.msra.mxu0 0.0
    %3829 = vmatprep.subr.mxu0 0.0
    %3830 = vmatpush1.msra.mxu0 0.0
    %3831 = vmatprep.subr.mxu0 0.0
    %3832 = vmatpush1.msra.mxu0 %v2780
    %3833 = vmatprep.subr.mxu0 0.0
    %3834 = vmatpush1.msra.mxu0 %v2779
    %3835 = vmatprep.subr.mxu0 0.0
    %3836 = vmatpush1.msra.mxu0 %v2778
    %3837 = vmatprep.subr.mxu0 0.0
    %3838 = vmatpush1.msra.mxu0 %v2777
    %3839 = vmatprep.subr.mxu0 0.0
    %3840 = vmatpush2.msra.mxu0 0.0
    %3841 = vmatprep.subr.mxu0 0.0
    %3842 = vmatpush2.msra.mxu0 0.0
    %3843 = vmatprep.subr.mxu0 0.0
    %3844 = vmatpush2.msra.mxu0 0.0
    %3845 = vmatprep.subr.mxu0 0.0
    %3846 = vmatpush2.msra.mxu0 0.0
    %3847 = vmatprep.subr.mxu0 0.0
    %3848 = vmatpush2.msra.mxu0 0.0
    %3849 = vmatprep.subr.mxu0 0.0
    %3850 = vmatpush2.msra.mxu0 0.0
    %3851 = vmatprep.subr.mxu0 0.0
    %3852 = vmatpush2.msra.mxu0 0.0
    %3853 = vmatprep.subr.mxu0 0.0
    %3854 = vmatpush2.msra.mxu0 0.0
    %3855 = vmatprep.subr.mxu0 0.0
    %3856 = vmatpush2.msra.mxu0 0.0
    %3857 = vmatprep.subr.mxu0 0.0
    %3858 = vmatpush2.msra.mxu0 0.0
    %3859 = vmatprep.subr.mxu0 0.0
    %3860 = vmatpush2.msra.mxu0 0.0
    %3861 = vmatprep.subr.mxu0 0.0
    %3862 = vmatpush2.msra.mxu0 0.0
    %3863 = vmatprep.subr.mxu0 0.0
    %3864 = vmatpush2.msra.mxu0 0.0
    %3865 = vmatprep.subr.mxu0 0.0
    %3866 = vmatpush2.msra.mxu0 0.0
    %3867 = vmatprep.subr.mxu0 0.0
    %3868 = vmatpush2.msra.mxu0 0.0
    %3869 = vmatprep.subr.mxu0 0.0
    %3870 = vmatpush2.msra.mxu0 0.0
    %3871 = vmatprep.mubr.f32.mxu0 0.0
    %3872 = vmatmul.mubr.f32.gmra.mxu0 %v3805
    %v3873 = vpop.f32.mrf.mxu0
    %v3874 = vadd.f32 0.0, %v3873
    %v3875 = vpop.f32.mrf.mxu0
    %3876 = vdwg.mxu0
    %v3878 = vrot.slane %v3874, 1
    %v3879 = vrot.slane %v3874, 2
    %v3882 = vadd.f32 %v2769, %v3878
    %v3883 = vadd.f32 %v2774, %v3879
    %v3884 = vxor.u32 %v3882, 2147483648
    %v3885 = vxor.u32 %v3883, 2147483648
    %v3886 = vmul.f32 %v3884, 1.442695
    %v3887 = vpow.pop %v3886
    %v3888 = vmul.f32 %v3885, 1.442695
    %v3889 = vpow.pop %v3888
    %v3890 = vadd.f32 %v3887, 1.0
    %v3891 = vadd.f32 %v3889, 1.0
    %v3892 = vrcp.pop %v3890
    %v3893 = vmul.f32 1.0, %v3892
    %v3894 = vrcp.pop %v3891
    %v3895 = vmul.f32 1.0, %v3894
    %v3896 = vtanh.pop %v3882
    %v3897 = vtanh.pop %v3883
    %v3900 = vrot.slane %v3776, 7
    %v3901 = vrot.slane %v3777, 7
    %v3904 = vmul.f32 %v3893, %v3900
    %v3905 = vmul.f32 %v3895, %v3901
    %3908 = vrot.lane.b32.xlu0 %v3896, 64
    %v3909 = vpop.permute.xlu0 %3908
    %3910 = vrot.lane.b32.xlu0 %v3897, 64
    %v3911 = vpop.permute.xlu0 %3910
    %v3914 = vmul.f32 %v3893, %v3909
    %v3915 = vmul.f32 %v3895, %v3911
    %3918 = vrot.lane.b32.xlu0 %v3914, 32
    %v3919 = vpop.permute.xlu0 %3918
    %3920 = vrot.lane.b32.xlu0 %v3915, 32
    %v3921 = vpop.permute.xlu0 %3920
    %v3924 = vadd.f32 %v3904, %v3919
    %v3925 = vadd.f32 %v3905, %v3921
    %v3926 = vtanh.pop %v3924
    %v3927 = vtanh.pop %v3925
    %3930 = vrot.lane.b32.xlu0 %v3926, 64
    %v3931 = vpop.permute.xlu0 %3930
    %3932 = vrot.lane.b32.xlu0 %v3927, 64
    %v3933 = vpop.permute.xlu0 %3932
    %v3936 = vmul.f32 %v3893, %v3931
    %v3937 = vmul.f32 %v3895, %v3933
    %3940 = vrot.lane.b32.xlu0 %v3936, 32
    %v3941 = vpop.permute.xlu0 %3940
    %3942 = vrot.lane.b32.xlu0 %v3937, 32
    %v3943 = vpop.permute.xlu0 %3942
    %3946 = vst.msk [vmem:[#allocation2] sm:$0x80] %vm1415, %v3941
    %3947 = vst.msk [vmem:[#allocation2 + $0x8] sm:$0x80] %vm1415, %v3943
    %v3948 = vld [vmem:[#allocation2] sm:$0xff]
    %v3949 = vld [vmem:[#allocation2 + $0x8] sm:$0xff]
    %v3950 = vld [vmem:[%s10] sm:$0xff]
    %v3951 = vld [vmem:[%s10 + $0x8] sm:$0xff]
    %v3952 = vld [vmem:[%s10 + $0x10] sm:$0xff]
    %v3953 = vld [vmem:[%s10 + $0x18] sm:$0xff]
    %v3954 = vld [vmem:[#allocation14] sm:$0x1]
    %v3956 = vlaneseq
    %v3957 = vshrl.u32 %v3956, 7
    %v3958 = vsub.s32 0, %v3957
    %v3959 = vrot.slane %v3954, %v3958
    %v3962 = vsel %vm238, %v3948, 0
    %v3965 = vsel %vm238, %v3949, 0
    %3967 = vmatprep.subr.mxu0 0.0
    %3968 = vmatpush1.msra.mxu0 0.0
    %3969 = vmatprep.subr.mxu0 0.0
    %3970 = vmatpush1.msra.mxu0 0.0
    %3971 = vmatprep.subr.mxu0 0.0
    %3972 = vmatpush1.msra.mxu0 0.0
    %3973 = vmatprep.subr.mxu0 0.0
    %3974 = vmatpush1.msra.mxu0 0.0
    %3975 = vmatprep.subr.mxu0 0.0
    %3976 = vmatpush1.msra.mxu0 0.0
    %3977 = vmatprep.subr.mxu0 0.0
    %3978 = vmatpush1.msra.mxu0 0.0
    %3979 = vmatprep.subr.mxu0 0.0
    %3980 = vmatpush1.msra.mxu0 0.0
    %3981 = vmatprep.subr.mxu0 0.0
    %3982 = vmatpush1.msra.mxu0 0.0
    %3983 = vmatprep.subr.mxu0 0.0
    %3984 = vmatpush1.msra.mxu0 0.0
    %3985 = vmatprep.subr.mxu0 0.0
    %3986 = vmatpush1.msra.mxu0 0.0
    %3987 = vmatprep.subr.mxu0 0.0
    %3988 = vmatpush1.msra.mxu0 0.0
    %3989 = vmatprep.subr.mxu0 0.0
    %3990 = vmatpush1.msra.mxu0 0.0
    %3991 = vmatprep.subr.mxu0 0.0
    %3992 = vmatpush1.msra.mxu0 %v3953
    %3993 = vmatprep.subr.mxu0 0.0
    %3994 = vmatpush1.msra.mxu0 %v3952
    %3995 = vmatprep.subr.mxu0 0.0
    %3996 = vmatpush1.msra.mxu0 %v3951
    %3997 = vmatprep.subr.mxu0 0.0
    %3998 = vmatpush1.msra.mxu0 %v3950
    %3999 = vmatprep.subr.mxu0 0.0
    %4000 = vmatpush2.msra.mxu0 0.0
    %4001 = vmatprep.subr.mxu0 0.0
    %4002 = vmatpush2.msra.mxu0 0.0
    %4003 = vmatprep.subr.mxu0 0.0
    %4004 = vmatpush2.msra.mxu0 0.0
    %4005 = vmatprep.subr.mxu0 0.0
    %4006 = vmatpush2.msra.mxu0 0.0
    %4007 = vmatprep.subr.mxu0 0.0
    %4008 = vmatpush2.msra.mxu0 0.0
    %4009 = vmatprep.subr.mxu0 0.0
    %4010 = vmatpush2.msra.mxu0 0.0
    %4011 = vmatprep.subr.mxu0 0.0
    %4012 = vmatpush2.msra.mxu0 0.0
    %4013 = vmatprep.subr.mxu0 0.0
    %4014 = vmatpush2.msra.mxu0 0.0
    %4015 = vmatprep.subr.mxu0 0.0
    %4016 = vmatpush2.msra.mxu0 0.0
    %4017 = vmatprep.subr.mxu0 0.0
    %4018 = vmatpush2.msra.mxu0 0.0
    %4019 = vmatprep.subr.mxu0 0.0
    %4020 = vmatpush2.msra.mxu0 0.0
    %4021 = vmatprep.subr.mxu0 0.0
    %4022 = vmatpush2.msra.mxu0 0.0
    %4023 = vmatprep.subr.mxu0 0.0
    %4024 = vmatpush2.msra.mxu0 0.0
    %4025 = vmatprep.subr.mxu0 0.0
    %4026 = vmatpush2.msra.mxu0 0.0
    %4027 = vmatprep.subr.mxu0 0.0
    %4028 = vmatpush2.msra.mxu0 0.0
    %4029 = vmatprep.subr.mxu0 0.0
    %4030 = vmatpush2.msra.mxu0 0.0
    %4031 = vmatprep.mubr.f32.mxu0 0.0
    %4032 = vmatmul.mubr.f32.gmra.mxu0 %v3962
    %v4033 = vpop.f32.mrf.mxu0
    %v4034 = vadd.f32 %v3959, %v4033
    %v4035 = vpop.f32.mrf.mxu0
    %4036 = vmatprep.mubr.f32.mxu0 0.0
    %4037 = vmatmul.mubr.f32.gmra.mxu0 %v3965
    %v4038 = vpop.f32.mrf.mxu0
    %v4039 = vadd.f32 %v3959, %v4038
    %v4040 = vpop.f32.mrf.mxu0
    %4041 = vdwg.mxu0
    %vm4042 = vcmask 15360
    %4043 = vst.msk [vmem:[%s12] sm:$0xff] %vm4042, %v4034
    %4044 = vst.msk [vmem:[%s12 + $0x8] sm:$0xff] %vm4042, %v4039
    // Predicated region
    $region82: #{net_forward.1} parent=1 // pred_check
      _
    $region83: #{net_forward.1} parent=1 // pred_check_branch
      %4046 = sbr.rel (0) target = $region85
    $region84: #{net_forward.1} parent=1 // pred_region
      _
    $region85: #{net_forward.1} parent=1 // pred_fallthru
      _
    // Predicated region
    $region86: #{net_forward.1} parent=1 // pred_check
      _
    $region87: #{net_forward.1} parent=1 // pred_check_branch
      %4048 = sbr.rel (0) target = $region89
    $region88: #{net_forward.1} parent=1 // pred_region
      _
    $region89: #{net_forward.1} parent=1 // pred_fallthru
      _
    %4049 = vsyncpa [#allocation4], 1
    %4050 = vsyncpa [#allocation6], 1
    %4051 = vsyncpa [#allocation9], 1
    %4052 = vsyncpa [#allocation12], 1
    %4053 = vsyncpa [#allocation15], 1

</llo_original>
